<compile_context>
chip_gen: v7x
topology: tpu7x:2x2x1
jax: 0.10.0
libtpu: 0.0.40
codegen_flags: <defaults>
</compile_context>

<pallas_src>
import functools

import jax
import jax.numpy as jnp
from jax import lax
from jax.experimental import pallas as pl
from jax.experimental.pallas import tpu as pltpu


# ------------------------------ GRU step ------------------------------------

def _gru_step(gi, h, wh, bhn, Hc):
    """One GRU step. gi = x @ Wi + (bi_r+bh_r | bi_z+bh_z | bi_n) (hoisted).
    Gate layout is [r | z | n], each Hc wide. bhn is the (1, Hc) hidden n-bias."""
    gh = jnp.dot(h, wh, preferred_element_type=jnp.float32)
    r = jax.nn.sigmoid(gi[:, 0:Hc] + gh[:, 0:Hc])
    z = jax.nn.sigmoid(gi[:, Hc:2 * Hc] + gh[:, Hc:2 * Hc])
    n = jnp.tanh(gi[:, 2 * Hc:3 * Hc] + r * (gh[:, 2 * Hc:3 * Hc] + bhn))
    return (1.0 - z) * n + z * h


# --------------------------- fused DESIRE kernel ----------------------------

def _desire_kernel(layout, dims,
                   # data
                   xy_ref, eps_ref, base_ref, patches_ref, w_ref,
                   # outputs
                   traj_ref, mlv_ref,
                   # scratch
                   gi_xy_scr, gi_ioc_scr, hdec_scr, hioc_scr):
    (N, T_obs, T_pred, H, Z, D_dec, Hs, Ws, F) = dims
    T_max = max(T_obs, T_pred)
    S = Hs * Ws
    f32 = jnp.float32

    def W(name):
        r0, r, c = layout[name]
        return w_ref[r0:r0 + r, 0:c]          # static slab view -> one load

    # weights loaded once from the single packed slab
    wi_enc, wh_enc = W("wi_enc"), W("wh_enc")
    bi_enc, bhn_enc = W("bi_enc"), W("bhn_enc")
    mlv_w, mlv_b = W("mlv_w"), W("mlv_b")
    hin_w, hin_b = W("hin_w"), W("hin_b")
    dec_wi, dec_wh = W("dec_wi"), W("dec_wh")
    dec_bi, dec_bhn = W("dec_bi"), W("dec_bhn")
    dec_ow, dec_ob = W("dec_ow"), W("dec_ob")
    cnn_w, cnn_b = W("cnn_w"), W("cnn_b")
    ioc_wixy, ioc_wipool = W("ioc_wixy"), W("ioc_wipool")
    ioc_wh, ioc_bi, ioc_bhn = W("ioc_wh"), W("ioc_bi"), W("ioc_bhn")
    del_w, del_b = W("delta_w"), W("delta_b")

    # ------------- SGM: fused X/Y encoder (block-diagonal GRU) --------------
    # hoisted input projection: one matmul for BOTH encoders, all timesteps
    gi = jnp.dot(xy_ref[...], wi_enc, preferred_element_type=f32) + bi_enc   # (T_max*N, 6H)
    if T_obs != T_pred:
        # freeze the shorter chain past its length by saturating its z-gate
        rt = lax.broadcasted_iota(jnp.int32, gi.shape, 0) // N
        cc = lax.broadcasted_iota(jnp.int32, gi.shape, 1)
        frz = (((cc >= 2 * H) & (cc < 3 * H) & (rt >= T_obs)) |
               ((cc >= 3 * H) & (cc < 4 * H) & (rt >= T_pred)))
        gi = gi + jnp.where(frz, 1e9, 0.0)
    gi_xy_scr[...] = gi.reshape(T_max, N, 6 * H)

    def enc_step(t, hxy):
        return _gru_step(gi_xy_scr[t], hxy, wh_enc, bhn_enc, 2 * H)

    hxy = lax.fori_loop(0, T_max, enc_step, jnp.zeros((N, 2 * H), f32),
                        unroll=True)
    hx = hxy[:, 0:H]                           # SGM X-encoder last hidden

    # ------------- CVAE: fused mean/log_var head + reparameterization -------
    mlv = jnp.dot(hxy, mlv_w, preferred_element_type=f32) + mlv_b            # (N, 2Z)
    mlv_ref[...] = mlv
    mean = mlv[:, 0:Z]
    log_var = mlv[:, Z:2 * Z]
    zlat = mean + jnp.exp(0.5 * log_var) * eps_ref[...]

    # ------------- SGM decoder ----------------------------------------------
    hin = jnp.tanh(
        jnp.dot(hx, hin_w[0:H, :], preferred_element_type=f32)
        + jnp.dot(zlat, hin_w[H:H + Z, :], preferred_element_type=f32)
        + hin_b)                                                             # (N, H+D_dec)
    h0 = hin[:, 0:H]
    dec_in = hin[:, H:H + D_dec]               # constant over time
    gi_dec = jnp.dot(dec_in, dec_wi, preferred_element_type=f32) + dec_bi    # (N, 3H)

    def dec_step(t, h):
        h = _gru_step(gi_dec, h, dec_wh, dec_bhn, H)
        hdec_scr[t] = h
        return h

    lax.fori_loop(0, T_pred, dec_step, h0, unroll=True)

    # batched output head over the whole stacked hidden sequence
    pred = (jnp.dot(hdec_scr[...].reshape(T_pred * N, H), dec_ow,
                    preferred_element_type=f32) + dec_ob)                    # (T*N, 2)

    # ------------- IOC: scene CNN (feature map never leaves VMEM) -----------
    feat = jnp.maximum(
        jnp.dot(patches_ref[...], cnn_w, preferred_element_type=f32) + cnn_b,
        0.0)                                                                 # (N*S, F)

    # absolute positions: value-level cumsum of the predicted offsets
    a = base_ref[...]                          # x_start + cumsum(obs)[..., -1]
    abs_rows = []
    for t in range(T_pred):
        a = a + pred[t * N:(t + 1) * N, :]
        abs_rows.append(a)
    abs_all = jnp.concatenate(abs_rows, axis=0)                              # (T*N, 2)

    # TODO(synk): verify row/col axis order + round-half-up border clamp against
    #             the reference IOC pooling (SGM/IOC internals reconstructed).
    iy = jnp.clip(jnp.floor(abs_all[:, 0:1] + 0.5), 0.0,
                  float(Hs - 1)).astype(jnp.int32)
    ix = jnp.clip(jnp.floor(abs_all[:, 1:2] + 0.5), 0.0,
                  float(Ws - 1)).astype(jnp.int32)
    sp = iy * Ws + ix                                                        # (T*N, 1)
    col = lax.broadcasted_iota(jnp.int32, (T_pred * N, S), 1)
    hit = col == sp                                                          # (T*N, S)
    row_n = lax.broadcasted_iota(jnp.int32, (T_pred * N, 1), 0) % N

    # per-batch-element one-hot matmuls (keeps intermediate O(T*N*S))
    pooled = jnp.zeros((T_pred * N, F), f32)
    for n in range(N):
        sel = jnp.where(hit & (row_n == n), 1.0, 0.0)
        pooled = pooled + jnp.dot(sel, feat[n * S:(n + 1) * S, :],
                                  preferred_element_type=f32)

    # ------------- IOC scoring GRU + delta head ------------------------------
    gi_ioc = (jnp.dot(pred, ioc_wixy, preferred_element_type=f32)
              + jnp.dot(pooled, ioc_wipool, preferred_element_type=f32)
              + ioc_bi)                                                      # (T*N, 3H)
    gi_ioc_scr[...] = gi_ioc.reshape(T_pred, N, 3 * H)

    def ioc_step(t, h):
        h = _gru_step(gi_ioc_scr[t], h, ioc_wh, ioc_bhn, H)
        hioc_scr[t] = h
        return h

    lax.fori_loop(0, T_pred, ioc_step, hx, unroll=True)

    delta = (jnp.dot(hioc_scr[...].reshape(T_pred * N, H), del_w,
                     preferred_element_type=f32) + del_b)                    # (T*N, 2)

    # single merged output slab: [pred_rel | ioc_delta]
    traj_ref[...] = jnp.concatenate([pred, delta], axis=1)                   # (T*N, 4)


# ------------------------------- parameters ---------------------------------

def init_params(key, H, Z, C_scene, F_scene, D_dec):
    weight_shapes = {
        "enc_x_wi": (2, 3 * H), "enc_x_wh": (H, 3 * H),
        "enc_y_wi": (2, 3 * H), "enc_y_wh": (H, 3 * H),
        "fc_mean_w": (2 * H, Z), "fc_lv_w": (2 * H, Z),
        "dec_h0_w": (H + Z, H), "dec_in_w": (H + Z, D_dec),
        "dec_wi": (D_dec, 3 * H), "dec_wh": (H, 3 * H),
        "dec_out_w": (H, 2),
        "cnn_w": (9 * C_scene, F_scene),
        "ioc_wi": (2 + F_scene, 3 * H), "ioc_wh": (H, 3 * H),
        "score_w": (H, 1), "delta_w": (H, 2),
    }
    keys = jax.random.split(key, len(weight_shapes))
    p = {n: 0.1 * jax.random.normal(k, s, jnp.float32)
         for (n, s), k in zip(weight_shapes.items(), keys)}
    bias_dims = {
        "enc_x_bi": 3 * H, "enc_x_bh": 3 * H,
        "enc_y_bi": 3 * H, "enc_y_bh": 3 * H,
        "fc_mean_b": Z, "fc_lv_b": Z,
        "dec_h0_b": H, "dec_in_b": D_dec,
        "dec_bi": 3 * H, "dec_bh": 3 * H, "dec_out_b": 2,
        "cnn_b": F_scene,
        "ioc_bi": 3 * H, "ioc_bh": 3 * H,
        "score_b": 1, "delta_b": 2,
    }
    for n, d in bias_dims.items():
        p[n] = jnp.zeros((d,), jnp.float32)
    return p


def pack_desire_params(p):
    """Pre-fuse + pack all weights/biases into ONE (8,128)-padded f32 slab.
    Called ONCE outside jit. Returns (slab, layout, dims)."""
    f32 = jnp.float32
    H = p["enc_x_wh"].shape[0]
    Z = p["fc_mean_w"].shape[1]
    D_dec = p["dec_in_w"].shape[1]
    F = p["cnn_w"].shape[1]

    def gates(w):
        return w[:, 0:H], w[:, H:2 * H], w[:, 2 * H:3 * H]

    def b3(b):
        return b[0:H], b[H:2 * H], b[2 * H:3 * H]

    # ---- fused X/Y encoder, gate layout [r_x r_y z_x z_y n_x n_y] ----------
    xr, xz, xn = gates(p["enc_x_wi"])
    yr, yz, yn = gates(p["enc_y_wi"])
    Z2 = jnp.zeros((2, H), f32)
    wi_enc = jnp.concatenate([
        jnp.concatenate([xr, Z2, xz, Z2, xn, Z2], axis=1),
        jnp.concatenate([Z2, yr, Z2, yz, Z2, yn], axis=1)], axis=0)     # (4, 6H)
    hxr, hxz, hxn = gates(p["enc_x_wh"])
    hyr, hyz, hyn = gates(p["enc_y_wh"])
    Zh = jnp.zeros((H, H), f32)
    wh_enc = jnp.concatenate([
        jnp.concatenate([hxr, Zh, hxz, Zh, hxn, Zh], axis=1),
        jnp.concatenate([Zh, hyr, Zh, hyz, Zh, hyn], axis=1)], axis=0)  # (2H, 6H)
    bxr, bxz, bxn = b3(p["enc_x_bi"]); hbxr, hbxz, hbxn = b3(p["enc_x_bh"])
    byr, byz, byn = b3(p["enc_y_bi"]); hbyr, hbyz, hbyn = b3(p["enc_y_bh"])
    bi_enc = jnp.concatenate([bxr + hbxr, byr + hbyr,
                              bxz + hbxz, byz + hbyz, bxn, byn])[None, :]
    bhn_enc = jnp.concatenate([hbxn, hbyn])[None, :]

    # ---- CVAE heads (fused mean|log_var, fused h0|dec_in) ------------------
    mlv_w = jnp.concatenate([p["fc_mean_w"], p["fc_lv_w"]], axis=1)     # (2H, 2Z)
    mlv_b = jnp.concatenate([p["fc_mean_b"], p["fc_lv_b"]])[None, :]
    hin_w = jnp.concatenate([p["dec_h0_w"], p["dec_in_w"]], axis=1)     # (H+Z, H+D)
    hin_b = jnp.concatenate([p["dec_h0_b"], p["dec_in_b"]])[None, :]

    # ---- decoder / IOC GRUs: fold bh_r, bh_z into bi -----------------------
    dbr, dbz, dbn = b3(p["dec_bi"]); hdbr, hdbz, hdbn = b3(p["dec_bh"])
    dec_bi = jnp.concatenate([dbr + hdbr, dbz + hdbz, dbn])[None, :]
    dec_bhn = hdbn[None, :]
    ibr, ibz, ibn = b3(p["ioc_bi"]); hibr, hibz, hibn = b3(p["ioc_bh"])
    ioc_bi = jnp.concatenate([ibr + hibr, ibz + hibz, ibn])[None, :]
    ioc_bhn = hibn[None, :]

    # TODO(synk): the IOC score head (score_w/score_b) is intentionally omitted:
    #             DESIRE.forward discards out_scores.
    entries = [
        ("wi_enc", wi_enc), ("wh_enc", wh_enc),
        ("bi_enc", bi_enc), ("bhn_enc", bhn_enc),
        ("mlv_w", mlv_w), ("mlv_b", mlv_b), ("hin_w", hin_w), ("hin_b", hin_b),
        ("dec_wi", p["dec_wi"]), ("dec_wh", p["dec_wh"]),
        ("dec_bi", dec_bi), ("dec_bhn", dec_bhn),
        ("dec_ow", p["dec_out_w"]), ("dec_ob", p["dec_out_b"][None, :]),
        ("cnn_w", p["cnn_w"]), ("cnn_b", p["cnn_b"][None, :]),
        ("ioc_wixy", p["ioc_wi"][:2, :]), ("ioc_wipool", p["ioc_wi"][2:, :]),
        ("ioc_wh", p["ioc_wh"]), ("ioc_bi", ioc_bi), ("ioc_bhn", ioc_bhn),
        ("delta_w", p["delta_w"]), ("delta_b", p["delta_b"][None, :]),
    ]
    width = 128 * ((max(int(a.shape[1]) for _, a in entries) + 127) // 128)
    blocks, layout, row = [], {}, 0
    for name, a in entries:
        a = jnp.asarray(a, f32)
        r, c = int(a.shape[0]), int(a.shape[1])
        rp = (-r) % 8                                   # sublane-align each block
        blocks.append(jnp.pad(a, ((0, rp), (0, width - c))))
        layout[name] = (row, r, c)
        row += r + rp
    slab = jnp.concatenate(blocks, axis=0)              # (rows, 256) f32
    return slab, layout, dict(H=H, Z=Z, D_dec=D_dec, F=F)


# ------------------------------ forward wrapper ------------------------------

def desire_forward(slab, obs_traj_rel, pred_traj_gt_rel, x_start, scene, eps,
                   *, layout, hdims, seq_start_end=None):
    N, _, T_obs = obs_traj_rel.shape
    T_pred = pred_traj_gt_rel.shape[2]
    T_max = max(T_obs, T_pred)
    H, Z, D_dec, F = hdims["H"], hdims["Z"], hdims["D_dec"], hdims["F"]
    Nb, C, Hs, Ws = scene.shape
    f32 = jnp.float32

    # time-major sequences, zero-padded to the common length, fused [x|y] input
    x_t = jnp.transpose(obs_traj_rel, (2, 0, 1))
    y_t = jnp.transpose(pred_traj_gt_rel, (2, 0, 1))
    x_t = jnp.pad(x_t, ((0, T_max - T_obs), (0, 0), (0, 0)))
    y_t = jnp.pad(y_t, ((0, T_max - T_pred), (0, 0), (0, 0)))
    xy_enc = jnp.concatenate([x_t, y_t], axis=2).reshape(T_max * N, 4)

    base = x_start + jnp.sum(obs_traj_rel, axis=2)   # == cumsum(dim=2)[..., -1]

    # 3x3 "same"-conv im2col (XLA glue, tiny here).
    # TODO(synk): for v5e, fold the im2col into the kernel as 9 shifted matmuls
    #             to avoid the 9x scene HBM expansion.
    scene_nhwc = jnp.transpose(scene, (0, 2, 3, 1))
    xp = jnp.pad(scene_nhwc, ((0, 0), (1, 1), (1, 1), (0, 0)))
    patches = jnp.concatenate(
        [xp[:, dy:dy + Hs, dx:dx + Ws, :] for dy in range(3) for dx in range(3)],
        axis=-1).reshape(Nb * Hs * Ws, 9 * C)

    dims = (N, T_obs, T_pred, H, Z, D_dec, Hs, Ws, F)
    TN = T_pred * N

    traj, mlv = pl.pallas_call(
        functools.partial(_desire_kernel, layout, dims),
        out_shape=(
            jax.ShapeDtypeStruct((TN, 4), f32),       # [pred_rel(2) | delta(2)]
            jax.ShapeDtypeStruct((N, 2 * Z), f32),    # [mean | log_var]
        ),
        scratch_shapes=[
            pltpu.VMEM((T_max, N, 6 * H), f32),       # fused-encoder hoisted proj
            pltpu.VMEM((T_pred, N, 3 * H), f32),      # IOC hoisted input proj
            pltpu.VMEM((T_pred, N, H), f32),          # decoder hidden stack
            pltpu.VMEM((T_pred, N, H), f32),          # IOC hidden stack
        ],
    )(xy_enc, eps, base, patches, slab)

    pred_traj_rel = jnp.transpose(traj[:, 0:2].reshape(T_pred, N, 2), (1, 2, 0))
    pred_delta = jnp.transpose(traj[:, 2:4].reshape(T_pred, N, 2), (1, 2, 0))
    return pred_traj_rel, pred_delta, mlv[:, :Z], mlv[:, Z:]


# ---------------------------------- main -------------------------------------

if __name__ == "__main__":
    key = jax.random.PRNGKey(0)
    k_param, k_obs, k_gt, k_scene, k_start, k_eps = jax.random.split(key, 6)

    N, T_obs, T_pred = 2, 8, 8
    H, Z, D_dec = 32, 16, 16
    C_scene, F_scene = 3, 8
    Hs = Ws = 16

    params = init_params(k_param, H=H, Z=Z, C_scene=C_scene,
                         F_scene=F_scene, D_dec=D_dec)
    slab, layout, hdims = pack_desire_params(params)      # once, outside jit

    obs_traj_rel = jax.random.normal(k_obs, (N, 2, T_obs), jnp.float32)
    pred_traj_gt_rel = jax.random.normal(k_gt, (N, 2, T_pred), jnp.float32)
    scene = jax.random.normal(k_scene, (N, C_scene, Hs, Ws), jnp.float32)
    x_start = 8.0 + jax.random.normal(k_start, (N, 2), jnp.float32)
    eps = jax.random.normal(k_eps, (N, Z), jnp.float32)

    fwd = jax.jit(functools.partial(desire_forward, layout=layout, hdims=hdims))
    out = fwd(slab, obs_traj_rel, pred_traj_gt_rel, x_start, scene, eps)
    out = jax.block_until_ready(out)
    pred_traj_rel, pred_delta, mean, log_var = out

    assert pred_traj_rel.shape == (N, 2, T_pred)
    assert pred_delta.shape == (N, 2, T_pred)
    assert mean.shape == (N, Z) and log_var.shape == (N, Z)
    assert all(bool(jnp.all(jnp.isfinite(a))) for a in out)
    print("KERNEL_OK")
</pallas_src>

<mosaic_0001>
module attributes {stable_mosaic.version = 11 : i64} {
  func.func @_desire_kernel(%arg0: memref<16x4xf32, #tpu.memory_space<vmem>>, %arg1: memref<2x16xf32, #tpu.memory_space<vmem>>, %arg2: memref<2x2xf32, #tpu.memory_space<vmem>>, %arg3: memref<512x27xf32, #tpu.memory_space<vmem>>, %arg4: memref<464x256xf32, #tpu.memory_space<vmem>>, %arg5: memref<16x4xf32, #tpu.memory_space<vmem>>, %arg6: memref<2x32xf32, #tpu.memory_space<vmem>>, %arg7: memref<8x2x192xf32, #tpu.memory_space<vmem>>, %arg8: memref<8x2x96xf32, #tpu.memory_space<vmem>>, %arg9: memref<8x2x32xf32, #tpu.memory_space<vmem>>, %arg10: memref<8x2x32xf32, #tpu.memory_space<vmem>>) attributes {dimension_semantics = [], scalar_prefetch = 0 : i64, scratch_operands = 4 : i64, tpu.core_type = #tpu.core_type<tc>} {
    %c0 = arith.constant 0 : index
    %c0_0 = arith.constant 0 : index
    %0 = vector.load %arg4[%c0, %c0_0] : memref<464x256xf32, #tpu.memory_space<vmem>>, vector<4x192xf32>
    %c8 = arith.constant 8 : index
    %c0_1 = arith.constant 0 : index
    %1 = vector.load %arg4[%c8, %c0_1] : memref<464x256xf32, #tpu.memory_space<vmem>>, vector<64x192xf32>
    %c72 = arith.constant 72 : index
    %c0_2 = arith.constant 0 : index
    %2 = vector.load %arg4[%c72, %c0_2] : memref<464x256xf32, #tpu.memory_space<vmem>>, vector<1x192xf32>
    %c80 = arith.constant 80 : index
    %c0_3 = arith.constant 0 : index
    %3 = vector.load %arg4[%c80, %c0_3] : memref<464x256xf32, #tpu.memory_space<vmem>>, vector<1x64xf32>
    %c88 = arith.constant 88 : index
    %c0_4 = arith.constant 0 : index
    %4 = vector.load %arg4[%c88, %c0_4] : memref<464x256xf32, #tpu.memory_space<vmem>>, vector<64x32xf32>
    %c152 = arith.constant 152 : index
    %c0_5 = arith.constant 0 : index
    %5 = vector.load %arg4[%c152, %c0_5] : memref<464x256xf32, #tpu.memory_space<vmem>>, vector<1x32xf32>
    %c160 = arith.constant 160 : index
    %c0_6 = arith.constant 0 : index
    %6 = vector.load %arg4[%c160, %c0_6] : memref<464x256xf32, #tpu.memory_space<vmem>>, vector<48x48xf32>
    %c208 = arith.constant 208 : index
    %c0_7 = arith.constant 0 : index
    %7 = vector.load %arg4[%c208, %c0_7] : memref<464x256xf32, #tpu.memory_space<vmem>>, vector<1x48xf32>
    %c216 = arith.constant 216 : index
    %c0_8 = arith.constant 0 : index
    %8 = vector.load %arg4[%c216, %c0_8] : memref<464x256xf32, #tpu.memory_space<vmem>>, vector<16x96xf32>
    %c232 = arith.constant 232 : index
    %c0_9 = arith.constant 0 : index
    %9 = vector.load %arg4[%c232, %c0_9] : memref<464x256xf32, #tpu.memory_space<vmem>>, vector<32x96xf32>
    %c264 = arith.constant 264 : index
    %c0_10 = arith.constant 0 : index
    %10 = vector.load %arg4[%c264, %c0_10] : memref<464x256xf32, #tpu.memory_space<vmem>>, vector<1x96xf32>
    %c272 = arith.constant 272 : index
    %c0_11 = arith.constant 0 : index
    %11 = vector.load %arg4[%c272, %c0_11] : memref<464x256xf32, #tpu.memory_space<vmem>>, vector<1x32xf32>
    %c280 = arith.constant 280 : index
    %c0_12 = arith.constant 0 : index
    %12 = vector.load %arg4[%c280, %c0_12] : memref<464x256xf32, #tpu.memory_space<vmem>>, vector<32x2xf32>
    %c312 = arith.constant 312 : index
    %c0_13 = arith.constant 0 : index
    %13 = vector.load %arg4[%c312, %c0_13] : memref<464x256xf32, #tpu.memory_space<vmem>>, vector<1x2xf32>
    %c320 = arith.constant 320 : index
    %c0_14 = arith.constant 0 : index
    %14 = vector.load %arg4[%c320, %c0_14] : memref<464x256xf32, #tpu.memory_space<vmem>>, vector<27x8xf32>
    %c352 = arith.constant 352 : index
    %c0_15 = arith.constant 0 : index
    %15 = vector.load %arg4[%c352, %c0_15] : memref<464x256xf32, #tpu.memory_space<vmem>>, vector<1x8xf32>
    %c360 = arith.constant 360 : index
    %c0_16 = arith.constant 0 : index
    %16 = vector.load %arg4[%c360, %c0_16] : memref<464x256xf32, #tpu.memory_space<vmem>>, vector<2x96xf32>
    %c368 = arith.constant 368 : index
    %c0_17 = arith.constant 0 : index
    %17 = vector.load %arg4[%c368, %c0_17] : memref<464x256xf32, #tpu.memory_space<vmem>>, vector<8x96xf32>
    %c376 = arith.constant 376 : index
    %c0_18 = arith.constant 0 : index
    %18 = vector.load %arg4[%c376, %c0_18] : memref<464x256xf32, #tpu.memory_space<vmem>>, vector<32x96xf32>
    %c408 = arith.constant 408 : index
    %c0_19 = arith.constant 0 : index
    %19 = vector.load %arg4[%c408, %c0_19] : memref<464x256xf32, #tpu.memory_space<vmem>>, vector<1x96xf32>
    %c416 = arith.constant 416 : index
    %c0_20 = arith.constant 0 : index
    %20 = vector.load %arg4[%c416, %c0_20] : memref<464x256xf32, #tpu.memory_space<vmem>>, vector<1x32xf32>
    %c424 = arith.constant 424 : index
    %c0_21 = arith.constant 0 : index
    %21 = vector.load %arg4[%c424, %c0_21] : memref<464x256xf32, #tpu.memory_space<vmem>>, vector<32x2xf32>
    %c456 = arith.constant 456 : index
    %c0_22 = arith.constant 0 : index
    %22 = vector.load %arg4[%c456, %c0_22] : memref<464x256xf32, #tpu.memory_space<vmem>>, vector<1x2xf32>
    %c0_23 = arith.constant 0 : index
    %c0_24 = arith.constant 0 : index
    %23 = vector.load %arg0[%c0_23, %c0_24] : memref<16x4xf32, #tpu.memory_space<vmem>>, vector<16x4xf32>
    %cst = arith.constant dense<0.000000e+00> : vector<16x192xf32>
    %24 = tpu.matmul %23, %0, %cst {dimension_numbers = #tpu.dot_dimension_numbers<[1], [0], [0], [1], [0, 0, 1, 1], [], []>} : vector<16x4xf32>, vector<4x192xf32>, vector<16x192xf32> -> vector<16x192xf32>
    %25 = vector.broadcast %2 : vector<1x192xf32> to vector<16x192xf32>
    %26 = arith.addf %24, %25 : vector<16x192xf32>
    %27 = vector.shape_cast %26 : vector<16x192xf32> to vector<8x2x192xf32>
    %c0_25 = arith.constant 0 : index
    %c0_26 = arith.constant 0 : index
    %c0_27 = arith.constant 0 : index
    %28 = vector.load %arg7[%c0_25, %c0_26, %c0_27] : memref<8x2x192xf32, #tpu.memory_space<vmem>>, vector<8x2x192xf32>
    tpu.vector_store %arg7[%c0_25, %c0_26, %c0_27], %27 {strides = array<i32>} : memref<8x2x192xf32, #tpu.memory_space<vmem>>, vector<8x2x192xf32>,
    %cst_28 = arith.constant 0.000000e+00 : f32
    %29 = vector.broadcast %cst_28 : f32 to vector<2x64xf32>
    %c0_i32 = arith.constant 0 : i32
    %30 = arith.index_cast %c0_i32 : i32 to index
    %c0_29 = arith.constant 0 : index
    %c0_30 = arith.constant 0 : index
    %31 = vector.load %arg7[%30, %c0_29, %c0_30] : memref<8x2x192xf32, #tpu.memory_space<vmem>>, vector<1x2x192xf32>
    %32 = vector.shape_cast %31 : vector<1x2x192xf32> to vector<2x192xf32>
    %cst_31 = arith.constant dense<0.000000e+00> : vector<2x192xf32>
    %33 = tpu.matmul %29, %1, %cst_31 {dimension_numbers = #tpu.dot_dimension_numbers<[1], [0], [0], [1], [0, 0, 1, 1], [], []>} : vector<2x64xf32>, vector<64x192xf32>, vector<2x192xf32> -> vector<2x192xf32>
    %34 = vector.extract_strided_slice %32 {offsets = [0, 0], sizes = [2, 64], strides = [1, 1]} : vector<2x192xf32> to vector<2x64xf32>
    %35 = vector.extract_strided_slice %33 {offsets = [0, 0], sizes = [2, 64], strides = [1, 1]} : vector<2x192xf32> to vector<2x64xf32>
    %36 = arith.addf %34, %35 : vector<2x64xf32>
    %37 = arith.negf %36 : vector<2x64xf32>
    %38 = math.exp %37 : vector<2x64xf32>
    %cst_32 = arith.constant 1.000000e+00 : f32
    %39 = vector.broadcast %cst_32 : f32 to vector<2x64xf32>
    %40 = arith.addf %39, %38 : vector<2x64xf32>
    %41 = arith.divf %39, %40 : vector<2x64xf32>
    %42 = vector.extract_strided_slice %32 {offsets = [0, 64], sizes = [2, 64], strides = [1, 1]} : vector<2x192xf32> to vector<2x64xf32>
    %43 = vector.extract_strided_slice %33 {offsets = [0, 64], sizes = [2, 64], strides = [1, 1]} : vector<2x192xf32> to vector<2x64xf32>
    %44 = arith.addf %42, %43 : vector<2x64xf32>
    %45 = arith.negf %44 : vector<2x64xf32>
    %46 = math.exp %45 : vector<2x64xf32>
    %cst_33 = arith.constant 1.000000e+00 : f32
    %47 = vector.broadcast %cst_33 : f32 to vector<2x64xf32>
    %48 = arith.addf %47, %46 : vector<2x64xf32>
    %49 = arith.divf %47, %48 : vector<2x64xf32>
    %50 = vector.extract_strided_slice %32 {offsets = [0, 128], sizes = [2, 64], strides = [1, 1]} : vector<2x192xf32> to vector<2x64xf32>
    %51 = vector.extract_strided_slice %33 {offsets = [0, 128], sizes = [2, 64], strides = [1, 1]} : vector<2x192xf32> to vector<2x64xf32>
    %52 = vector.broadcast %3 : vector<1x64xf32> to vector<2x64xf32>
    %53 = arith.addf %51, %52 : vector<2x64xf32>
    %54 = arith.mulf %41, %53 : vector<2x64xf32>
    %55 = arith.addf %50, %54 : vector<2x64xf32>
    %56 = math.tanh %55 : vector<2x64xf32>
    %cst_34 = arith.constant 1.000000e+00 : f32
    %57 = vector.broadcast %cst_34 : f32 to vector<2x64xf32>
    %58 = arith.subf %57, %49 : vector<2x64xf32>
    %59 = arith.mulf %58, %56 : vector<2x64xf32>
    %60 = arith.mulf %49, %29 : vector<2x64xf32>
    %61 = arith.addf %59, %60 : vector<2x64xf32>
    %c1_i32 = arith.constant 1 : i32
    %62 = arith.index_cast %c1_i32 : i32 to index
    %c0_35 = arith.constant 0 : index
    %c0_36 = arith.constant 0 : index
    %63 = vector.load %arg7[%62, %c0_35, %c0_36] : memref<8x2x192xf32, #tpu.memory_space<vmem>>, vector<1x2x192xf32>
    %64 = vector.shape_cast %63 : vector<1x2x192xf32> to vector<2x192xf32>
    %cst_37 = arith.constant dense<0.000000e+00> : vector<2x192xf32>
    %65 = tpu.matmul %61, %1, %cst_37 {dimension_numbers = #tpu.dot_dimension_numbers<[1], [0], [0], [1], [0, 0, 1, 1], [], []>} : vector<2x64xf32>, vector<64x192xf32>, vector<2x192xf32> -> vector<2x192xf32>
    %66 = vector.extract_strided_slice %64 {offsets = [0, 0], sizes = [2, 64], strides = [1, 1]} : vector<2x192xf32> to vector<2x64xf32>
    %67 = vector.extract_strided_slice %65 {offsets = [0, 0], sizes = [2, 64], strides = [1, 1]} : vector<2x192xf32> to vector<2x64xf32>
    %68 = arith.addf %66, %67 : vector<2x64xf32>
    %69 = arith.negf %68 : vector<2x64xf32>
    %70 = math.exp %69 : vector<2x64xf32>
    %cst_38 = arith.constant 1.000000e+00 : f32
    %71 = vector.broadcast %cst_38 : f32 to vector<2x64xf32>
    %72 = arith.addf %71, %70 : vector<2x64xf32>
    %73 = arith.divf %71, %72 : vector<2x64xf32>
    %74 = vector.extract_strided_slice %64 {offsets = [0, 64], sizes = [2, 64], strides = [1, 1]} : vector<2x192xf32> to vector<2x64xf32>
    %75 = vector.extract_strided_slice %65 {offsets = [0, 64], sizes = [2, 64], strides = [1, 1]} : vector<2x192xf32> to vector<2x64xf32>
    %76 = arith.addf %74, %75 : vector<2x64xf32>
    %77 = arith.negf %76 : vector<2x64xf32>
    %78 = math.exp %77 : vector<2x64xf32>
    %cst_39 = arith.constant 1.000000e+00 : f32
    %79 = vector.broadcast %cst_39 : f32 to vector<2x64xf32>
    %80 = arith.addf %79, %78 : vector<2x64xf32>
    %81 = arith.divf %79, %80 : vector<2x64xf32>
    %82 = vector.extract_strided_slice %64 {offsets = [0, 128], sizes = [2, 64], strides = [1, 1]} : vector<2x192xf32> to vector<2x64xf32>
    %83 = vector.extract_strided_slice %65 {offsets = [0, 128], sizes = [2, 64], strides = [1, 1]} : vector<2x192xf32> to vector<2x64xf32>
    %84 = vector.broadcast %3 : vector<1x64xf32> to vector<2x64xf32>
    %85 = arith.addf %83, %84 : vector<2x64xf32>
    %86 = arith.mulf %73, %85 : vector<2x64xf32>
    %87 = arith.addf %82, %86 : vector<2x64xf32>
    %88 = math.tanh %87 : vector<2x64xf32>
    %cst_40 = arith.constant 1.000000e+00 : f32
    %89 = vector.broadcast %cst_40 : f32 to vector<2x64xf32>
    %90 = arith.subf %89, %81 : vector<2x64xf32>
    %91 = arith.mulf %90, %88 : vector<2x64xf32>
    %92 = arith.mulf %81, %61 : vector<2x64xf32>
    %93 = arith.addf %91, %92 : vector<2x64xf32>
    %c2_i32 = arith.constant 2 : i32
    %94 = arith.index_cast %c2_i32 : i32 to index
    %c0_41 = arith.constant 0 : index
    %c0_42 = arith.constant 0 : index
    %95 = vector.load %arg7[%94, %c0_41, %c0_42] : memref<8x2x192xf32, #tpu.memory_space<vmem>>, vector<1x2x192xf32>
    %96 = vector.shape_cast %95 : vector<1x2x192xf32> to vector<2x192xf32>
    %cst_43 = arith.constant dense<0.000000e+00> : vector<2x192xf32>
    %97 = tpu.matmul %93, %1, %cst_43 {dimension_numbers = #tpu.dot_dimension_numbers<[1], [0], [0], [1], [0, 0, 1, 1], [], []>} : vector<2x64xf32>, vector<64x192xf32>, vector<2x192xf32> -> vector<2x192xf32>
    %98 = vector.extract_strided_slice %96 {offsets = [0, 0], sizes = [2, 64], strides = [1, 1]} : vector<2x192xf32> to vector<2x64xf32>
    %99 = vector.extract_strided_slice %97 {offsets = [0, 0], sizes = [2, 64], strides = [1, 1]} : vector<2x192xf32> to vector<2x64xf32>
    %100 = arith.addf %98, %99 : vector<2x64xf32>
    %101 = arith.negf %100 : vector<2x64xf32>
    %102 = math.exp %101 : vector<2x64xf32>
    %cst_44 = arith.constant 1.000000e+00 : f32
    %103 = vector.broadcast %cst_44 : f32 to vector<2x64xf32>
    %104 = arith.addf %103, %102 : vector<2x64xf32>
    %105 = arith.divf %103, %104 : vector<2x64xf32>
    %106 = vector.extract_strided_slice %96 {offsets = [0, 64], sizes = [2, 64], strides = [1, 1]} : vector<2x192xf32> to vector<2x64xf32>
    %107 = vector.extract_strided_slice %97 {offsets = [0, 64], sizes = [2, 64], strides = [1, 1]} : vector<2x192xf32> to vector<2x64xf32>
    %108 = arith.addf %106, %107 : vector<2x64xf32>
    %109 = arith.negf %108 : vector<2x64xf32>
    %110 = math.exp %109 : vector<2x64xf32>
    %cst_45 = arith.constant 1.000000e+00 : f32
    %111 = vector.broadcast %cst_45 : f32 to vector<2x64xf32>
    %112 = arith.addf %111, %110 : vector<2x64xf32>
    %113 = arith.divf %111, %112 : vector<2x64xf32>
    %114 = vector.extract_strided_slice %96 {offsets = [0, 128], sizes = [2, 64], strides = [1, 1]} : vector<2x192xf32> to vector<2x64xf32>
    %115 = vector.extract_strided_slice %97 {offsets = [0, 128], sizes = [2, 64], strides = [1, 1]} : vector<2x192xf32> to vector<2x64xf32>
    %116 = vector.broadcast %3 : vector<1x64xf32> to vector<2x64xf32>
    %117 = arith.addf %115, %116 : vector<2x64xf32>
    %118 = arith.mulf %105, %117 : vector<2x64xf32>
    %119 = arith.addf %114, %118 : vector<2x64xf32>
    %120 = math.tanh %119 : vector<2x64xf32>
    %cst_46 = arith.constant 1.000000e+00 : f32
    %121 = vector.broadcast %cst_46 : f32 to vector<2x64xf32>
    %122 = arith.subf %121, %113 : vector<2x64xf32>
    %123 = arith.mulf %122, %120 : vector<2x64xf32>
    %124 = arith.mulf %113, %93 : vector<2x64xf32>
    %125 = arith.addf %123, %124 : vector<2x64xf32>
    %c3_i32 = arith.constant 3 : i32
    %126 = arith.index_cast %c3_i32 : i32 to index
    %c0_47 = arith.constant 0 : index
    %c0_48 = arith.constant 0 : index
    %127 = vector.load %arg7[%126, %c0_47, %c0_48] : memref<8x2x192xf32, #tpu.memory_space<vmem>>, vector<1x2x192xf32>
    %128 = vector.shape_cast %127 : vector<1x2x192xf32> to vector<2x192xf32>
    %cst_49 = arith.constant dense<0.000000e+00> : vector<2x192xf32>
    %129 = tpu.matmul %125, %1, %cst_49 {dimension_numbers = #tpu.dot_dimension_numbers<[1], [0], [0], [1], [0, 0, 1, 1], [], []>} : vector<2x64xf32>, vector<64x192xf32>, vector<2x192xf32> -> vector<2x192xf32>
    %130 = vector.extract_strided_slice %128 {offsets = [0, 0], sizes = [2, 64], strides = [1, 1]} : vector<2x192xf32> to vector<2x64xf32>
    %131 = vector.extract_strided_slice %129 {offsets = [0, 0], sizes = [2, 64], strides = [1, 1]} : vector<2x192xf32> to vector<2x64xf32>
    %132 = arith.addf %130, %131 : vector<2x64xf32>
    %133 = arith.negf %132 : vector<2x64xf32>
    %134 = math.exp %133 : vector<2x64xf32>
    %cst_50 = arith.constant 1.000000e+00 : f32
    %135 = vector.broadcast %cst_50 : f32 to vector<2x64xf32>
    %136 = arith.addf %135, %134 : vector<2x64xf32>
    %137 = arith.divf %135, %136 : vector<2x64xf32>
    %138 = vector.extract_strided_slice %128 {offsets = [0, 64], sizes = [2, 64], strides = [1, 1]} : vector<2x192xf32> to vector<2x64xf32>
    %139 = vector.extract_strided_slice %129 {offsets = [0, 64], sizes = [2, 64], strides = [1, 1]} : vector<2x192xf32> to vector<2x64xf32>
    %140 = arith.addf %138, %139 : vector<2x64xf32>
    %141 = arith.negf %140 : vector<2x64xf32>
    %142 = math.exp %141 : vector<2x64xf32>
    %cst_51 = arith.constant 1.000000e+00 : f32
    %143 = vector.broadcast %cst_51 : f32 to vector<2x64xf32>
    %144 = arith.addf %143, %142 : vector<2x64xf32>
    %145 = arith.divf %143, %144 : vector<2x64xf32>
    %146 = vector.extract_strided_slice %128 {offsets = [0, 128], sizes = [2, 64], strides = [1, 1]} : vector<2x192xf32> to vector<2x64xf32>
    %147 = vector.extract_strided_slice %129 {offsets = [0, 128], sizes = [2, 64], strides = [1, 1]} : vector<2x192xf32> to vector<2x64xf32>
    %148 = vector.broadcast %3 : vector<1x64xf32> to vector<2x64xf32>
    %149 = arith.addf %147, %148 : vector<2x64xf32>
    %150 = arith.mulf %137, %149 : vector<2x64xf32>
    %151 = arith.addf %146, %150 : vector<2x64xf32>
    %152 = math.tanh %151 : vector<2x64xf32>
    %cst_52 = arith.constant 1.000000e+00 : f32
    %153 = vector.broadcast %cst_52 : f32 to vector<2x64xf32>
    %154 = arith.subf %153, %145 : vector<2x64xf32>
    %155 = arith.mulf %154, %152 : vector<2x64xf32>
    %156 = arith.mulf %145, %125 : vector<2x64xf32>
    %157 = arith.addf %155, %156 : vector<2x64xf32>
    %c4_i32 = arith.constant 4 : i32
    %158 = arith.index_cast %c4_i32 : i32 to index
    %c0_53 = arith.constant 0 : index
    %c0_54 = arith.constant 0 : index
    %159 = vector.load %arg7[%158, %c0_53, %c0_54] : memref<8x2x192xf32, #tpu.memory_space<vmem>>, vector<1x2x192xf32>
    %160 = vector.shape_cast %159 : vector<1x2x192xf32> to vector<2x192xf32>
    %cst_55 = arith.constant dense<0.000000e+00> : vector<2x192xf32>
    %161 = tpu.matmul %157, %1, %cst_55 {dimension_numbers = #tpu.dot_dimension_numbers<[1], [0], [0], [1], [0, 0, 1, 1], [], []>} : vector<2x64xf32>, vector<64x192xf32>, vector<2x192xf32> -> vector<2x192xf32>
    %162 = vector.extract_strided_slice %160 {offsets = [0, 0], sizes = [2, 64], strides = [1, 1]} : vector<2x192xf32> to vector<2x64xf32>
    %163 = vector.extract_strided_slice %161 {offsets = [0, 0], sizes = [2, 64], strides = [1, 1]} : vector<2x192xf32> to vector<2x64xf32>
    %164 = arith.addf %162, %163 : vector<2x64xf32>
    %165 = arith.negf %164 : vector<2x64xf32>
    %166 = math.exp %165 : vector<2x64xf32>
    %cst_56 = arith.constant 1.000000e+00 : f32
    %167 = vector.broadcast %cst_56 : f32 to vector<2x64xf32>
    %168 = arith.addf %167, %166 : vector<2x64xf32>
    %169 = arith.divf %167, %168 : vector<2x64xf32>
    %170 = vector.extract_strided_slice %160 {offsets = [0, 64], sizes = [2, 64], strides = [1, 1]} : vector<2x192xf32> to vector<2x64xf32>
    %171 = vector.extract_strided_slice %161 {offsets = [0, 64], sizes = [2, 64], strides = [1, 1]} : vector<2x192xf32> to vector<2x64xf32>
    %172 = arith.addf %170, %171 : vector<2x64xf32>
    %173 = arith.negf %172 : vector<2x64xf32>
    %174 = math.exp %173 : vector<2x64xf32>
    %cst_57 = arith.constant 1.000000e+00 : f32
    %175 = vector.broadcast %cst_57 : f32 to vector<2x64xf32>
    %176 = arith.addf %175, %174 : vector<2x64xf32>
    %177 = arith.divf %175, %176 : vector<2x64xf32>
    %178 = vector.extract_strided_slice %160 {offsets = [0, 128], sizes = [2, 64], strides = [1, 1]} : vector<2x192xf32> to vector<2x64xf32>
    %179 = vector.extract_strided_slice %161 {offsets = [0, 128], sizes = [2, 64], strides = [1, 1]} : vector<2x192xf32> to vector<2x64xf32>
    %180 = vector.broadcast %3 : vector<1x64xf32> to vector<2x64xf32>
    %181 = arith.addf %179, %180 : vector<2x64xf32>
    %182 = arith.mulf %169, %181 : vector<2x64xf32>
    %183 = arith.addf %178, %182 : vector<2x64xf32>
    %184 = math.tanh %183 : vector<2x64xf32>
    %cst_58 = arith.constant 1.000000e+00 : f32
    %185 = vector.broadcast %cst_58 : f32 to vector<2x64xf32>
    %186 = arith.subf %185, %177 : vector<2x64xf32>
    %187 = arith.mulf %186, %184 : vector<2x64xf32>
    %188 = arith.mulf %177, %157 : vector<2x64xf32>
    %189 = arith.addf %187, %188 : vector<2x64xf32>
    %c5_i32 = arith.constant 5 : i32
    %190 = arith.index_cast %c5_i32 : i32 to index
    %c0_59 = arith.constant 0 : index
    %c0_60 = arith.constant 0 : index
    %191 = vector.load %arg7[%190, %c0_59, %c0_60] : memref<8x2x192xf32, #tpu.memory_space<vmem>>, vector<1x2x192xf32>
    %192 = vector.shape_cast %191 : vector<1x2x192xf32> to vector<2x192xf32>
    %cst_61 = arith.constant dense<0.000000e+00> : vector<2x192xf32>
    %193 = tpu.matmul %189, %1, %cst_61 {dimension_numbers = #tpu.dot_dimension_numbers<[1], [0], [0], [1], [0, 0, 1, 1], [], []>} : vector<2x64xf32>, vector<64x192xf32>, vector<2x192xf32> -> vector<2x192xf32>
    %194 = vector.extract_strided_slice %192 {offsets = [0, 0], sizes = [2, 64], strides = [1, 1]} : vector<2x192xf32> to vector<2x64xf32>
    %195 = vector.extract_strided_slice %193 {offsets = [0, 0], sizes = [2, 64], strides = [1, 1]} : vector<2x192xf32> to vector<2x64xf32>
    %196 = arith.addf %194, %195 : vector<2x64xf32>
    %197 = arith.negf %196 : vector<2x64xf32>
    %198 = math.exp %197 : vector<2x64xf32>
    %cst_62 = arith.constant 1.000000e+00 : f32
    %199 = vector.broadcast %cst_62 : f32 to vector<2x64xf32>
    %200 = arith.addf %199, %198 : vector<2x64xf32>
    %201 = arith.divf %199, %200 : vector<2x64xf32>
    %202 = vector.extract_strided_slice %192 {offsets = [0, 64], sizes = [2, 64], strides = [1, 1]} : vector<2x192xf32> to vector<2x64xf32>
    %203 = vector.extract_strided_slice %193 {offsets = [0, 64], sizes = [2, 64], strides = [1, 1]} : vector<2x192xf32> to vector<2x64xf32>
    %204 = arith.addf %202, %203 : vector<2x64xf32>
    %205 = arith.negf %204 : vector<2x64xf32>
    %206 = math.exp %205 : vector<2x64xf32>
    %cst_63 = arith.constant 1.000000e+00 : f32
    %207 = vector.broadcast %cst_63 : f32 to vector<2x64xf32>
    %208 = arith.addf %207, %206 : vector<2x64xf32>
    %209 = arith.divf %207, %208 : vector<2x64xf32>
    %210 = vector.extract_strided_slice %192 {offsets = [0, 128], sizes = [2, 64], strides = [1, 1]} : vector<2x192xf32> to vector<2x64xf32>
    %211 = vector.extract_strided_slice %193 {offsets = [0, 128], sizes = [2, 64], strides = [1, 1]} : vector<2x192xf32> to vector<2x64xf32>
    %212 = vector.broadcast %3 : vector<1x64xf32> to vector<2x64xf32>
    %213 = arith.addf %211, %212 : vector<2x64xf32>
    %214 = arith.mulf %201, %213 : vector<2x64xf32>
    %215 = arith.addf %210, %214 : vector<2x64xf32>
    %216 = math.tanh %215 : vector<2x64xf32>
    %cst_64 = arith.constant 1.000000e+00 : f32
    %217 = vector.broadcast %cst_64 : f32 to vector<2x64xf32>
    %218 = arith.subf %217, %209 : vector<2x64xf32>
    %219 = arith.mulf %218, %216 : vector<2x64xf32>
    %220 = arith.mulf %209, %189 : vector<2x64xf32>
    %221 = arith.addf %219, %220 : vector<2x64xf32>
    %c6_i32 = arith.constant 6 : i32
    %222 = arith.index_cast %c6_i32 : i32 to index
    %c0_65 = arith.constant 0 : index
    %c0_66 = arith.constant 0 : index
    %223 = vector.load %arg7[%222, %c0_65, %c0_66] : memref<8x2x192xf32, #tpu.memory_space<vmem>>, vector<1x2x192xf32>
    %224 = vector.shape_cast %223 : vector<1x2x192xf32> to vector<2x192xf32>
    %cst_67 = arith.constant dense<0.000000e+00> : vector<2x192xf32>
    %225 = tpu.matmul %221, %1, %cst_67 {dimension_numbers = #tpu.dot_dimension_numbers<[1], [0], [0], [1], [0, 0, 1, 1], [], []>} : vector<2x64xf32>, vector<64x192xf32>, vector<2x192xf32> -> vector<2x192xf32>
    %226 = vector.extract_strided_slice %224 {offsets = [0, 0], sizes = [2, 64], strides = [1, 1]} : vector<2x192xf32> to vector<2x64xf32>
    %227 = vector.extract_strided_slice %225 {offsets = [0, 0], sizes = [2, 64], strides = [1, 1]} : vector<2x192xf32> to vector<2x64xf32>
    %228 = arith.addf %226, %227 : vector<2x64xf32>
    %229 = arith.negf %228 : vector<2x64xf32>
    %230 = math.exp %229 : vector<2x64xf32>
    %cst_68 = arith.constant 1.000000e+00 : f32
    %231 = vector.broadcast %cst_68 : f32 to vector<2x64xf32>
    %232 = arith.addf %231, %230 : vector<2x64xf32>
    %233 = arith.divf %231, %232 : vector<2x64xf32>
    %234 = vector.extract_strided_slice %224 {offsets = [0, 64], sizes = [2, 64], strides = [1, 1]} : vector<2x192xf32> to vector<2x64xf32>
    %235 = vector.extract_strided_slice %225 {offsets = [0, 64], sizes = [2, 64], strides = [1, 1]} : vector<2x192xf32> to vector<2x64xf32>
    %236 = arith.addf %234, %235 : vector<2x64xf32>
    %237 = arith.negf %236 : vector<2x64xf32>
    %238 = math.exp %237 : vector<2x64xf32>
    %cst_69 = arith.constant 1.000000e+00 : f32
    %239 = vector.broadcast %cst_69 : f32 to vector<2x64xf32>
    %240 = arith.addf %239, %238 : vector<2x64xf32>
    %241 = arith.divf %239, %240 : vector<2x64xf32>
    %242 = vector.extract_strided_slice %224 {offsets = [0, 128], sizes = [2, 64], strides = [1, 1]} : vector<2x192xf32> to vector<2x64xf32>
    %243 = vector.extract_strided_slice %225 {offsets = [0, 128], sizes = [2, 64], strides = [1, 1]} : vector<2x192xf32> to vector<2x64xf32>
    %244 = vector.broadcast %3 : vector<1x64xf32> to vector<2x64xf32>
    %245 = arith.addf %243, %244 : vector<2x64xf32>
    %246 = arith.mulf %233, %245 : vector<2x64xf32>
    %247 = arith.addf %242, %246 : vector<2x64xf32>
    %248 = math.tanh %247 : vector<2x64xf32>
    %cst_70 = arith.constant 1.000000e+00 : f32
    %249 = vector.broadcast %cst_70 : f32 to vector<2x64xf32>
    %250 = arith.subf %249, %241 : vector<2x64xf32>
    %251 = arith.mulf %250, %248 : vector<2x64xf32>
    %252 = arith.mulf %241, %221 : vector<2x64xf32>
    %253 = arith.addf %251, %252 : vector<2x64xf32>
    %c7_i32 = arith.constant 7 : i32
    %254 = arith.index_cast %c7_i32 : i32 to index
    %c0_71 = arith.constant 0 : index
    %c0_72 = arith.constant 0 : index
    %255 = vector.load %arg7[%254, %c0_71, %c0_72] : memref<8x2x192xf32, #tpu.memory_space<vmem>>, vector<1x2x192xf32>
    %256 = vector.shape_cast %255 : vector<1x2x192xf32> to vector<2x192xf32>
    %cst_73 = arith.constant dense<0.000000e+00> : vector<2x192xf32>
    %257 = tpu.matmul %253, %1, %cst_73 {dimension_numbers = #tpu.dot_dimension_numbers<[1], [0], [0], [1], [0, 0, 1, 1], [], []>} : vector<2x64xf32>, vector<64x192xf32>, vector<2x192xf32> -> vector<2x192xf32>
    %258 = vector.extract_strided_slice %256 {offsets = [0, 0], sizes = [2, 64], strides = [1, 1]} : vector<2x192xf32> to vector<2x64xf32>
    %259 = vector.extract_strided_slice %257 {offsets = [0, 0], sizes = [2, 64], strides = [1, 1]} : vector<2x192xf32> to vector<2x64xf32>
    %260 = arith.addf %258, %259 : vector<2x64xf32>
    %261 = arith.negf %260 : vector<2x64xf32>
    %262 = math.exp %261 : vector<2x64xf32>
    %cst_74 = arith.constant 1.000000e+00 : f32
    %263 = vector.broadcast %cst_74 : f32 to vector<2x64xf32>
    %264 = arith.addf %263, %262 : vector<2x64xf32>
    %265 = arith.divf %263, %264 : vector<2x64xf32>
    %266 = vector.extract_strided_slice %256 {offsets = [0, 64], sizes = [2, 64], strides = [1, 1]} : vector<2x192xf32> to vector<2x64xf32>
    %267 = vector.extract_strided_slice %257 {offsets = [0, 64], sizes = [2, 64], strides = [1, 1]} : vector<2x192xf32> to vector<2x64xf32>
    %268 = arith.addf %266, %267 : vector<2x64xf32>
    %269 = arith.negf %268 : vector<2x64xf32>
    %270 = math.exp %269 : vector<2x64xf32>
    %cst_75 = arith.constant 1.000000e+00 : f32
    %271 = vector.broadcast %cst_75 : f32 to vector<2x64xf32>
    %272 = arith.addf %271, %270 : vector<2x64xf32>
    %273 = arith.divf %271, %272 : vector<2x64xf32>
    %274 = vector.extract_strided_slice %256 {offsets = [0, 128], sizes = [2, 64], strides = [1, 1]} : vector<2x192xf32> to vector<2x64xf32>
    %275 = vector.extract_strided_slice %257 {offsets = [0, 128], sizes = [2, 64], strides = [1, 1]} : vector<2x192xf32> to vector<2x64xf32>
    %276 = vector.broadcast %3 : vector<1x64xf32> to vector<2x64xf32>
    %277 = arith.addf %275, %276 : vector<2x64xf32>
    %278 = arith.mulf %265, %277 : vector<2x64xf32>
    %279 = arith.addf %274, %278 : vector<2x64xf32>
    %280 = math.tanh %279 : vector<2x64xf32>
    %cst_76 = arith.constant 1.000000e+00 : f32
    %281 = vector.broadcast %cst_76 : f32 to vector<2x64xf32>
    %282 = arith.subf %281, %273 : vector<2x64xf32>
    %283 = arith.mulf %282, %280 : vector<2x64xf32>
    %284 = arith.mulf %273, %253 : vector<2x64xf32>
    %285 = arith.addf %283, %284 : vector<2x64xf32>
    %c8_i32 = arith.constant 8 : i32
    %286 = vector.extract_strided_slice %285 {offsets = [0, 0], sizes = [2, 32], strides = [1, 1]} : vector<2x64xf32> to vector<2x32xf32>
    %cst_77 = arith.constant dense<0.000000e+00> : vector<2x32xf32>
    %287 = tpu.matmul %285, %4, %cst_77 {dimension_numbers = #tpu.dot_dimension_numbers<[1], [0], [0], [1], [0, 0, 1, 1], [], []>} : vector<2x64xf32>, vector<64x32xf32>, vector<2x32xf32> -> vector<2x32xf32>
    %288 = vector.broadcast %5 : vector<1x32xf32> to vector<2x32xf32>
    %289 = arith.addf %287, %288 : vector<2x32xf32>
    %c0_78 = arith.constant 0 : index
    %c0_79 = arith.constant 0 : index
    %290 = vector.load %arg6[%c0_78, %c0_79] : memref<2x32xf32, #tpu.memory_space<vmem>>, vector<2x32xf32>
    tpu.vector_store %arg6[%c0_78, %c0_79], %289 {strides = array<i32>} : memref<2x32xf32, #tpu.memory_space<vmem>>, vector<2x32xf32>,
    %291 = vector.extract_strided_slice %289 {offsets = [0, 0], sizes = [2, 16], strides = [1, 1]} : vector<2x32xf32> to vector<2x16xf32>
    %292 = vector.extract_strided_slice %289 {offsets = [0, 16], sizes = [2, 16], strides = [1, 1]} : vector<2x32xf32> to vector<2x16xf32>
    %cst_80 = arith.constant 5.000000e-01 : f32
    %293 = vector.broadcast %cst_80 : f32 to vector<2x16xf32>
    %294 = arith.mulf %293, %292 : vector<2x16xf32>
    %295 = math.exp %294 : vector<2x16xf32>
    %c0_81 = arith.constant 0 : index
    %c0_82 = arith.constant 0 : index
    %296 = vector.load %arg1[%c0_81, %c0_82] : memref<2x16xf32, #tpu.memory_space<vmem>>, vector<2x16xf32>
    %297 = arith.mulf %295, %296 : vector<2x16xf32>
    %298 = arith.addf %291, %297 : vector<2x16xf32>
    %299 = vector.extract_strided_slice %6 {offsets = [0, 0], sizes = [32, 48], strides = [1, 1]} : vector<48x48xf32> to vector<32x48xf32>
    %cst_83 = arith.constant dense<0.000000e+00> : vector<2x48xf32>
    %300 = tpu.matmul %286, %299, %cst_83 {dimension_numbers = #tpu.dot_dimension_numbers<[1], [0], [0], [1], [0, 0, 1, 1], [], []>} : vector<2x32xf32>, vector<32x48xf32>, vector<2x48xf32> -> vector<2x48xf32>
    %301 = vector.extract_strided_slice %6 {offsets = [32, 0], sizes = [16, 48], strides = [1, 1]} : vector<48x48xf32> to vector<16x48xf32>
    %cst_84 = arith.constant dense<0.000000e+00> : vector<2x48xf32>
    %302 = tpu.matmul %298, %301, %cst_84 {dimension_numbers = #tpu.dot_dimension_numbers<[1], [0], [0], [1], [0, 0, 1, 1], [], []>} : vector<2x16xf32>, vector<16x48xf32>, vector<2x48xf32> -> vector<2x48xf32>
    %303 = arith.addf %300, %302 : vector<2x48xf32>
    %304 = vector.broadcast %7 : vector<1x48xf32> to vector<2x48xf32>
    %305 = arith.addf %303, %304 : vector<2x48xf32>
    %306 = math.tanh %305 : vector<2x48xf32>
    %307 = vector.extract_strided_slice %306 {offsets = [0, 0], sizes = [2, 32], strides = [1, 1]} : vector<2x48xf32> to vector<2x32xf32>
    %308 = vector.extract_strided_slice %306 {offsets = [0, 32], sizes = [2, 16], strides = [1, 1]} : vector<2x48xf32> to vector<2x16xf32>
    %cst_85 = arith.constant dense<0.000000e+00> : vector<2x96xf32>
    %309 = tpu.matmul %308, %8, %cst_85 {dimension_numbers = #tpu.dot_dimension_numbers<[1], [0], [0], [1], [0, 0, 1, 1], [], []>} : vector<2x16xf32>, vector<16x96xf32>, vector<2x96xf32> -> vector<2x96xf32>
    %310 = vector.broadcast %10 : vector<1x96xf32> to vector<2x96xf32>
    %311 = arith.addf %309, %310 : vector<2x96xf32>
    %c0_i32_86 = arith.constant 0 : i32
    %cst_87 = arith.constant dense<0.000000e+00> : vector<2x96xf32>
    %312 = tpu.matmul %307, %9, %cst_87 {dimension_numbers = #tpu.dot_dimension_numbers<[1], [0], [0], [1], [0, 0, 1, 1], [], []>} : vector<2x32xf32>, vector<32x96xf32>, vector<2x96xf32> -> vector<2x96xf32>
    %313 = vector.extract_strided_slice %311 {offsets = [0, 0], sizes = [2, 32], strides = [1, 1]} : vector<2x96xf32> to vector<2x32xf32>
    %314 = vector.extract_strided_slice %312 {offsets = [0, 0], sizes = [2, 32], strides = [1, 1]} : vector<2x96xf32> to vector<2x32xf32>
    %315 = arith.addf %313, %314 : vector<2x32xf32>
    %316 = arith.negf %315 : vector<2x32xf32>
    %317 = math.exp %316 : vector<2x32xf32>
    %cst_88 = arith.constant 1.000000e+00 : f32
    %318 = vector.broadcast %cst_88 : f32 to vector<2x32xf32>
    %319 = arith.addf %318, %317 : vector<2x32xf32>
    %320 = arith.divf %318, %319 : vector<2x32xf32>
    %321 = vector.extract_strided_slice %311 {offsets = [0, 32], sizes = [2, 32], strides = [1, 1]} : vector<2x96xf32> to vector<2x32xf32>
    %322 = vector.extract_strided_slice %312 {offsets = [0, 32], sizes = [2, 32], strides = [1, 1]} : vector<2x96xf32> to vector<2x32xf32>
    %323 = arith.addf %321, %322 : vector<2x32xf32>
    %324 = arith.negf %323 : vector<2x32xf32>
    %325 = math.exp %324 : vector<2x32xf32>
    %cst_89 = arith.constant 1.000000e+00 : f32
    %326 = vector.broadcast %cst_89 : f32 to vector<2x32xf32>
    %327 = arith.addf %326, %325 : vector<2x32xf32>
    %328 = arith.divf %326, %327 : vector<2x32xf32>
    %329 = vector.extract_strided_slice %311 {offsets = [0, 64], sizes = [2, 32], strides = [1, 1]} : vector<2x96xf32> to vector<2x32xf32>
    %330 = vector.extract_strided_slice %312 {offsets = [0, 64], sizes = [2, 32], strides = [1, 1]} : vector<2x96xf32> to vector<2x32xf32>
    %331 = vector.broadcast %11 : vector<1x32xf32> to vector<2x32xf32>
    %332 = arith.addf %330, %331 : vector<2x32xf32>
    %333 = arith.mulf %320, %332 : vector<2x32xf32>
    %334 = arith.addf %329, %333 : vector<2x32xf32>
    %335 = math.tanh %334 : vector<2x32xf32>
    %cst_90 = arith.constant 1.000000e+00 : f32
    %336 = vector.broadcast %cst_90 : f32 to vector<2x32xf32>
    %337 = arith.subf %336, %328 : vector<2x32xf32>
    %338 = arith.mulf %337, %335 : vector<2x32xf32>
    %339 = arith.mulf %328, %307 : vector<2x32xf32>
    %340 = arith.addf %338, %339 : vector<2x32xf32>
    %341 = arith.index_cast %c0_i32_86 : i32 to index
    %c0_91 = arith.constant 0 : index
    %c0_92 = arith.constant 0 : index
    %342 = vector.load %arg9[%341, %c0_91, %c0_92] : memref<8x2x32xf32, #tpu.memory_space<vmem>>, vector<1x2x32xf32>
    %343 = vector.shape_cast %342 : vector<1x2x32xf32> to vector<2x32xf32>
    %344 = vector.shape_cast %340 : vector<2x32xf32> to vector<1x2x32xf32>
    tpu.vector_store %arg9[%341, %c0_91, %c0_92], %344 {strides = array<i32>} : memref<8x2x32xf32, #tpu.memory_space<vmem>>, vector<1x2x32xf32>,
    %c1_i32_93 = arith.constant 1 : i32
    %cst_94 = arith.constant dense<0.000000e+00> : vector<2x96xf32>
    %345 = tpu.matmul %340, %9, %cst_94 {dimension_numbers = #tpu.dot_dimension_numbers<[1], [0], [0], [1], [0, 0, 1, 1], [], []>} : vector<2x32xf32>, vector<32x96xf32>, vector<2x96xf32> -> vector<2x96xf32>
    %346 = vector.extract_strided_slice %311 {offsets = [0, 0], sizes = [2, 32], strides = [1, 1]} : vector<2x96xf32> to vector<2x32xf32>
    %347 = vector.extract_strided_slice %345 {offsets = [0, 0], sizes = [2, 32], strides = [1, 1]} : vector<2x96xf32> to vector<2x32xf32>
    %348 = arith.addf %346, %347 : vector<2x32xf32>
    %349 = arith.negf %348 : vector<2x32xf32>
    %350 = math.exp %349 : vector<2x32xf32>
    %cst_95 = arith.constant 1.000000e+00 : f32
    %351 = vector.broadcast %cst_95 : f32 to vector<2x32xf32>
    %352 = arith.addf %351, %350 : vector<2x32xf32>
    %353 = arith.divf %351, %352 : vector<2x32xf32>
    %354 = vector.extract_strided_slice %311 {offsets = [0, 32], sizes = [2, 32], strides = [1, 1]} : vector<2x96xf32> to vector<2x32xf32>
    %355 = vector.extract_strided_slice %345 {offsets = [0, 32], sizes = [2, 32], strides = [1, 1]} : vector<2x96xf32> to vector<2x32xf32>
    %356 = arith.addf %354, %355 : vector<2x32xf32>
    %357 = arith.negf %356 : vector<2x32xf32>
    %358 = math.exp %357 : vector<2x32xf32>
    %cst_96 = arith.constant 1.000000e+00 : f32
    %359 = vector.broadcast %cst_96 : f32 to vector<2x32xf32>
    %360 = arith.addf %359, %358 : vector<2x32xf32>
    %361 = arith.divf %359, %360 : vector<2x32xf32>
    %362 = vector.extract_strided_slice %311 {offsets = [0, 64], sizes = [2, 32], strides = [1, 1]} : vector<2x96xf32> to vector<2x32xf32>
    %363 = vector.extract_strided_slice %345 {offsets = [0, 64], sizes = [2, 32], strides = [1, 1]} : vector<2x96xf32> to vector<2x32xf32>
    %364 = vector.broadcast %11 : vector<1x32xf32> to vector<2x32xf32>
    %365 = arith.addf %363, %364 : vector<2x32xf32>
    %366 = arith.mulf %353, %365 : vector<2x32xf32>
    %367 = arith.addf %362, %366 : vector<2x32xf32>
    %368 = math.tanh %367 : vector<2x32xf32>
    %cst_97 = arith.constant 1.000000e+00 : f32
    %369 = vector.broadcast %cst_97 : f32 to vector<2x32xf32>
    %370 = arith.subf %369, %361 : vector<2x32xf32>
    %371 = arith.mulf %370, %368 : vector<2x32xf32>
    %372 = arith.mulf %361, %340 : vector<2x32xf32>
    %373 = arith.addf %371, %372 : vector<2x32xf32>
    %374 = arith.index_cast %c1_i32_93 : i32 to index
    %c0_98 = arith.constant 0 : index
    %c0_99 = arith.constant 0 : index
    %375 = vector.load %arg9[%374, %c0_98, %c0_99] : memref<8x2x32xf32, #tpu.memory_space<vmem>>, vector<1x2x32xf32>
    %376 = vector.shape_cast %375 : vector<1x2x32xf32> to vector<2x32xf32>
    %377 = vector.shape_cast %373 : vector<2x32xf32> to vector<1x2x32xf32>
    tpu.vector_store %arg9[%374, %c0_98, %c0_99], %377 {strides = array<i32>} : memref<8x2x32xf32, #tpu.memory_space<vmem>>, vector<1x2x32xf32>,
    %c2_i32_100 = arith.constant 2 : i32
    %cst_101 = arith.constant dense<0.000000e+00> : vector<2x96xf32>
    %378 = tpu.matmul %373, %9, %cst_101 {dimension_numbers = #tpu.dot_dimension_numbers<[1], [0], [0], [1], [0, 0, 1, 1], [], []>} : vector<2x32xf32>, vector<32x96xf32>, vector<2x96xf32> -> vector<2x96xf32>
    %379 = vector.extract_strided_slice %311 {offsets = [0, 0], sizes = [2, 32], strides = [1, 1]} : vector<2x96xf32> to vector<2x32xf32>
    %380 = vector.extract_strided_slice %378 {offsets = [0, 0], sizes = [2, 32], strides = [1, 1]} : vector<2x96xf32> to vector<2x32xf32>
    %381 = arith.addf %379, %380 : vector<2x32xf32>
    %382 = arith.negf %381 : vector<2x32xf32>
    %383 = math.exp %382 : vector<2x32xf32>
    %cst_102 = arith.constant 1.000000e+00 : f32
    %384 = vector.broadcast %cst_102 : f32 to vector<2x32xf32>
    %385 = arith.addf %384, %383 : vector<2x32xf32>
    %386 = arith.divf %384, %385 : vector<2x32xf32>
    %387 = vector.extract_strided_slice %311 {offsets = [0, 32], sizes = [2, 32], strides = [1, 1]} : vector<2x96xf32> to vector<2x32xf32>
    %388 = vector.extract_strided_slice %378 {offsets = [0, 32], sizes = [2, 32], strides = [1, 1]} : vector<2x96xf32> to vector<2x32xf32>
    %389 = arith.addf %387, %388 : vector<2x32xf32>
    %390 = arith.negf %389 : vector<2x32xf32>
    %391 = math.exp %390 : vector<2x32xf32>
    %cst_103 = arith.constant 1.000000e+00 : f32
    %392 = vector.broadcast %cst_103 : f32 to vector<2x32xf32>
    %393 = arith.addf %392, %391 : vector<2x32xf32>
    %394 = arith.divf %392, %393 : vector<2x32xf32>
    %395 = vector.extract_strided_slice %311 {offsets = [0, 64], sizes = [2, 32], strides = [1, 1]} : vector<2x96xf32> to vector<2x32xf32>
    %396 = vector.extract_strided_slice %378 {offsets = [0, 64], sizes = [2, 32], strides = [1, 1]} : vector<2x96xf32> to vector<2x32xf32>
    %397 = vector.broadcast %11 : vector<1x32xf32> to vector<2x32xf32>
    %398 = arith.addf %396, %397 : vector<2x32xf32>
    %399 = arith.mulf %386, %398 : vector<2x32xf32>
    %400 = arith.addf %395, %399 : vector<2x32xf32>
    %401 = math.tanh %400 : vector<2x32xf32>
    %cst_104 = arith.constant 1.000000e+00 : f32
    %402 = vector.broadcast %cst_104 : f32 to vector<2x32xf32>
    %403 = arith.subf %402, %394 : vector<2x32xf32>
    %404 = arith.mulf %403, %401 : vector<2x32xf32>
    %405 = arith.mulf %394, %373 : vector<2x32xf32>
    %406 = arith.addf %404, %405 : vector<2x32xf32>
    %407 = arith.index_cast %c2_i32_100 : i32 to index
    %c0_105 = arith.constant 0 : index
    %c0_106 = arith.constant 0 : index
    %408 = vector.load %arg9[%407, %c0_105, %c0_106] : memref<8x2x32xf32, #tpu.memory_space<vmem>>, vector<1x2x32xf32>
    %409 = vector.shape_cast %408 : vector<1x2x32xf32> to vector<2x32xf32>
    %410 = vector.shape_cast %406 : vector<2x32xf32> to vector<1x2x32xf32>
    tpu.vector_store %arg9[%407, %c0_105, %c0_106], %410 {strides = array<i32>} : memref<8x2x32xf32, #tpu.memory_space<vmem>>, vector<1x2x32xf32>,
    %c3_i32_107 = arith.constant 3 : i32
    %cst_108 = arith.constant dense<0.000000e+00> : vector<2x96xf32>
    %411 = tpu.matmul %406, %9, %cst_108 {dimension_numbers = #tpu.dot_dimension_numbers<[1], [0], [0], [1], [0, 0, 1, 1], [], []>} : vector<2x32xf32>, vector<32x96xf32>, vector<2x96xf32> -> vector<2x96xf32>
    %412 = vector.extract_strided_slice %311 {offsets = [0, 0], sizes = [2, 32], strides = [1, 1]} : vector<2x96xf32> to vector<2x32xf32>
    %413 = vector.extract_strided_slice %411 {offsets = [0, 0], sizes = [2, 32], strides = [1, 1]} : vector<2x96xf32> to vector<2x32xf32>
    %414 = arith.addf %412, %413 : vector<2x32xf32>
    %415 = arith.negf %414 : vector<2x32xf32>
    %416 = math.exp %415 : vector<2x32xf32>
    %cst_109 = arith.constant 1.000000e+00 : f32
    %417 = vector.broadcast %cst_109 : f32 to vector<2x32xf32>
    %418 = arith.addf %417, %416 : vector<2x32xf32>
    %419 = arith.divf %417, %418 : vector<2x32xf32>
    %420 = vector.extract_strided_slice %311 {offsets = [0, 32], sizes = [2, 32], strides = [1, 1]} : vector<2x96xf32> to vector<2x32xf32>
    %421 = vector.extract_strided_slice %411 {offsets = [0, 32], sizes = [2, 32], strides = [1, 1]} : vector<2x96xf32> to vector<2x32xf32>
    %422 = arith.addf %420, %421 : vector<2x32xf32>
    %423 = arith.negf %422 : vector<2x32xf32>
    %424 = math.exp %423 : vector<2x32xf32>
    %cst_110 = arith.constant 1.000000e+00 : f32
    %425 = vector.broadcast %cst_110 : f32 to vector<2x32xf32>
    %426 = arith.addf %425, %424 : vector<2x32xf32>
    %427 = arith.divf %425, %426 : vector<2x32xf32>
    %428 = vector.extract_strided_slice %311 {offsets = [0, 64], sizes = [2, 32], strides = [1, 1]} : vector<2x96xf32> to vector<2x32xf32>
    %429 = vector.extract_strided_slice %411 {offsets = [0, 64], sizes = [2, 32], strides = [1, 1]} : vector<2x96xf32> to vector<2x32xf32>
    %430 = vector.broadcast %11 : vector<1x32xf32> to vector<2x32xf32>
    %431 = arith.addf %429, %430 : vector<2x32xf32>
    %432 = arith.mulf %419, %431 : vector<2x32xf32>
    %433 = arith.addf %428, %432 : vector<2x32xf32>
    %434 = math.tanh %433 : vector<2x32xf32>
    %cst_111 = arith.constant 1.000000e+00 : f32
    %435 = vector.broadcast %cst_111 : f32 to vector<2x32xf32>
    %436 = arith.subf %435, %427 : vector<2x32xf32>
    %437 = arith.mulf %436, %434 : vector<2x32xf32>
    %438 = arith.mulf %427, %406 : vector<2x32xf32>
    %439 = arith.addf %437, %438 : vector<2x32xf32>
    %440 = arith.index_cast %c3_i32_107 : i32 to index
    %c0_112 = arith.constant 0 : index
    %c0_113 = arith.constant 0 : index
    %441 = vector.load %arg9[%440, %c0_112, %c0_113] : memref<8x2x32xf32, #tpu.memory_space<vmem>>, vector<1x2x32xf32>
    %442 = vector.shape_cast %441 : vector<1x2x32xf32> to vector<2x32xf32>
    %443 = vector.shape_cast %439 : vector<2x32xf32> to vector<1x2x32xf32>
    tpu.vector_store %arg9[%440, %c0_112, %c0_113], %443 {strides = array<i32>} : memref<8x2x32xf32, #tpu.memory_space<vmem>>, vector<1x2x32xf32>,
    %c4_i32_114 = arith.constant 4 : i32
    %cst_115 = arith.constant dense<0.000000e+00> : vector<2x96xf32>
    %444 = tpu.matmul %439, %9, %cst_115 {dimension_numbers = #tpu.dot_dimension_numbers<[1], [0], [0], [1], [0, 0, 1, 1], [], []>} : vector<2x32xf32>, vector<32x96xf32>, vector<2x96xf32> -> vector<2x96xf32>
    %445 = vector.extract_strided_slice %311 {offsets = [0, 0], sizes = [2, 32], strides = [1, 1]} : vector<2x96xf32> to vector<2x32xf32>
    %446 = vector.extract_strided_slice %444 {offsets = [0, 0], sizes = [2, 32], strides = [1, 1]} : vector<2x96xf32> to vector<2x32xf32>
    %447 = arith.addf %445, %446 : vector<2x32xf32>
    %448 = arith.negf %447 : vector<2x32xf32>
    %449 = math.exp %448 : vector<2x32xf32>
    %cst_116 = arith.constant 1.000000e+00 : f32
    %450 = vector.broadcast %cst_116 : f32 to vector<2x32xf32>
    %451 = arith.addf %450, %449 : vector<2x32xf32>
    %452 = arith.divf %450, %451 : vector<2x32xf32>
    %453 = vector.extract_strided_slice %311 {offsets = [0, 32], sizes = [2, 32], strides = [1, 1]} : vector<2x96xf32> to vector<2x32xf32>
    %454 = vector.extract_strided_slice %444 {offsets = [0, 32], sizes = [2, 32], strides = [1, 1]} : vector<2x96xf32> to vector<2x32xf32>
    %455 = arith.addf %453, %454 : vector<2x32xf32>
    %456 = arith.negf %455 : vector<2x32xf32>
    %457 = math.exp %456 : vector<2x32xf32>
    %cst_117 = arith.constant 1.000000e+00 : f32
    %458 = vector.broadcast %cst_117 : f32 to vector<2x32xf32>
    %459 = arith.addf %458, %457 : vector<2x32xf32>
    %460 = arith.divf %458, %459 : vector<2x32xf32>
    %461 = vector.extract_strided_slice %311 {offsets = [0, 64], sizes = [2, 32], strides = [1, 1]} : vector<2x96xf32> to vector<2x32xf32>
    %462 = vector.extract_strided_slice %444 {offsets = [0, 64], sizes = [2, 32], strides = [1, 1]} : vector<2x96xf32> to vector<2x32xf32>
    %463 = vector.broadcast %11 : vector<1x32xf32> to vector<2x32xf32>
    %464 = arith.addf %462, %463 : vector<2x32xf32>
    %465 = arith.mulf %452, %464 : vector<2x32xf32>
    %466 = arith.addf %461, %465 : vector<2x32xf32>
    %467 = math.tanh %466 : vector<2x32xf32>
    %cst_118 = arith.constant 1.000000e+00 : f32
    %468 = vector.broadcast %cst_118 : f32 to vector<2x32xf32>
    %469 = arith.subf %468, %460 : vector<2x32xf32>
    %470 = arith.mulf %469, %467 : vector<2x32xf32>
    %471 = arith.mulf %460, %439 : vector<2x32xf32>
    %472 = arith.addf %470, %471 : vector<2x32xf32>
    %473 = arith.index_cast %c4_i32_114 : i32 to index
    %c0_119 = arith.constant 0 : index
    %c0_120 = arith.constant 0 : index
    %474 = vector.load %arg9[%473, %c0_119, %c0_120] : memref<8x2x32xf32, #tpu.memory_space<vmem>>, vector<1x2x32xf32>
    %475 = vector.shape_cast %474 : vector<1x2x32xf32> to vector<2x32xf32>
    %476 = vector.shape_cast %472 : vector<2x32xf32> to vector<1x2x32xf32>
    tpu.vector_store %arg9[%473, %c0_119, %c0_120], %476 {strides = array<i32>} : memref<8x2x32xf32, #tpu.memory_space<vmem>>, vector<1x2x32xf32>,
    %c5_i32_121 = arith.constant 5 : i32
    %cst_122 = arith.constant dense<0.000000e+00> : vector<2x96xf32>
    %477 = tpu.matmul %472, %9, %cst_122 {dimension_numbers = #tpu.dot_dimension_numbers<[1], [0], [0], [1], [0, 0, 1, 1], [], []>} : vector<2x32xf32>, vector<32x96xf32>, vector<2x96xf32> -> vector<2x96xf32>
    %478 = vector.extract_strided_slice %311 {offsets = [0, 0], sizes = [2, 32], strides = [1, 1]} : vector<2x96xf32> to vector<2x32xf32>
    %479 = vector.extract_strided_slice %477 {offsets = [0, 0], sizes = [2, 32], strides = [1, 1]} : vector<2x96xf32> to vector<2x32xf32>
    %480 = arith.addf %478, %479 : vector<2x32xf32>
    %481 = arith.negf %480 : vector<2x32xf32>
    %482 = math.exp %481 : vector<2x32xf32>
    %cst_123 = arith.constant 1.000000e+00 : f32
    %483 = vector.broadcast %cst_123 : f32 to vector<2x32xf32>
    %484 = arith.addf %483, %482 : vector<2x32xf32>
    %485 = arith.divf %483, %484 : vector<2x32xf32>
    %486 = vector.extract_strided_slice %311 {offsets = [0, 32], sizes = [2, 32], strides = [1, 1]} : vector<2x96xf32> to vector<2x32xf32>
    %487 = vector.extract_strided_slice %477 {offsets = [0, 32], sizes = [2, 32], strides = [1, 1]} : vector<2x96xf32> to vector<2x32xf32>
    %488 = arith.addf %486, %487 : vector<2x32xf32>
    %489 = arith.negf %488 : vector<2x32xf32>
    %490 = math.exp %489 : vector<2x32xf32>
    %cst_124 = arith.constant 1.000000e+00 : f32
    %491 = vector.broadcast %cst_124 : f32 to vector<2x32xf32>
    %492 = arith.addf %491, %490 : vector<2x32xf32>
    %493 = arith.divf %491, %492 : vector<2x32xf32>
    %494 = vector.extract_strided_slice %311 {offsets = [0, 64], sizes = [2, 32], strides = [1, 1]} : vector<2x96xf32> to vector<2x32xf32>
    %495 = vector.extract_strided_slice %477 {offsets = [0, 64], sizes = [2, 32], strides = [1, 1]} : vector<2x96xf32> to vector<2x32xf32>
    %496 = vector.broadcast %11 : vector<1x32xf32> to vector<2x32xf32>
    %497 = arith.addf %495, %496 : vector<2x32xf32>
    %498 = arith.mulf %485, %497 : vector<2x32xf32>
    %499 = arith.addf %494, %498 : vector<2x32xf32>
    %500 = math.tanh %499 : vector<2x32xf32>
    %cst_125 = arith.constant 1.000000e+00 : f32
    %501 = vector.broadcast %cst_125 : f32 to vector<2x32xf32>
    %502 = arith.subf %501, %493 : vector<2x32xf32>
    %503 = arith.mulf %502, %500 : vector<2x32xf32>
    %504 = arith.mulf %493, %472 : vector<2x32xf32>
    %505 = arith.addf %503, %504 : vector<2x32xf32>
    %506 = arith.index_cast %c5_i32_121 : i32 to index
    %c0_126 = arith.constant 0 : index
    %c0_127 = arith.constant 0 : index
    %507 = vector.load %arg9[%506, %c0_126, %c0_127] : memref<8x2x32xf32, #tpu.memory_space<vmem>>, vector<1x2x32xf32>
    %508 = vector.shape_cast %507 : vector<1x2x32xf32> to vector<2x32xf32>
    %509 = vector.shape_cast %505 : vector<2x32xf32> to vector<1x2x32xf32>
    tpu.vector_store %arg9[%506, %c0_126, %c0_127], %509 {strides = array<i32>} : memref<8x2x32xf32, #tpu.memory_space<vmem>>, vector<1x2x32xf32>,
    %c6_i32_128 = arith.constant 6 : i32
    %cst_129 = arith.constant dense<0.000000e+00> : vector<2x96xf32>
    %510 = tpu.matmul %505, %9, %cst_129 {dimension_numbers = #tpu.dot_dimension_numbers<[1], [0], [0], [1], [0, 0, 1, 1], [], []>} : vector<2x32xf32>, vector<32x96xf32>, vector<2x96xf32> -> vector<2x96xf32>
    %511 = vector.extract_strided_slice %311 {offsets = [0, 0], sizes = [2, 32], strides = [1, 1]} : vector<2x96xf32> to vector<2x32xf32>
    %512 = vector.extract_strided_slice %510 {offsets = [0, 0], sizes = [2, 32], strides = [1, 1]} : vector<2x96xf32> to vector<2x32xf32>
    %513 = arith.addf %511, %512 : vector<2x32xf32>
    %514 = arith.negf %513 : vector<2x32xf32>
    %515 = math.exp %514 : vector<2x32xf32>
    %cst_130 = arith.constant 1.000000e+00 : f32
    %516 = vector.broadcast %cst_130 : f32 to vector<2x32xf32>
    %517 = arith.addf %516, %515 : vector<2x32xf32>
    %518 = arith.divf %516, %517 : vector<2x32xf32>
    %519 = vector.extract_strided_slice %311 {offsets = [0, 32], sizes = [2, 32], strides = [1, 1]} : vector<2x96xf32> to vector<2x32xf32>
    %520 = vector.extract_strided_slice %510 {offsets = [0, 32], sizes = [2, 32], strides = [1, 1]} : vector<2x96xf32> to vector<2x32xf32>
    %521 = arith.addf %519, %520 : vector<2x32xf32>
    %522 = arith.negf %521 : vector<2x32xf32>
    %523 = math.exp %522 : vector<2x32xf32>
    %cst_131 = arith.constant 1.000000e+00 : f32
    %524 = vector.broadcast %cst_131 : f32 to vector<2x32xf32>
    %525 = arith.addf %524, %523 : vector<2x32xf32>
    %526 = arith.divf %524, %525 : vector<2x32xf32>
    %527 = vector.extract_strided_slice %311 {offsets = [0, 64], sizes = [2, 32], strides = [1, 1]} : vector<2x96xf32> to vector<2x32xf32>
    %528 = vector.extract_strided_slice %510 {offsets = [0, 64], sizes = [2, 32], strides = [1, 1]} : vector<2x96xf32> to vector<2x32xf32>
    %529 = vector.broadcast %11 : vector<1x32xf32> to vector<2x32xf32>
    %530 = arith.addf %528, %529 : vector<2x32xf32>
    %531 = arith.mulf %518, %530 : vector<2x32xf32>
    %532 = arith.addf %527, %531 : vector<2x32xf32>
    %533 = math.tanh %532 : vector<2x32xf32>
    %cst_132 = arith.constant 1.000000e+00 : f32
    %534 = vector.broadcast %cst_132 : f32 to vector<2x32xf32>
    %535 = arith.subf %534, %526 : vector<2x32xf32>
    %536 = arith.mulf %535, %533 : vector<2x32xf32>
    %537 = arith.mulf %526, %505 : vector<2x32xf32>
    %538 = arith.addf %536, %537 : vector<2x32xf32>
    %539 = arith.index_cast %c6_i32_128 : i32 to index
    %c0_133 = arith.constant 0 : index
    %c0_134 = arith.constant 0 : index
    %540 = vector.load %arg9[%539, %c0_133, %c0_134] : memref<8x2x32xf32, #tpu.memory_space<vmem>>, vector<1x2x32xf32>
    %541 = vector.shape_cast %540 : vector<1x2x32xf32> to vector<2x32xf32>
    %542 = vector.shape_cast %538 : vector<2x32xf32> to vector<1x2x32xf32>
    tpu.vector_store %arg9[%539, %c0_133, %c0_134], %542 {strides = array<i32>} : memref<8x2x32xf32, #tpu.memory_space<vmem>>, vector<1x2x32xf32>,
    %c7_i32_135 = arith.constant 7 : i32
    %cst_136 = arith.constant dense<0.000000e+00> : vector<2x96xf32>
    %543 = tpu.matmul %538, %9, %cst_136 {dimension_numbers = #tpu.dot_dimension_numbers<[1], [0], [0], [1], [0, 0, 1, 1], [], []>} : vector<2x32xf32>, vector<32x96xf32>, vector<2x96xf32> -> vector<2x96xf32>
    %544 = vector.extract_strided_slice %311 {offsets = [0, 0], sizes = [2, 32], strides = [1, 1]} : vector<2x96xf32> to vector<2x32xf32>
    %545 = vector.extract_strided_slice %543 {offsets = [0, 0], sizes = [2, 32], strides = [1, 1]} : vector<2x96xf32> to vector<2x32xf32>
    %546 = arith.addf %544, %545 : vector<2x32xf32>
    %547 = arith.negf %546 : vector<2x32xf32>
    %548 = math.exp %547 : vector<2x32xf32>
    %cst_137 = arith.constant 1.000000e+00 : f32
    %549 = vector.broadcast %cst_137 : f32 to vector<2x32xf32>
    %550 = arith.addf %549, %548 : vector<2x32xf32>
    %551 = arith.divf %549, %550 : vector<2x32xf32>
    %552 = vector.extract_strided_slice %311 {offsets = [0, 32], sizes = [2, 32], strides = [1, 1]} : vector<2x96xf32> to vector<2x32xf32>
    %553 = vector.extract_strided_slice %543 {offsets = [0, 32], sizes = [2, 32], strides = [1, 1]} : vector<2x96xf32> to vector<2x32xf32>
    %554 = arith.addf %552, %553 : vector<2x32xf32>
    %555 = arith.negf %554 : vector<2x32xf32>
    %556 = math.exp %555 : vector<2x32xf32>
    %cst_138 = arith.constant 1.000000e+00 : f32
    %557 = vector.broadcast %cst_138 : f32 to vector<2x32xf32>
    %558 = arith.addf %557, %556 : vector<2x32xf32>
    %559 = arith.divf %557, %558 : vector<2x32xf32>
    %560 = vector.extract_strided_slice %311 {offsets = [0, 64], sizes = [2, 32], strides = [1, 1]} : vector<2x96xf32> to vector<2x32xf32>
    %561 = vector.extract_strided_slice %543 {offsets = [0, 64], sizes = [2, 32], strides = [1, 1]} : vector<2x96xf32> to vector<2x32xf32>
    %562 = vector.broadcast %11 : vector<1x32xf32> to vector<2x32xf32>
    %563 = arith.addf %561, %562 : vector<2x32xf32>
    %564 = arith.mulf %551, %563 : vector<2x32xf32>
    %565 = arith.addf %560, %564 : vector<2x32xf32>
    %566 = math.tanh %565 : vector<2x32xf32>
    %cst_139 = arith.constant 1.000000e+00 : f32
    %567 = vector.broadcast %cst_139 : f32 to vector<2x32xf32>
    %568 = arith.subf %567, %559 : vector<2x32xf32>
    %569 = arith.mulf %568, %566 : vector<2x32xf32>
    %570 = arith.mulf %559, %538 : vector<2x32xf32>
    %571 = arith.addf %569, %570 : vector<2x32xf32>
    %572 = arith.index_cast %c7_i32_135 : i32 to index
    %c0_140 = arith.constant 0 : index
    %c0_141 = arith.constant 0 : index
    %573 = vector.load %arg9[%572, %c0_140, %c0_141] : memref<8x2x32xf32, #tpu.memory_space<vmem>>, vector<1x2x32xf32>
    %574 = vector.shape_cast %573 : vector<1x2x32xf32> to vector<2x32xf32>
    %575 = vector.shape_cast %571 : vector<2x32xf32> to vector<1x2x32xf32>
    tpu.vector_store %arg9[%572, %c0_140, %c0_141], %575 {strides = array<i32>} : memref<8x2x32xf32, #tpu.memory_space<vmem>>, vector<1x2x32xf32>,
    %c8_i32_142 = arith.constant 8 : i32
    %c0_143 = arith.constant 0 : index
    %c0_144 = arith.constant 0 : index
    %c0_145 = arith.constant 0 : index
    %576 = vector.load %arg9[%c0_143, %c0_144, %c0_145] : memref<8x2x32xf32, #tpu.memory_space<vmem>>, vector<8x2x32xf32>
    %577 = vector.shape_cast %576 : vector<8x2x32xf32> to vector<16x32xf32>
    %cst_146 = arith.constant dense<0.000000e+00> : vector<16x2xf32>
    %578 = tpu.matmul %577, %12, %cst_146 {dimension_numbers = #tpu.dot_dimension_numbers<[1], [0], [0], [1], [0, 0, 1, 1], [], []>} : vector<16x32xf32>, vector<32x2xf32>, vector<16x2xf32> -> vector<16x2xf32>
    %579 = vector.broadcast %13 : vector<1x2xf32> to vector<16x2xf32>
    %580 = arith.addf %578, %579 : vector<16x2xf32>
    %c0_147 = arith.constant 0 : index
    %c0_148 = arith.constant 0 : index
    %581 = vector.load %arg3[%c0_147, %c0_148] : memref<512x27xf32, #tpu.memory_space<vmem>>, vector<512x27xf32>
    %cst_149 = arith.constant dense<0.000000e+00> : vector<512x8xf32>
    %582 = tpu.matmul %581, %14, %cst_149 {dimension_numbers = #tpu.dot_dimension_numbers<[1], [0], [0], [1], [0, 0, 1, 1], [], []>} : vector<512x27xf32>, vector<27x8xf32>, vector<512x8xf32> -> vector<512x8xf32>
    %583 = vector.broadcast %15 : vector<1x8xf32> to vector<512x8xf32>
    %584 = arith.addf %582, %583 : vector<512x8xf32>
    %cst_150 = arith.constant 0.000000e+00 : f32
    %585 = vector.broadcast %cst_150 : f32 to vector<512x8xf32>
    %586 = arith.maximumf %584, %585 : vector<512x8xf32>
    %c0_151 = arith.constant 0 : index
    %c0_152 = arith.constant 0 : index
    %587 = vector.load %arg2[%c0_151, %c0_152] : memref<2x2xf32, #tpu.memory_space<vmem>>, vector<2x2xf32>
    %588 = vector.extract_strided_slice %580 {offsets = [0, 0], sizes = [2, 2], strides = [1, 1]} : vector<16x2xf32> to vector<2x2xf32>
    %589 = arith.addf %587, %588 : vector<2x2xf32>
    %590 = vector.extract_strided_slice %580 {offsets = [2, 0], sizes = [2, 2], strides = [1, 1]} : vector<16x2xf32> to vector<2x2xf32>
    %591 = arith.addf %589, %590 : vector<2x2xf32>
    %592 = vector.extract_strided_slice %580 {offsets = [4, 0], sizes = [2, 2], strides = [1, 1]} : vector<16x2xf32> to vector<2x2xf32>
    %593 = arith.addf %591, %592 : vector<2x2xf32>
    %594 = vector.extract_strided_slice %580 {offsets = [6, 0], sizes = [2, 2], strides = [1, 1]} : vector<16x2xf32> to vector<2x2xf32>
    %595 = arith.addf %593, %594 : vector<2x2xf32>
    %596 = vector.extract_strided_slice %580 {offsets = [8, 0], sizes = [2, 2], strides = [1, 1]} : vector<16x2xf32> to vector<2x2xf32>
    %597 = arith.addf %595, %596 : vector<2x2xf32>
    %598 = vector.extract_strided_slice %580 {offsets = [10, 0], sizes = [2, 2], strides = [1, 1]} : vector<16x2xf32> to vector<2x2xf32>
    %599 = arith.addf %597, %598 : vector<2x2xf32>
    %600 = vector.extract_strided_slice %580 {offsets = [12, 0], sizes = [2, 2], strides = [1, 1]} : vector<16x2xf32> to vector<2x2xf32>
    %601 = arith.addf %599, %600 : vector<2x2xf32>
    %602 = vector.extract_strided_slice %580 {offsets = [14, 0], sizes = [2, 2], strides = [1, 1]} : vector<16x2xf32> to vector<2x2xf32>
    %603 = arith.addf %601, %602 : vector<2x2xf32>
    %604 = tpu.concatenate %589, %591, %593, %595, %597, %599, %601, %603 in 0 : vector<2x2xf32>, vector<2x2xf32>, vector<2x2xf32>, vector<2x2xf32>, vector<2x2xf32>, vector<2x2xf32>, vector<2x2xf32>, vector<2x2xf32> -> vector<16x2xf32>
    %605 = vector.extract_strided_slice %604 {offsets = [0, 0], sizes = [16, 1], strides = [1, 1]} : vector<16x2xf32> to vector<16x1xf32>
    %cst_153 = arith.constant 5.000000e-01 : f32
    %606 = vector.broadcast %cst_153 : f32 to vector<16x1xf32>
    %607 = arith.addf %605, %606 : vector<16x1xf32>
    %608 = math.floor %607 : vector<16x1xf32>
    %cst_154 = arith.constant 0.000000e+00 : f32
    %cst_155 = arith.constant 1.500000e+01 : f32
    %609 = vector.broadcast %cst_154 : f32 to vector<16x1xf32>
    %610 = arith.maximumf %609, %608 : vector<16x1xf32>
    %611 = vector.broadcast %cst_155 : f32 to vector<16x1xf32>
    %612 = arith.minimumf %611, %610 : vector<16x1xf32>
    %613 = arith.fptosi %612 : vector<16x1xf32> to vector<16x1xi32>
    %614 = vector.extract_strided_slice %604 {offsets = [0, 1], sizes = [16, 1], strides = [1, 1]} : vector<16x2xf32> to vector<16x1xf32>
    %cst_156 = arith.constant 5.000000e-01 : f32
    %615 = vector.broadcast %cst_156 : f32 to vector<16x1xf32>
    %616 = arith.addf %614, %615 : vector<16x1xf32>
    %617 = math.floor %616 : vector<16x1xf32>
    %cst_157 = arith.constant 0.000000e+00 : f32
    %cst_158 = arith.constant 1.500000e+01 : f32
    %618 = vector.broadcast %cst_157 : f32 to vector<16x1xf32>
    %619 = arith.maximumf %618, %617 : vector<16x1xf32>
    %620 = vector.broadcast %cst_158 : f32 to vector<16x1xf32>
    %621 = arith.minimumf %620, %619 : vector<16x1xf32>
    %622 = arith.fptosi %621 : vector<16x1xf32> to vector<16x1xi32>
    %c16_i32 = arith.constant 16 : i32
    %623 = vector.broadcast %c16_i32 : i32 to vector<16x1xi32>
    %624 = arith.muli %613, %623 : vector<16x1xi32>
    %625 = arith.addi %624, %622 : vector<16x1xi32>
    %626 = tpu.iota {dimensions = array<i32: 1>} : vector<16x256xi32>
    %627 = vector.broadcast %625 : vector<16x1xi32> to vector<16x256xi32>
    %628 = arith.cmpi eq, %626, %627 : vector<16x256xi32>
    %629 = tpu.iota {dimensions = array<i32: 0>} : vector<16x1xi32>
    %c2_i32_159 = arith.constant 2 : i32
    %c0_i32_160 = arith.constant 0 : i32
    %630 = arith.cmpi eq, %c2_i32_159, %c0_i32_160 : i32
    %c1_i32_161 = arith.constant 1 : i32
    %631 = arith.select %630, %c1_i32_161, %c2_i32_159 : i32
    %632 = vector.broadcast %631 : i32 to vector<16x1xi32>
    %633 = arith.remsi %629, %632 : vector<16x1xi32>
    %c0_i32_162 = arith.constant 0 : i32
    %634 = vector.broadcast %c0_i32_162 : i32 to vector<16x1xi32>
    %635 = arith.cmpi ne, %633, %634 : vector<16x1xi32>
    %c0_i32_163 = arith.constant 0 : i32
    %636 = vector.broadcast %c0_i32_163 : i32 to vector<16x1xi32>
    %637 = arith.cmpi slt, %633, %636 : vector<16x1xi32>
    %c0_i32_164 = arith.constant 0 : i32
    %638 = arith.cmpi slt, %631, %c0_i32_164 : i32
    %639 = vector.broadcast %638 : i1 to vector<16x1xi1>
    %640 = vector.broadcast %639 : vector<16x1xi1> to vector<16x1xi1>
    %641 = arith.xori %637, %640 : vector<16x1xi1>
    %642 = arith.andi %641, %635 : vector<16x1xi1>
    %643 = vector.broadcast %631 : i32 to vector<16x1xi32>
    %644 = arith.addi %633, %643 : vector<16x1xi32>
    %645 = arith.select %642, %644, %633 : vector<16x1xi1>, vector<16x1xi32>
    %cst_165 = arith.constant 0.000000e+00 : f32
    %646 = vector.broadcast %cst_165 : f32 to vector<16x8xf32>
    %c0_i32_166 = arith.constant 0 : i32
    %647 = vector.broadcast %c0_i32_166 : i32 to vector<16x1xi32>
    %648 = arith.cmpi eq, %645, %647 : vector<16x1xi32>
    %649 = vector.broadcast %648 : vector<16x1xi1> to vector<16x256xi1>
    %650 = arith.andi %628, %649 : vector<16x256xi1>
    %cst_167 = arith.constant 1.000000e+00 : f32
    %cst_168 = arith.constant 0.000000e+00 : f32
    %651 = vector.broadcast %cst_167 : f32 to vector<16x256xf32>
    %652 = vector.broadcast %cst_168 : f32 to vector<16x256xf32>
    %653 = arith.select %650, %651, %652 : vector<16x256xi1>, vector<16x256xf32>
    %654 = vector.extract_strided_slice %586 {offsets = [0, 0], sizes = [256, 8], strides = [1, 1]} : vector<512x8xf32> to vector<256x8xf32>
    %cst_169 = arith.constant dense<0.000000e+00> : vector<16x8xf32>
    %655 = tpu.matmul %653, %654, %cst_169 {dimension_numbers = #tpu.dot_dimension_numbers<[1], [0], [0], [1], [0, 0, 1, 1], [], []>} : vector<16x256xf32>, vector<256x8xf32>, vector<16x8xf32> -> vector<16x8xf32>
    %656 = arith.addf %646, %655 : vector<16x8xf32>
    %c1_i32_170 = arith.constant 1 : i32
    %657 = vector.broadcast %c1_i32_170 : i32 to vector<16x1xi32>
    %658 = arith.cmpi eq, %645, %657 : vector<16x1xi32>
    %659 = vector.broadcast %658 : vector<16x1xi1> to vector<16x256xi1>
    %660 = arith.andi %628, %659 : vector<16x256xi1>
    %cst_171 = arith.constant 1.000000e+00 : f32
    %cst_172 = arith.constant 0.000000e+00 : f32
    %661 = vector.broadcast %cst_171 : f32 to vector<16x256xf32>
    %662 = vector.broadcast %cst_172 : f32 to vector<16x256xf32>
    %663 = arith.select %660, %661, %662 : vector<16x256xi1>, vector<16x256xf32>
    %664 = vector.extract_strided_slice %586 {offsets = [256, 0], sizes = [256, 8], strides = [1, 1]} : vector<512x8xf32> to vector<256x8xf32>
    %cst_173 = arith.constant dense<0.000000e+00> : vector<16x8xf32>
    %665 = tpu.matmul %663, %664, %cst_173 {dimension_numbers = #tpu.dot_dimension_numbers<[1], [0], [0], [1], [0, 0, 1, 1], [], []>} : vector<16x256xf32>, vector<256x8xf32>, vector<16x8xf32> -> vector<16x8xf32>
    %666 = arith.addf %656, %665 : vector<16x8xf32>
    %cst_174 = arith.constant dense<0.000000e+00> : vector<16x96xf32>
    %667 = tpu.matmul %580, %16, %cst_174 {dimension_numbers = #tpu.dot_dimension_numbers<[1], [0], [0], [1], [0, 0, 1, 1], [], []>} : vector<16x2xf32>, vector<2x96xf32>, vector<16x96xf32> -> vector<16x96xf32>
    %cst_175 = arith.constant dense<0.000000e+00> : vector<16x96xf32>
    %668 = tpu.matmul %666, %17, %cst_175 {dimension_numbers = #tpu.dot_dimension_numbers<[1], [0], [0], [1], [0, 0, 1, 1], [], []>} : vector<16x8xf32>, vector<8x96xf32>, vector<16x96xf32> -> vector<16x96xf32>
    %669 = arith.addf %667, %668 : vector<16x96xf32>
    %670 = vector.broadcast %19 : vector<1x96xf32> to vector<16x96xf32>
    %671 = arith.addf %669, %670 : vector<16x96xf32>
    %672 = vector.shape_cast %671 : vector<16x96xf32> to vector<8x2x96xf32>
    %c0_176 = arith.constant 0 : index
    %c0_177 = arith.constant 0 : index
    %c0_178 = arith.constant 0 : index
    %673 = vector.load %arg8[%c0_176, %c0_177, %c0_178] : memref<8x2x96xf32, #tpu.memory_space<vmem>>, vector<8x2x96xf32>
    tpu.vector_store %arg8[%c0_176, %c0_177, %c0_178], %672 {strides = array<i32>} : memref<8x2x96xf32, #tpu.memory_space<vmem>>, vector<8x2x96xf32>,
    %c0_i32_179 = arith.constant 0 : i32
    %674 = arith.index_cast %c0_i32_179 : i32 to index
    %c0_180 = arith.constant 0 : index
    %c0_181 = arith.constant 0 : index
    %675 = vector.load %arg8[%674, %c0_180, %c0_181] : memref<8x2x96xf32, #tpu.memory_space<vmem>>, vector<1x2x96xf32>
    %676 = vector.shape_cast %675 : vector<1x2x96xf32> to vector<2x96xf32>
    %cst_182 = arith.constant dense<0.000000e+00> : vector<2x96xf32>
    %677 = tpu.matmul %286, %18, %cst_182 {dimension_numbers = #tpu.dot_dimension_numbers<[1], [0], [0], [1], [0, 0, 1, 1], [], []>} : vector<2x32xf32>, vector<32x96xf32>, vector<2x96xf32> -> vector<2x96xf32>
    %678 = vector.extract_strided_slice %676 {offsets = [0, 0], sizes = [2, 32], strides = [1, 1]} : vector<2x96xf32> to vector<2x32xf32>
    %679 = vector.extract_strided_slice %677 {offsets = [0, 0], sizes = [2, 32], strides = [1, 1]} : vector<2x96xf32> to vector<2x32xf32>
    %680 = arith.addf %678, %679 : vector<2x32xf32>
    %681 = arith.negf %680 : vector<2x32xf32>
    %682 = math.exp %681 : vector<2x32xf32>
    %cst_183 = arith.constant 1.000000e+00 : f32
    %683 = vector.broadcast %cst_183 : f32 to vector<2x32xf32>
    %684 = arith.addf %683, %682 : vector<2x32xf32>
    %685 = arith.divf %683, %684 : vector<2x32xf32>
    %686 = vector.extract_strided_slice %676 {offsets = [0, 32], sizes = [2, 32], strides = [1, 1]} : vector<2x96xf32> to vector<2x32xf32>
    %687 = vector.extract_strided_slice %677 {offsets = [0, 32], sizes = [2, 32], strides = [1, 1]} : vector<2x96xf32> to vector<2x32xf32>
    %688 = arith.addf %686, %687 : vector<2x32xf32>
    %689 = arith.negf %688 : vector<2x32xf32>
    %690 = math.exp %689 : vector<2x32xf32>
    %cst_184 = arith.constant 1.000000e+00 : f32
    %691 = vector.broadcast %cst_184 : f32 to vector<2x32xf32>
    %692 = arith.addf %691, %690 : vector<2x32xf32>
    %693 = arith.divf %691, %692 : vector<2x32xf32>
    %694 = vector.extract_strided_slice %676 {offsets = [0, 64], sizes = [2, 32], strides = [1, 1]} : vector<2x96xf32> to vector<2x32xf32>
    %695 = vector.extract_strided_slice %677 {offsets = [0, 64], sizes = [2, 32], strides = [1, 1]} : vector<2x96xf32> to vector<2x32xf32>
    %696 = vector.broadcast %20 : vector<1x32xf32> to vector<2x32xf32>
    %697 = arith.addf %695, %696 : vector<2x32xf32>
    %698 = arith.mulf %685, %697 : vector<2x32xf32>
    %699 = arith.addf %694, %698 : vector<2x32xf32>
    %700 = math.tanh %699 : vector<2x32xf32>
    %cst_185 = arith.constant 1.000000e+00 : f32
    %701 = vector.broadcast %cst_185 : f32 to vector<2x32xf32>
    %702 = arith.subf %701, %693 : vector<2x32xf32>
    %703 = arith.mulf %702, %700 : vector<2x32xf32>
    %704 = arith.mulf %693, %286 : vector<2x32xf32>
    %705 = arith.addf %703, %704 : vector<2x32xf32>
    %706 = arith.index_cast %c0_i32_179 : i32 to index
    %c0_186 = arith.constant 0 : index
    %c0_187 = arith.constant 0 : index
    %707 = vector.load %arg10[%706, %c0_186, %c0_187] : memref<8x2x32xf32, #tpu.memory_space<vmem>>, vector<1x2x32xf32>
    %708 = vector.shape_cast %707 : vector<1x2x32xf32> to vector<2x32xf32>
    %709 = vector.shape_cast %705 : vector<2x32xf32> to vector<1x2x32xf32>
    tpu.vector_store %arg10[%706, %c0_186, %c0_187], %709 {strides = array<i32>} : memref<8x2x32xf32, #tpu.memory_space<vmem>>, vector<1x2x32xf32>,
    %c1_i32_188 = arith.constant 1 : i32
    %710 = arith.index_cast %c1_i32_188 : i32 to index
    %c0_189 = arith.constant 0 : index
    %c0_190 = arith.constant 0 : index
    %711 = vector.load %arg8[%710, %c0_189, %c0_190] : memref<8x2x96xf32, #tpu.memory_space<vmem>>, vector<1x2x96xf32>
    %712 = vector.shape_cast %711 : vector<1x2x96xf32> to vector<2x96xf32>
    %cst_191 = arith.constant dense<0.000000e+00> : vector<2x96xf32>
    %713 = tpu.matmul %705, %18, %cst_191 {dimension_numbers = #tpu.dot_dimension_numbers<[1], [0], [0], [1], [0, 0, 1, 1], [], []>} : vector<2x32xf32>, vector<32x96xf32>, vector<2x96xf32> -> vector<2x96xf32>
    %714 = vector.extract_strided_slice %712 {offsets = [0, 0], sizes = [2, 32], strides = [1, 1]} : vector<2x96xf32> to vector<2x32xf32>
    %715 = vector.extract_strided_slice %713 {offsets = [0, 0], sizes = [2, 32], strides = [1, 1]} : vector<2x96xf32> to vector<2x32xf32>
    %716 = arith.addf %714, %715 : vector<2x32xf32>
    %717 = arith.negf %716 : vector<2x32xf32>
    %718 = math.exp %717 : vector<2x32xf32>
    %cst_192 = arith.constant 1.000000e+00 : f32
    %719 = vector.broadcast %cst_192 : f32 to vector<2x32xf32>
    %720 = arith.addf %719, %718 : vector<2x32xf32>
    %721 = arith.divf %719, %720 : vector<2x32xf32>
    %722 = vector.extract_strided_slice %712 {offsets = [0, 32], sizes = [2, 32], strides = [1, 1]} : vector<2x96xf32> to vector<2x32xf32>
    %723 = vector.extract_strided_slice %713 {offsets = [0, 32], sizes = [2, 32], strides = [1, 1]} : vector<2x96xf32> to vector<2x32xf32>
    %724 = arith.addf %722, %723 : vector<2x32xf32>
    %725 = arith.negf %724 : vector<2x32xf32>
    %726 = math.exp %725 : vector<2x32xf32>
    %cst_193 = arith.constant 1.000000e+00 : f32
    %727 = vector.broadcast %cst_193 : f32 to vector<2x32xf32>
    %728 = arith.addf %727, %726 : vector<2x32xf32>
    %729 = arith.divf %727, %728 : vector<2x32xf32>
    %730 = vector.extract_strided_slice %712 {offsets = [0, 64], sizes = [2, 32], strides = [1, 1]} : vector<2x96xf32> to vector<2x32xf32>
    %731 = vector.extract_strided_slice %713 {offsets = [0, 64], sizes = [2, 32], strides = [1, 1]} : vector<2x96xf32> to vector<2x32xf32>
    %732 = vector.broadcast %20 : vector<1x32xf32> to vector<2x32xf32>
    %733 = arith.addf %731, %732 : vector<2x32xf32>
    %734 = arith.mulf %721, %733 : vector<2x32xf32>
    %735 = arith.addf %730, %734 : vector<2x32xf32>
    %736 = math.tanh %735 : vector<2x32xf32>
    %cst_194 = arith.constant 1.000000e+00 : f32
    %737 = vector.broadcast %cst_194 : f32 to vector<2x32xf32>
    %738 = arith.subf %737, %729 : vector<2x32xf32>
    %739 = arith.mulf %738, %736 : vector<2x32xf32>
    %740 = arith.mulf %729, %705 : vector<2x32xf32>
    %741 = arith.addf %739, %740 : vector<2x32xf32>
    %742 = arith.index_cast %c1_i32_188 : i32 to index
    %c0_195 = arith.constant 0 : index
    %c0_196 = arith.constant 0 : index
    %743 = vector.load %arg10[%742, %c0_195, %c0_196] : memref<8x2x32xf32, #tpu.memory_space<vmem>>, vector<1x2x32xf32>
    %744 = vector.shape_cast %743 : vector<1x2x32xf32> to vector<2x32xf32>
    %745 = vector.shape_cast %741 : vector<2x32xf32> to vector<1x2x32xf32>
    tpu.vector_store %arg10[%742, %c0_195, %c0_196], %745 {strides = array<i32>} : memref<8x2x32xf32, #tpu.memory_space<vmem>>, vector<1x2x32xf32>,
    %c2_i32_197 = arith.constant 2 : i32
    %746 = arith.index_cast %c2_i32_197 : i32 to index
    %c0_198 = arith.constant 0 : index
    %c0_199 = arith.constant 0 : index
    %747 = vector.load %arg8[%746, %c0_198, %c0_199] : memref<8x2x96xf32, #tpu.memory_space<vmem>>, vector<1x2x96xf32>
    %748 = vector.shape_cast %747 : vector<1x2x96xf32> to vector<2x96xf32>
    %cst_200 = arith.constant dense<0.000000e+00> : vector<2x96xf32>
    %749 = tpu.matmul %741, %18, %cst_200 {dimension_numbers = #tpu.dot_dimension_numbers<[1], [0], [0], [1], [0, 0, 1, 1], [], []>} : vector<2x32xf32>, vector<32x96xf32>, vector<2x96xf32> -> vector<2x96xf32>
    %750 = vector.extract_strided_slice %748 {offsets = [0, 0], sizes = [2, 32], strides = [1, 1]} : vector<2x96xf32> to vector<2x32xf32>
    %751 = vector.extract_strided_slice %749 {offsets = [0, 0], sizes = [2, 32], strides = [1, 1]} : vector<2x96xf32> to vector<2x32xf32>
    %752 = arith.addf %750, %751 : vector<2x32xf32>
    %753 = arith.negf %752 : vector<2x32xf32>
    %754 = math.exp %753 : vector<2x32xf32>
    %cst_201 = arith.constant 1.000000e+00 : f32
    %755 = vector.broadcast %cst_201 : f32 to vector<2x32xf32>
    %756 = arith.addf %755, %754 : vector<2x32xf32>
    %757 = arith.divf %755, %756 : vector<2x32xf32>
    %758 = vector.extract_strided_slice %748 {offsets = [0, 32], sizes = [2, 32], strides = [1, 1]} : vector<2x96xf32> to vector<2x32xf32>
    %759 = vector.extract_strided_slice %749 {offsets = [0, 32], sizes = [2, 32], strides = [1, 1]} : vector<2x96xf32> to vector<2x32xf32>
    %760 = arith.addf %758, %759 : vector<2x32xf32>
    %761 = arith.negf %760 : vector<2x32xf32>
    %762 = math.exp %761 : vector<2x32xf32>
    %cst_202 = arith.constant 1.000000e+00 : f32
    %763 = vector.broadcast %cst_202 : f32 to vector<2x32xf32>
    %764 = arith.addf %763, %762 : vector<2x32xf32>
    %765 = arith.divf %763, %764 : vector<2x32xf32>
    %766 = vector.extract_strided_slice %748 {offsets = [0, 64], sizes = [2, 32], strides = [1, 1]} : vector<2x96xf32> to vector<2x32xf32>
    %767 = vector.extract_strided_slice %749 {offsets = [0, 64], sizes = [2, 32], strides = [1, 1]} : vector<2x96xf32> to vector<2x32xf32>
    %768 = vector.broadcast %20 : vector<1x32xf32> to vector<2x32xf32>
    %769 = arith.addf %767, %768 : vector<2x32xf32>
    %770 = arith.mulf %757, %769 : vector<2x32xf32>
    %771 = arith.addf %766, %770 : vector<2x32xf32>
    %772 = math.tanh %771 : vector<2x32xf32>
    %cst_203 = arith.constant 1.000000e+00 : f32
    %773 = vector.broadcast %cst_203 : f32 to vector<2x32xf32>
    %774 = arith.subf %773, %765 : vector<2x32xf32>
    %775 = arith.mulf %774, %772 : vector<2x32xf32>
    %776 = arith.mulf %765, %741 : vector<2x32xf32>
    %777 = arith.addf %775, %776 : vector<2x32xf32>
    %778 = arith.index_cast %c2_i32_197 : i32 to index
    %c0_204 = arith.constant 0 : index
    %c0_205 = arith.constant 0 : index
    %779 = vector.load %arg10[%778, %c0_204, %c0_205] : memref<8x2x32xf32, #tpu.memory_space<vmem>>, vector<1x2x32xf32>
    %780 = vector.shape_cast %779 : vector<1x2x32xf32> to vector<2x32xf32>
    %781 = vector.shape_cast %777 : vector<2x32xf32> to vector<1x2x32xf32>
    tpu.vector_store %arg10[%778, %c0_204, %c0_205], %781 {strides = array<i32>} : memref<8x2x32xf32, #tpu.memory_space<vmem>>, vector<1x2x32xf32>,
    %c3_i32_206 = arith.constant 3 : i32
    %782 = arith.index_cast %c3_i32_206 : i32 to index
    %c0_207 = arith.constant 0 : index
    %c0_208 = arith.constant 0 : index
    %783 = vector.load %arg8[%782, %c0_207, %c0_208] : memref<8x2x96xf32, #tpu.memory_space<vmem>>, vector<1x2x96xf32>
    %784 = vector.shape_cast %783 : vector<1x2x96xf32> to vector<2x96xf32>
    %cst_209 = arith.constant dense<0.000000e+00> : vector<2x96xf32>
    %785 = tpu.matmul %777, %18, %cst_209 {dimension_numbers = #tpu.dot_dimension_numbers<[1], [0], [0], [1], [0, 0, 1, 1], [], []>} : vector<2x32xf32>, vector<32x96xf32>, vector<2x96xf32> -> vector<2x96xf32>
    %786 = vector.extract_strided_slice %784 {offsets = [0, 0], sizes = [2, 32], strides = [1, 1]} : vector<2x96xf32> to vector<2x32xf32>
    %787 = vector.extract_strided_slice %785 {offsets = [0, 0], sizes = [2, 32], strides = [1, 1]} : vector<2x96xf32> to vector<2x32xf32>
    %788 = arith.addf %786, %787 : vector<2x32xf32>
    %789 = arith.negf %788 : vector<2x32xf32>
    %790 = math.exp %789 : vector<2x32xf32>
    %cst_210 = arith.constant 1.000000e+00 : f32
    %791 = vector.broadcast %cst_210 : f32 to vector<2x32xf32>
    %792 = arith.addf %791, %790 : vector<2x32xf32>
    %793 = arith.divf %791, %792 : vector<2x32xf32>
    %794 = vector.extract_strided_slice %784 {offsets = [0, 32], sizes = [2, 32], strides = [1, 1]} : vector<2x96xf32> to vector<2x32xf32>
    %795 = vector.extract_strided_slice %785 {offsets = [0, 32], sizes = [2, 32], strides = [1, 1]} : vector<2x96xf32> to vector<2x32xf32>
    %796 = arith.addf %794, %795 : vector<2x32xf32>
    %797 = arith.negf %796 : vector<2x32xf32>
    %798 = math.exp %797 : vector<2x32xf32>
    %cst_211 = arith.constant 1.000000e+00 : f32
    %799 = vector.broadcast %cst_211 : f32 to vector<2x32xf32>
    %800 = arith.addf %799, %798 : vector<2x32xf32>
    %801 = arith.divf %799, %800 : vector<2x32xf32>
    %802 = vector.extract_strided_slice %784 {offsets = [0, 64], sizes = [2, 32], strides = [1, 1]} : vector<2x96xf32> to vector<2x32xf32>
    %803 = vector.extract_strided_slice %785 {offsets = [0, 64], sizes = [2, 32], strides = [1, 1]} : vector<2x96xf32> to vector<2x32xf32>
    %804 = vector.broadcast %20 : vector<1x32xf32> to vector<2x32xf32>
    %805 = arith.addf %803, %804 : vector<2x32xf32>
    %806 = arith.mulf %793, %805 : vector<2x32xf32>
    %807 = arith.addf %802, %806 : vector<2x32xf32>
    %808 = math.tanh %807 : vector<2x32xf32>
    %cst_212 = arith.constant 1.000000e+00 : f32
    %809 = vector.broadcast %cst_212 : f32 to vector<2x32xf32>
    %810 = arith.subf %809, %801 : vector<2x32xf32>
    %811 = arith.mulf %810, %808 : vector<2x32xf32>
    %812 = arith.mulf %801, %777 : vector<2x32xf32>
    %813 = arith.addf %811, %812 : vector<2x32xf32>
    %814 = arith.index_cast %c3_i32_206 : i32 to index
    %c0_213 = arith.constant 0 : index
    %c0_214 = arith.constant 0 : index
    %815 = vector.load %arg10[%814, %c0_213, %c0_214] : memref<8x2x32xf32, #tpu.memory_space<vmem>>, vector<1x2x32xf32>
    %816 = vector.shape_cast %815 : vector<1x2x32xf32> to vector<2x32xf32>
    %817 = vector.shape_cast %813 : vector<2x32xf32> to vector<1x2x32xf32>
    tpu.vector_store %arg10[%814, %c0_213, %c0_214], %817 {strides = array<i32>} : memref<8x2x32xf32, #tpu.memory_space<vmem>>, vector<1x2x32xf32>,
    %c4_i32_215 = arith.constant 4 : i32
    %818 = arith.index_cast %c4_i32_215 : i32 to index
    %c0_216 = arith.constant 0 : index
    %c0_217 = arith.constant 0 : index
    %819 = vector.load %arg8[%818, %c0_216, %c0_217] : memref<8x2x96xf32, #tpu.memory_space<vmem>>, vector<1x2x96xf32>
    %820 = vector.shape_cast %819 : vector<1x2x96xf32> to vector<2x96xf32>
    %cst_218 = arith.constant dense<0.000000e+00> : vector<2x96xf32>
    %821 = tpu.matmul %813, %18, %cst_218 {dimension_numbers = #tpu.dot_dimension_numbers<[1], [0], [0], [1], [0, 0, 1, 1], [], []>} : vector<2x32xf32>, vector<32x96xf32>, vector<2x96xf32> -> vector<2x96xf32>
    %822 = vector.extract_strided_slice %820 {offsets = [0, 0], sizes = [2, 32], strides = [1, 1]} : vector<2x96xf32> to vector<2x32xf32>
    %823 = vector.extract_strided_slice %821 {offsets = [0, 0], sizes = [2, 32], strides = [1, 1]} : vector<2x96xf32> to vector<2x32xf32>
    %824 = arith.addf %822, %823 : vector<2x32xf32>
    %825 = arith.negf %824 : vector<2x32xf32>
    %826 = math.exp %825 : vector<2x32xf32>
    %cst_219 = arith.constant 1.000000e+00 : f32
    %827 = vector.broadcast %cst_219 : f32 to vector<2x32xf32>
    %828 = arith.addf %827, %826 : vector<2x32xf32>
    %829 = arith.divf %827, %828 : vector<2x32xf32>
    %830 = vector.extract_strided_slice %820 {offsets = [0, 32], sizes = [2, 32], strides = [1, 1]} : vector<2x96xf32> to vector<2x32xf32>
    %831 = vector.extract_strided_slice %821 {offsets = [0, 32], sizes = [2, 32], strides = [1, 1]} : vector<2x96xf32> to vector<2x32xf32>
    %832 = arith.addf %830, %831 : vector<2x32xf32>
    %833 = arith.negf %832 : vector<2x32xf32>
    %834 = math.exp %833 : vector<2x32xf32>
    %cst_220 = arith.constant 1.000000e+00 : f32
    %835 = vector.broadcast %cst_220 : f32 to vector<2x32xf32>
    %836 = arith.addf %835, %834 : vector<2x32xf32>
    %837 = arith.divf %835, %836 : vector<2x32xf32>
    %838 = vector.extract_strided_slice %820 {offsets = [0, 64], sizes = [2, 32], strides = [1, 1]} : vector<2x96xf32> to vector<2x32xf32>
    %839 = vector.extract_strided_slice %821 {offsets = [0, 64], sizes = [2, 32], strides = [1, 1]} : vector<2x96xf32> to vector<2x32xf32>
    %840 = vector.broadcast %20 : vector<1x32xf32> to vector<2x32xf32>
    %841 = arith.addf %839, %840 : vector<2x32xf32>
    %842 = arith.mulf %829, %841 : vector<2x32xf32>
    %843 = arith.addf %838, %842 : vector<2x32xf32>
    %844 = math.tanh %843 : vector<2x32xf32>
    %cst_221 = arith.constant 1.000000e+00 : f32
    %845 = vector.broadcast %cst_221 : f32 to vector<2x32xf32>
    %846 = arith.subf %845, %837 : vector<2x32xf32>
    %847 = arith.mulf %846, %844 : vector<2x32xf32>
    %848 = arith.mulf %837, %813 : vector<2x32xf32>
    %849 = arith.addf %847, %848 : vector<2x32xf32>
    %850 = arith.index_cast %c4_i32_215 : i32 to index
    %c0_222 = arith.constant 0 : index
    %c0_223 = arith.constant 0 : index
    %851 = vector.load %arg10[%850, %c0_222, %c0_223] : memref<8x2x32xf32, #tpu.memory_space<vmem>>, vector<1x2x32xf32>
    %852 = vector.shape_cast %851 : vector<1x2x32xf32> to vector<2x32xf32>
    %853 = vector.shape_cast %849 : vector<2x32xf32> to vector<1x2x32xf32>
    tpu.vector_store %arg10[%850, %c0_222, %c0_223], %853 {strides = array<i32>} : memref<8x2x32xf32, #tpu.memory_space<vmem>>, vector<1x2x32xf32>,
    %c5_i32_224 = arith.constant 5 : i32
    %854 = arith.index_cast %c5_i32_224 : i32 to index
    %c0_225 = arith.constant 0 : index
    %c0_226 = arith.constant 0 : index
    %855 = vector.load %arg8[%854, %c0_225, %c0_226] : memref<8x2x96xf32, #tpu.memory_space<vmem>>, vector<1x2x96xf32>
    %856 = vector.shape_cast %855 : vector<1x2x96xf32> to vector<2x96xf32>
    %cst_227 = arith.constant dense<0.000000e+00> : vector<2x96xf32>
    %857 = tpu.matmul %849, %18, %cst_227 {dimension_numbers = #tpu.dot_dimension_numbers<[1], [0], [0], [1], [0, 0, 1, 1], [], []>} : vector<2x32xf32>, vector<32x96xf32>, vector<2x96xf32> -> vector<2x96xf32>
    %858 = vector.extract_strided_slice %856 {offsets = [0, 0], sizes = [2, 32], strides = [1, 1]} : vector<2x96xf32> to vector<2x32xf32>
    %859 = vector.extract_strided_slice %857 {offsets = [0, 0], sizes = [2, 32], strides = [1, 1]} : vector<2x96xf32> to vector<2x32xf32>
    %860 = arith.addf %858, %859 : vector<2x32xf32>
    %861 = arith.negf %860 : vector<2x32xf32>
    %862 = math.exp %861 : vector<2x32xf32>
    %cst_228 = arith.constant 1.000000e+00 : f32
    %863 = vector.broadcast %cst_228 : f32 to vector<2x32xf32>
    %864 = arith.addf %863, %862 : vector<2x32xf32>
    %865 = arith.divf %863, %864 : vector<2x32xf32>
    %866 = vector.extract_strided_slice %856 {offsets = [0, 32], sizes = [2, 32], strides = [1, 1]} : vector<2x96xf32> to vector<2x32xf32>
    %867 = vector.extract_strided_slice %857 {offsets = [0, 32], sizes = [2, 32], strides = [1, 1]} : vector<2x96xf32> to vector<2x32xf32>
    %868 = arith.addf %866, %867 : vector<2x32xf32>
    %869 = arith.negf %868 : vector<2x32xf32>
    %870 = math.exp %869 : vector<2x32xf32>
    %cst_229 = arith.constant 1.000000e+00 : f32
    %871 = vector.broadcast %cst_229 : f32 to vector<2x32xf32>
    %872 = arith.addf %871, %870 : vector<2x32xf32>
    %873 = arith.divf %871, %872 : vector<2x32xf32>
    %874 = vector.extract_strided_slice %856 {offsets = [0, 64], sizes = [2, 32], strides = [1, 1]} : vector<2x96xf32> to vector<2x32xf32>
    %875 = vector.extract_strided_slice %857 {offsets = [0, 64], sizes = [2, 32], strides = [1, 1]} : vector<2x96xf32> to vector<2x32xf32>
    %876 = vector.broadcast %20 : vector<1x32xf32> to vector<2x32xf32>
    %877 = arith.addf %875, %876 : vector<2x32xf32>
    %878 = arith.mulf %865, %877 : vector<2x32xf32>
    %879 = arith.addf %874, %878 : vector<2x32xf32>
    %880 = math.tanh %879 : vector<2x32xf32>
    %cst_230 = arith.constant 1.000000e+00 : f32
    %881 = vector.broadcast %cst_230 : f32 to vector<2x32xf32>
    %882 = arith.subf %881, %873 : vector<2x32xf32>
    %883 = arith.mulf %882, %880 : vector<2x32xf32>
    %884 = arith.mulf %873, %849 : vector<2x32xf32>
    %885 = arith.addf %883, %884 : vector<2x32xf32>
    %886 = arith.index_cast %c5_i32_224 : i32 to index
    %c0_231 = arith.constant 0 : index
    %c0_232 = arith.constant 0 : index
    %887 = vector.load %arg10[%886, %c0_231, %c0_232] : memref<8x2x32xf32, #tpu.memory_space<vmem>>, vector<1x2x32xf32>
    %888 = vector.shape_cast %887 : vector<1x2x32xf32> to vector<2x32xf32>
    %889 = vector.shape_cast %885 : vector<2x32xf32> to vector<1x2x32xf32>
    tpu.vector_store %arg10[%886, %c0_231, %c0_232], %889 {strides = array<i32>} : memref<8x2x32xf32, #tpu.memory_space<vmem>>, vector<1x2x32xf32>,
    %c6_i32_233 = arith.constant 6 : i32
    %890 = arith.index_cast %c6_i32_233 : i32 to index
    %c0_234 = arith.constant 0 : index
    %c0_235 = arith.constant 0 : index
    %891 = vector.load %arg8[%890, %c0_234, %c0_235] : memref<8x2x96xf32, #tpu.memory_space<vmem>>, vector<1x2x96xf32>
    %892 = vector.shape_cast %891 : vector<1x2x96xf32> to vector<2x96xf32>
    %cst_236 = arith.constant dense<0.000000e+00> : vector<2x96xf32>
    %893 = tpu.matmul %885, %18, %cst_236 {dimension_numbers = #tpu.dot_dimension_numbers<[1], [0], [0], [1], [0, 0, 1, 1], [], []>} : vector<2x32xf32>, vector<32x96xf32>, vector<2x96xf32> -> vector<2x96xf32>
    %894 = vector.extract_strided_slice %892 {offsets = [0, 0], sizes = [2, 32], strides = [1, 1]} : vector<2x96xf32> to vector<2x32xf32>
    %895 = vector.extract_strided_slice %893 {offsets = [0, 0], sizes = [2, 32], strides = [1, 1]} : vector<2x96xf32> to vector<2x32xf32>
    %896 = arith.addf %894, %895 : vector<2x32xf32>
    %897 = arith.negf %896 : vector<2x32xf32>
    %898 = math.exp %897 : vector<2x32xf32>
    %cst_237 = arith.constant 1.000000e+00 : f32
    %899 = vector.broadcast %cst_237 : f32 to vector<2x32xf32>
    %900 = arith.addf %899, %898 : vector<2x32xf32>
    %901 = arith.divf %899, %900 : vector<2x32xf32>
    %902 = vector.extract_strided_slice %892 {offsets = [0, 32], sizes = [2, 32], strides = [1, 1]} : vector<2x96xf32> to vector<2x32xf32>
    %903 = vector.extract_strided_slice %893 {offsets = [0, 32], sizes = [2, 32], strides = [1, 1]} : vector<2x96xf32> to vector<2x32xf32>
    %904 = arith.addf %902, %903 : vector<2x32xf32>
    %905 = arith.negf %904 : vector<2x32xf32>
    %906 = math.exp %905 : vector<2x32xf32>
    %cst_238 = arith.constant 1.000000e+00 : f32
    %907 = vector.broadcast %cst_238 : f32 to vector<2x32xf32>
    %908 = arith.addf %907, %906 : vector<2x32xf32>
    %909 = arith.divf %907, %908 : vector<2x32xf32>
    %910 = vector.extract_strided_slice %892 {offsets = [0, 64], sizes = [2, 32], strides = [1, 1]} : vector<2x96xf32> to vector<2x32xf32>
    %911 = vector.extract_strided_slice %893 {offsets = [0, 64], sizes = [2, 32], strides = [1, 1]} : vector<2x96xf32> to vector<2x32xf32>
    %912 = vector.broadcast %20 : vector<1x32xf32> to vector<2x32xf32>
    %913 = arith.addf %911, %912 : vector<2x32xf32>
    %914 = arith.mulf %901, %913 : vector<2x32xf32>
    %915 = arith.addf %910, %914 : vector<2x32xf32>
    %916 = math.tanh %915 : vector<2x32xf32>
    %cst_239 = arith.constant 1.000000e+00 : f32
    %917 = vector.broadcast %cst_239 : f32 to vector<2x32xf32>
    %918 = arith.subf %917, %909 : vector<2x32xf32>
    %919 = arith.mulf %918, %916 : vector<2x32xf32>
    %920 = arith.mulf %909, %885 : vector<2x32xf32>
    %921 = arith.addf %919, %920 : vector<2x32xf32>
    %922 = arith.index_cast %c6_i32_233 : i32 to index
    %c0_240 = arith.constant 0 : index
    %c0_241 = arith.constant 0 : index
    %923 = vector.load %arg10[%922, %c0_240, %c0_241] : memref<8x2x32xf32, #tpu.memory_space<vmem>>, vector<1x2x32xf32>
    %924 = vector.shape_cast %923 : vector<1x2x32xf32> to vector<2x32xf32>
    %925 = vector.shape_cast %921 : vector<2x32xf32> to vector<1x2x32xf32>
    tpu.vector_store %arg10[%922, %c0_240, %c0_241], %925 {strides = array<i32>} : memref<8x2x32xf32, #tpu.memory_space<vmem>>, vector<1x2x32xf32>,
    %c7_i32_242 = arith.constant 7 : i32
    %926 = arith.index_cast %c7_i32_242 : i32 to index
    %c0_243 = arith.constant 0 : index
    %c0_244 = arith.constant 0 : index
    %927 = vector.load %arg8[%926, %c0_243, %c0_244] : memref<8x2x96xf32, #tpu.memory_space<vmem>>, vector<1x2x96xf32>
    %928 = vector.shape_cast %927 : vector<1x2x96xf32> to vector<2x96xf32>
    %cst_245 = arith.constant dense<0.000000e+00> : vector<2x96xf32>
    %929 = tpu.matmul %921, %18, %cst_245 {dimension_numbers = #tpu.dot_dimension_numbers<[1], [0], [0], [1], [0, 0, 1, 1], [], []>} : vector<2x32xf32>, vector<32x96xf32>, vector<2x96xf32> -> vector<2x96xf32>
    %930 = vector.extract_strided_slice %928 {offsets = [0, 0], sizes = [2, 32], strides = [1, 1]} : vector<2x96xf32> to vector<2x32xf32>
    %931 = vector.extract_strided_slice %929 {offsets = [0, 0], sizes = [2, 32], strides = [1, 1]} : vector<2x96xf32> to vector<2x32xf32>
    %932 = arith.addf %930, %931 : vector<2x32xf32>
    %933 = arith.negf %932 : vector<2x32xf32>
    %934 = math.exp %933 : vector<2x32xf32>
    %cst_246 = arith.constant 1.000000e+00 : f32
    %935 = vector.broadcast %cst_246 : f32 to vector<2x32xf32>
    %936 = arith.addf %935, %934 : vector<2x32xf32>
    %937 = arith.divf %935, %936 : vector<2x32xf32>
    %938 = vector.extract_strided_slice %928 {offsets = [0, 32], sizes = [2, 32], strides = [1, 1]} : vector<2x96xf32> to vector<2x32xf32>
    %939 = vector.extract_strided_slice %929 {offsets = [0, 32], sizes = [2, 32], strides = [1, 1]} : vector<2x96xf32> to vector<2x32xf32>
    %940 = arith.addf %938, %939 : vector<2x32xf32>
    %941 = arith.negf %940 : vector<2x32xf32>
    %942 = math.exp %941 : vector<2x32xf32>
    %cst_247 = arith.constant 1.000000e+00 : f32
    %943 = vector.broadcast %cst_247 : f32 to vector<2x32xf32>
    %944 = arith.addf %943, %942 : vector<2x32xf32>
    %945 = arith.divf %943, %944 : vector<2x32xf32>
    %946 = vector.extract_strided_slice %928 {offsets = [0, 64], sizes = [2, 32], strides = [1, 1]} : vector<2x96xf32> to vector<2x32xf32>
    %947 = vector.extract_strided_slice %929 {offsets = [0, 64], sizes = [2, 32], strides = [1, 1]} : vector<2x96xf32> to vector<2x32xf32>
    %948 = vector.broadcast %20 : vector<1x32xf32> to vector<2x32xf32>
    %949 = arith.addf %947, %948 : vector<2x32xf32>
    %950 = arith.mulf %937, %949 : vector<2x32xf32>
    %951 = arith.addf %946, %950 : vector<2x32xf32>
    %952 = math.tanh %951 : vector<2x32xf32>
    %cst_248 = arith.constant 1.000000e+00 : f32
    %953 = vector.broadcast %cst_248 : f32 to vector<2x32xf32>
    %954 = arith.subf %953, %945 : vector<2x32xf32>
    %955 = arith.mulf %954, %952 : vector<2x32xf32>
    %956 = arith.mulf %945, %921 : vector<2x32xf32>
    %957 = arith.addf %955, %956 : vector<2x32xf32>
    %958 = arith.index_cast %c7_i32_242 : i32 to index
    %c0_249 = arith.constant 0 : index
    %c0_250 = arith.constant 0 : index
    %959 = vector.load %arg10[%958, %c0_249, %c0_250] : memref<8x2x32xf32, #tpu.memory_space<vmem>>, vector<1x2x32xf32>
    %960 = vector.shape_cast %959 : vector<1x2x32xf32> to vector<2x32xf32>
    %961 = vector.shape_cast %957 : vector<2x32xf32> to vector<1x2x32xf32>
    tpu.vector_store %arg10[%958, %c0_249, %c0_250], %961 {strides = array<i32>} : memref<8x2x32xf32, #tpu.memory_space<vmem>>, vector<1x2x32xf32>,
    %c8_i32_251 = arith.constant 8 : i32
    %c0_252 = arith.constant 0 : index
    %c0_253 = arith.constant 0 : index
    %c0_254 = arith.constant 0 : index
    %962 = vector.load %arg10[%c0_252, %c0_253, %c0_254] : memref<8x2x32xf32, #tpu.memory_space<vmem>>, vector<8x2x32xf32>
    %963 = vector.shape_cast %962 : vector<8x2x32xf32> to vector<16x32xf32>
    %cst_255 = arith.constant dense<0.000000e+00> : vector<16x2xf32>
    %964 = tpu.matmul %963, %21, %cst_255 {dimension_numbers = #tpu.dot_dimension_numbers<[1], [0], [0], [1], [0, 0, 1, 1], [], []>} : vector<16x32xf32>, vector<32x2xf32>, vector<16x2xf32> -> vector<16x2xf32>
    %965 = vector.broadcast %22 : vector<1x2xf32> to vector<16x2xf32>
    %966 = arith.addf %964, %965 : vector<16x2xf32>
    %967 = tpu.concatenate %580, %966 in 1 : vector<16x2xf32>, vector<16x2xf32> -> vector<16x4xf32>
    %c0_256 = arith.constant 0 : index
    %c0_257 = arith.constant 0 : index
    %968 = vector.load %arg5[%c0_256, %c0_257] : memref<16x4xf32, #tpu.memory_space<vmem>>, vector<16x4xf32>
    tpu.vector_store %arg5[%c0_256, %c0_257], %967 {strides = array<i32>} : memref<16x4xf32, #tpu.memory_space<vmem>>, vector<16x4xf32>,
    return
  }
}

</mosaic_0001>

<llo_original>
// kernel: desire_forward.1
$region0: #{desire_forward.1}
  #allocation0 [shape = 'u32[]', space=smem, size = 0x4, offset = 0x4, fixed_abs, tag = 'smem constant byte address 0x4 - core index']
  #allocation1 [shape = 'u32[144,128]{1,0:T(1,128)}', space=vmem, size = 0x12000, scoped, tag = 'internal scratch']
  #allocation2 [shape = 'f32[8,2,192]{2,1,0:T(2,128)}', space=vmem, size = 0x4000, scoped, tag = 'scratch operand']
  #allocation3 [shape = 'f32[8,2,96]{2,1,0:T(2,128)}', space=vmem, size = 0x2000, scoped, tag = 'scratch operand']
  #allocation4 [shape = 'f32[8,2,32]{2,1,0:T(2,128)}', space=vmem, size = 0x2000, scoped, tag = 'scratch operand']
  #allocation5 [shape = 'f32[8,2,32]{2,1,0:T(2,128)}', space=vmem, size = 0x2000, scoped, tag = 'scratch operand']
  %s0 = inlined_call_operand.vmem [shape: f32[16,4], index: 0, kind: input, shape index: {}]
  %s1 = inlined_call_operand.vmem [shape: f32[2,16], index: 1, kind: input, shape index: {}]
  %s2 = inlined_call_operand.vmem [shape: f32[2,2], index: 2, kind: input, shape index: {}]
  %s3 = inlined_call_operand.vmem [shape: f32[512,27], index: 3, kind: input, shape index: {}]
  %s4 = inlined_call_operand.vmem [shape: f32[464,256], index: 4, kind: input, shape index: {}]
  %s5 = inlined_call_operand.vmem [shape: f32[16,4], index: 5, kind: output, shape index: {0}]
  %s6 = inlined_call_operand.vmem [shape: f32[2,32], index: 6, kind: output, shape index: {1}]
  %7 = xla_tuple %s5, %s6
  %s8 = sld [smem:[#allocation0]]
  $region38: #{desire_forward.1} parent=0
    _
  %s10 = ssub.s32 1, %s8
  %s11 = scalar_select 0, %s10, %s8
  // Predicated region
  $region2: #{desire_forward.1} parent=0 // pred_check
    _
  $region3: #{desire_forward.1} parent=0 // pred_check_branch
    %13 = sbr.rel (0) target = $region5
  $region4: #{desire_forward.1} parent=0 // pred_region
    _
  $region5: #{desire_forward.1} parent=0 // pred_fallthru
    _
  // Predicated region
  $region6: #{desire_forward.1} parent=0 // pred_check
    _
  $region7: #{desire_forward.1} parent=0 // pred_check_branch
    %15 = sbr.rel (0) target = $region9
  $region8: #{desire_forward.1} parent=0 // pred_region
    _
  $region9: #{desire_forward.1} parent=0 // pred_fallthru
    _
  // Predicated region
  $region10: #{desire_forward.1} parent=0 // pred_check
    _
  $region11: #{desire_forward.1} parent=0 // pred_check_branch
    %17 = sbr.rel (0) target = $region13
  $region12: #{desire_forward.1} parent=0 // pred_region
    _
  $region13: #{desire_forward.1} parent=0 // pred_fallthru
    _
  // Predicated region
  $region14: #{desire_forward.1} parent=0 // pred_check
    _
  $region15: #{desire_forward.1} parent=0 // pred_check_branch
    %19 = sbr.rel (0) target = $region17
  $region16: #{desire_forward.1} parent=0 // pred_region
    _
  $region17: #{desire_forward.1} parent=0 // pred_fallthru
    _
  // Predicated region
  $region18: #{desire_forward.1} parent=0 // pred_check
    _
  $region19: #{desire_forward.1} parent=0 // pred_check_branch
    %21 = sbr.rel (0) target = $region21
  $region20: #{desire_forward.1} parent=0 // pred_region
    _
  $region21: #{desire_forward.1} parent=0 // pred_fallthru
    _
  %v22 = vld [vmem:[%s4] sm:$0xf]
  %v23 = vld [vmem:[%s4 + $0x8] sm:$0xf]
  %v24 = vld [vmem:[%s4 + $0x10] sm:$0xff]
  %v25 = vld [vmem:[%s4 + $0x18] sm:$0xff]
  %v26 = vld [vmem:[%s4 + $0x20] sm:$0xff]
  %v27 = vld [vmem:[%s4 + $0x28] sm:$0xff]
  %v28 = vld [vmem:[%s4 + $0x30] sm:$0xff]
  %v29 = vld [vmem:[%s4 + $0x38] sm:$0xff]
  %v30 = vld [vmem:[%s4 + $0x40] sm:$0xff]
  %v31 = vld [vmem:[%s4 + $0x48] sm:$0xff]
  %v32 = vld [vmem:[%s4 + $0x50] sm:$0xff]
  %v33 = vld [vmem:[%s4 + $0x58] sm:$0xff]
  %v34 = vld [vmem:[%s4 + $0x60] sm:$0xff]
  %v35 = vld [vmem:[%s4 + $0x68] sm:$0xff]
  %v36 = vld [vmem:[%s4 + $0x70] sm:$0xff]
  %v37 = vld [vmem:[%s4 + $0x78] sm:$0xff]
  %v38 = vld [vmem:[%s4 + $0x80] sm:$0xff]
  %v39 = vld [vmem:[%s4 + $0x88] sm:$0xff]
  %s40 = scalar_lea.vmem %s4, 144
  %v41 = vld [vmem:[%s40] ss:$8 sm:$0x3]
  %v42 = vld [vmem:[%s4 + $0xa0] ss:$0 sm:$0xff]
  %v43 = vld [vmem:[%s4 + $0xb0] sm:$0xff]
  %v44 = vld [vmem:[%s4 + $0xc0] sm:$0xff]
  %v45 = vld [vmem:[%s4 + $0xd0] sm:$0xff]
  %v46 = vld [vmem:[%s4 + $0xe0] sm:$0xff]
  %v47 = vld [vmem:[%s4 + $0xf0] sm:$0xff]
  %v48 = vld [vmem:[%s4 + $0x100] sm:$0xff]
  %v49 = vld [vmem:[%s4 + $0x110] sm:$0xff]
  %v50 = vld [vmem:[%s4 + $0x120] sm:$0xff]
  %v51 = vld [vmem:[%s4 + $0x130] ss:$0 sm:$0xff]
  %v52 = vld [vmem:[%s4 + $0x140] sm:$0xff]
  %v53 = vld [vmem:[%s4 + $0x150] sm:$0xff]
  %v54 = vld [vmem:[%s4 + $0x160] sm:$0xff]
  %v55 = vld [vmem:[%s4 + $0x170] sm:$0xff]
  %v56 = vld [vmem:[%s4 + $0x180] sm:$0xff]
  %v57 = vld [vmem:[%s4 + $0x190] sm:$0xff]
  %v58 = vld [vmem:[%s4 + $0x1a0] ss:$0 sm:$0xff]
  %v59 = vld [vmem:[%s4 + $0x1b0] sm:$0xff]
  %v60 = vld [vmem:[%s4 + $0x1c0] sm:$0xff]
  %v61 = vld [vmem:[%s4 + $0x1d0] sm:$0xff]
  %v62 = vld [vmem:[%s4 + $0x1e0] sm:$0xff]
  %v63 = vld [vmem:[%s4 + $0x1f0] sm:$0xff]
  %v64 = vld [vmem:[%s4 + $0x200] sm:$0xff]
  %v65 = vld [vmem:[%s4 + $0x210] ss:$0 sm:$0xff]
  %v66 = vld [vmem:[%s4 + $0x220] ss:$0 sm:$0xff]
  %v67 = vld [vmem:[%s4 + $0x230] sm:$0xff]
  %v68 = vld [vmem:[%s4 + $0x240] sm:$0xff]
  %v69 = vld [vmem:[%s4 + $0x250] sm:$0xff]
  %v70 = vld [vmem:[%s4 + $0x260] sm:$0xff]
  %v71 = vld [vmem:[%s4 + $0x270] ss:$0 sm:$0xff]
  %v72 = vld [vmem:[%s4 + $0x280] sm:$0xff]
  %v73 = vld [vmem:[%s4 + $0x290] sm:$0xff]
  %v74 = vld [vmem:[%s4 + $0x2a0] sm:$0xff]
  %v75 = vld [vmem:[%s4 + $0x2b0] sm:$0x7]
  %v76 = vld [vmem:[%s4 + $0x2c0] ss:$0 sm:$0xff]
  %v77 = vld [vmem:[%s4 + $0x2d0] sm:$0x3]
  %v78 = vld [vmem:[%s4 + $0x2e0] sm:$0xff]
  %v79 = vld [vmem:[%s4 + $0x2f0] sm:$0xff]
  %v80 = vld [vmem:[%s4 + $0x300] sm:$0xff]
  %v81 = vld [vmem:[%s4 + $0x310] sm:$0xff]
  %v82 = vld [vmem:[%s4 + $0x320] sm:$0xff]
  %v83 = vld [vmem:[%s4 + $0x330] ss:$0 sm:$0xff]
  %v84 = vld [vmem:[%s4 + $0x340] ss:$0 sm:$0xff]
  %v85 = vld [vmem:[%s4 + $0x350] sm:$0xff]
  %v86 = vld [vmem:[%s4 + $0x360] sm:$0xff]
  %v87 = vld [vmem:[%s4 + $0x370] sm:$0xff]
  %v88 = vld [vmem:[%s4 + $0x380] sm:$0xff]
  %v89 = vld [vmem:[%s4 + $0x390] ss:$0 sm:$0xff]
  %v90 = vld [vmem:[%s0] sm:$0xff]
  %v91 = vld [vmem:[%s0 + $0x8] sm:$0xff]
  %v93 = vlaneseq
  %v94 = vshrl.u32 %v93, 7
  %v95 = vsub.s32 0, %v94
  %v96 = vrot.slane %v41, %v95
  %v97 = vlaneseq
  %v98 = vshrl.u32 %v97, 7
  %v99 = vsub.s32 1, %v98
  %v100 = vrot.slane %v41, %v99
  %vm103 = vcmask 31744
  %v105 = vsel %vm103, %v90, 0
  %v108 = vsel %vm103, %v91, 0
  %vm110 = vcmask 1043456
  %v112 = vsel %vm110, %v22, 0
  %v115 = vsel %vm110, %v23, 0
  %117 = vmatprep.subr.mxu0 %v115
  %118 = vmatpush1.msra.mxu0 %v112
  %119 = vmatprep.subr.mxu0 0.0
  %120 = vmatpush1.msra.mxu0 0.0
  %121 = vmatprep.subr.mxu0 0.0
  %122 = vmatpush1.msra.mxu0 0.0
  %123 = vmatprep.subr.mxu0 0.0
  %124 = vmatpush1.msra.mxu0 0.0
  %125 = vmatprep.subr.mxu0 0.0
  %126 = vmatpush1.msra.mxu0 0.0
  %127 = vmatprep.subr.mxu0 0.0
  %128 = vmatpush1.msra.mxu0 0.0
  %129 = vmatprep.subr.mxu0 0.0
  %130 = vmatpush1.msra.mxu0 0.0
  %131 = vmatprep.subr.mxu0 0.0
  %132 = vmatpush1.msra.mxu0 0.0
  %133 = vmatprep.subr.mxu0 0.0
  %134 = vmatpush1.msra.mxu0 0.0
  %135 = vmatprep.subr.mxu0 0.0
  %136 = vmatpush1.msra.mxu0 0.0
  %137 = vmatprep.subr.mxu0 0.0
  %138 = vmatpush1.msra.mxu0 0.0
  %139 = vmatprep.subr.mxu0 0.0
  %140 = vmatpush1.msra.mxu0 0.0
  %141 = vmatprep.subr.mxu0 0.0
  %142 = vmatpush1.msra.mxu0 0.0
  %143 = vmatprep.subr.mxu0 0.0
  %144 = vmatpush1.msra.mxu0 0.0
  %145 = vmatprep.subr.mxu0 0.0
  %146 = vmatpush1.msra.mxu0 0.0
  %147 = vmatprep.subr.mxu0 0.0
  %148 = vmatpush1.msra.mxu0 0.0
  %149 = vmatprep.subr.mxu0 0.0
  %150 = vmatpush1.msra.mxu0 0.0
  %151 = vmatprep.subr.mxu0 0.0
  %152 = vmatpush1.msra.mxu0 0.0
  %153 = vmatprep.subr.mxu0 0.0
  %154 = vmatpush1.msra.mxu0 0.0
  %155 = vmatprep.subr.mxu0 0.0
  %156 = vmatpush1.msra.mxu0 0.0
  %157 = vmatprep.subr.mxu0 0.0
  %158 = vmatpush1.msra.mxu0 0.0
  %159 = vmatprep.subr.mxu0 0.0
  %160 = vmatpush1.msra.mxu0 0.0
  %161 = vmatprep.subr.mxu0 0.0
  %162 = vmatpush1.msra.mxu0 0.0
  %163 = vmatprep.subr.mxu0 0.0
  %164 = vmatpush1.msra.mxu0 0.0
  %165 = vmatprep.subr.mxu0 0.0
  %166 = vmatpush1.msra.mxu0 0.0
  %167 = vmatprep.subr.mxu0 0.0
  %168 = vmatpush1.msra.mxu0 0.0
  %169 = vmatprep.subr.mxu0 0.0
  %170 = vmatpush1.msra.mxu0 0.0
  %171 = vmatprep.subr.mxu0 0.0
  %172 = vmatpush1.msra.mxu0 0.0
  %173 = vmatprep.subr.mxu0 0.0
  %174 = vmatpush1.msra.mxu0 0.0
  %175 = vmatprep.subr.mxu0 0.0
  %176 = vmatpush1.msra.mxu0 0.0
  %177 = vmatprep.subr.mxu0 0.0
  %178 = vmatpush1.msra.mxu0 0.0
  %179 = vmatprep.subr.mxu0 0.0
  %180 = vmatpush1.msra.mxu0 0.0
  %181 = vmatprep.mubr.f32.mxu0 0.0
  %182 = vmatmul.mubr.f32.gmra.mrb[0].mxu0 %v105
  %v183 = vpop.f32.mrb[0].mxu0
  %v184 = vadd.f32 %v96, %v183
  %v185 = vpop.f32.mrb[0].mxu0
  %v186 = vadd.f32 %v100, %v185
  %187 = vmatprep.mubr.f32.mxu0 0.0
  %188 = vmatmul.mubr.f32.gmra.mrb[0].mxu0 %v108
  %v189 = vpop.f32.mrb[0].mxu0
  %v190 = vadd.f32 %v96, %v189
  %v191 = vpop.f32.mrb[0].mxu0
  %v192 = vadd.f32 %v100, %v191
  %193 = vdwg.mxu0
  %v198 = vcombine.low %v184, %v186
  %v199 = vcombine.high %v184, %v186
  %v201 = vunpack.c.l.s4 1983009808
  %v202 = vunpack.c.0.s8 %v201
  %v203 = vlaneseq
  %v204 = vshrl.u32 %v203, 7
  %v205 = vsub.s32 %v202, %v204
  %v206 = vrot.slane %v198, %v205
  %v208 = vunpack.c.l.s4 1983009808
  %v209 = vunpack.c.0.s8 %v208
  %v210 = vlaneseq
  %v211 = vshrl.u32 %v210, 7
  %v212 = vsub.s32 %v209, %v211
  %v213 = vrot.slane %v199, %v212
  %v214 = vcombine.high %v206, %v206
  %v215 = vcombine.high %v213, %v213
  %v216 = vcombine.low %v190, %v192
  %v217 = vcombine.high %v190, %v192
  %v219 = vunpack.c.l.s4 1983009808
  %v220 = vunpack.c.0.s8 %v219
  %v221 = vlaneseq
  %v222 = vshrl.u32 %v221, 7
  %v223 = vsub.s32 %v220, %v222
  %v224 = vrot.slane %v216, %v223
  %v226 = vunpack.c.l.s4 1983009808
  %v227 = vunpack.c.0.s8 %v226
  %v228 = vlaneseq
  %v229 = vshrl.u32 %v228, 7
  %v230 = vsub.s32 %v227, %v229
  %v231 = vrot.slane %v217, %v230
  %v232 = vcombine.high %v224, %v224
  %v233 = vcombine.high %v231, %v231
  %vm242 = vcmask 1041408
  %vm243 = vcmask 519170
  %vm244 = vmor %vm243, %vm242
  %245 = vst.msk [vmem:[#allocation2] sm:$0xf] %vm244, %v206
  %246 = vst.msk [vmem:[#allocation2 + $0x4] sm:$0xf] %vm244, %v214
  %247 = vst.msk [vmem:[#allocation2 + $0x8] sm:$0xf] %vm244, %v213
  %248 = vst.msk [vmem:[#allocation2 + $0xc] sm:$0xf] %vm244, %v215
  %249 = vst.msk [vmem:[#allocation2 + $0x10] sm:$0xf] %vm244, %v224
  %250 = vst.msk [vmem:[#allocation2 + $0x14] sm:$0xf] %vm244, %v232
  %251 = vst.msk [vmem:[#allocation2 + $0x18] sm:$0xf] %vm244, %v231
  %252 = vst.msk [vmem:[#allocation2 + $0x1c] sm:$0xf] %vm244, %v233
  %v253 = vld [vmem:[#allocation2] sm:$0xf]
  %vm254 = vcmask 523264
  %v256 = vsel %vm254, 0.0, 0
  %258 = vmatprep.subr.mxu0 %v25
  %259 = vmatpush1.msra.mxu0 %v24
  %260 = vmatprep.subr.mxu0 %v27
  %261 = vmatpush1.msra.mxu0 %v26
  %262 = vmatprep.subr.mxu0 %v29
  %263 = vmatpush1.msra.mxu0 %v28
  %264 = vmatprep.subr.mxu0 %v31
  %265 = vmatpush1.msra.mxu0 %v30
  %266 = vmatprep.subr.mxu0 %v33
  %267 = vmatpush1.msra.mxu0 %v32
  %268 = vmatprep.subr.mxu0 %v35
  %269 = vmatpush1.msra.mxu0 %v34
  %270 = vmatprep.subr.mxu0 %v37
  %271 = vmatpush1.msra.mxu0 %v36
  %272 = vmatprep.subr.mxu0 %v39
  %273 = vmatpush1.msra.mxu0 %v38
  %274 = vmatprep.subr.mxu0 0.0
  %275 = vmatpush1.msra.mxu0 0.0
  %276 = vmatprep.subr.mxu0 0.0
  %277 = vmatpush1.msra.mxu0 0.0
  %278 = vmatprep.subr.mxu0 0.0
  %279 = vmatpush1.msra.mxu0 0.0
  %280 = vmatprep.subr.mxu0 0.0
  %281 = vmatpush1.msra.mxu0 0.0
  %282 = vmatprep.subr.mxu0 0.0
  %283 = vmatpush1.msra.mxu0 0.0
  %284 = vmatprep.subr.mxu0 0.0
  %285 = vmatpush1.msra.mxu0 0.0
  %286 = vmatprep.subr.mxu0 0.0
  %287 = vmatpush1.msra.mxu0 0.0
  %288 = vmatprep.subr.mxu0 0.0
  %289 = vmatpush1.msra.mxu0 0.0
  %290 = vmatprep.subr.mxu0 0.0
  %291 = vmatpush1.msra.mxu0 0.0
  %292 = vmatprep.subr.mxu0 0.0
  %293 = vmatpush1.msra.mxu0 0.0
  %294 = vmatprep.subr.mxu0 0.0
  %295 = vmatpush1.msra.mxu0 0.0
  %296 = vmatprep.subr.mxu0 0.0
  %297 = vmatpush1.msra.mxu0 0.0
  %298 = vmatprep.subr.mxu0 0.0
  %299 = vmatpush1.msra.mxu0 0.0
  %300 = vmatprep.subr.mxu0 0.0
  %301 = vmatpush1.msra.mxu0 0.0
  %302 = vmatprep.subr.mxu0 0.0
  %303 = vmatpush1.msra.mxu0 0.0
  %304 = vmatprep.subr.mxu0 0.0
  %305 = vmatpush1.msra.mxu0 0.0
  %306 = vmatprep.subr.mxu0 0.0
  %307 = vmatpush1.msra.mxu0 0.0
  %308 = vmatprep.subr.mxu0 0.0
  %309 = vmatpush1.msra.mxu0 0.0
  %310 = vmatprep.subr.mxu0 0.0
  %311 = vmatpush1.msra.mxu0 0.0
  %312 = vmatprep.subr.mxu0 0.0
  %313 = vmatpush1.msra.mxu0 0.0
  %314 = vmatprep.subr.mxu0 0.0
  %315 = vmatpush1.msra.mxu0 0.0
  %316 = vmatprep.subr.mxu0 0.0
  %317 = vmatpush1.msra.mxu0 0.0
  %318 = vmatprep.subr.mxu0 0.0
  %319 = vmatpush1.msra.mxu0 0.0
  %320 = vmatprep.subr.mxu0 0.0
  %321 = vmatpush1.msra.mxu0 0.0
  %322 = vmatprep.mubr.f32.mxu0 0.0
  %323 = vmatmul.mubr.f32.gmra.mrb[0].mxu0 %v256
  %v324 = vpop.f32.mrb[0].mxu0
  %v325 = vadd.f32 0.0, %v324
  %v326 = vpop.f32.mrb[0].mxu0
  %v327 = vadd.f32 0.0, %v326
  %328 = vdwg.mxu0
  %v329 = vadd.f32 %v253, %v325
  %v330 = vxor.u32 %v329, 2147483648
  %v331 = vmul.f32 %v330, 1.442695
  %v332 = vpow.pop %v331
  %v333 = vadd.f32 %v332, 1.0
  %v334 = vrcp.pop %v333
  %v335 = vmul.f32 1.0, %v334
  %v336 = vadd.f32 %v327, %v42
  %v337 = vmul.f32 %v335, %v336
  %v339 = vrot.slane %v253, 2
  %v341 = vadd.f32 %v339, %v337
  %v342 = vtanh.pop %v341
  %v343 = vsub.f32 1.0, %v335
  %345 = vrot.lane.b32.xlu0 %v342, 64
  %v346 = vpop.permute.xlu0 %345
  %v348 = vmul.f32 %v343, %v346
  %v349 = vmul.f32 %v335, 0.0
  %v350 = vadd.f32 %v348, %v349
  %s351 = scalar_lea.vmem [#allocation2], 4
  %v352 = vld [vmem:[%s351] sm:$0xf]
  %v355 = vunpack.c.l.s4 1983009808
  %v356 = vunpack.c.0.s8 %v355
  %v357 = vlaneseq
  %v358 = vshrl.u32 %v357, 7
  %v359 = vsub.s32 %v356, %v358
  %v360 = vrot.slane %v350, %v359
  %361 = vrot.lane.b32.xlu0 %v360, 64
  %v362 = vpop.permute.xlu0 %361
  %v363 = vsel %vm254, %v362, 0
  %365 = vmatprep.subr.mxu0 %v25
  %366 = vmatpush1.msra.mxu0 %v24
  %367 = vmatprep.subr.mxu0 %v27
  %368 = vmatpush1.msra.mxu0 %v26
  %369 = vmatprep.subr.mxu0 %v29
  %370 = vmatpush1.msra.mxu0 %v28
  %371 = vmatprep.subr.mxu0 %v31
  %372 = vmatpush1.msra.mxu0 %v30
  %373 = vmatprep.subr.mxu0 %v33
  %374 = vmatpush1.msra.mxu0 %v32
  %375 = vmatprep.subr.mxu0 %v35
  %376 = vmatpush1.msra.mxu0 %v34
  %377 = vmatprep.subr.mxu0 %v37
  %378 = vmatpush1.msra.mxu0 %v36
  %379 = vmatprep.subr.mxu0 %v39
  %380 = vmatpush1.msra.mxu0 %v38
  %381 = vmatprep.subr.mxu0 0.0
  %382 = vmatpush1.msra.mxu0 0.0
  %383 = vmatprep.subr.mxu0 0.0
  %384 = vmatpush1.msra.mxu0 0.0
  %385 = vmatprep.subr.mxu0 0.0
  %386 = vmatpush1.msra.mxu0 0.0
  %387 = vmatprep.subr.mxu0 0.0
  %388 = vmatpush1.msra.mxu0 0.0
  %389 = vmatprep.subr.mxu0 0.0
  %390 = vmatpush1.msra.mxu0 0.0
  %391 = vmatprep.subr.mxu0 0.0
  %392 = vmatpush1.msra.mxu0 0.0
  %393 = vmatprep.subr.mxu0 0.0
  %394 = vmatpush1.msra.mxu0 0.0
  %395 = vmatprep.subr.mxu0 0.0
  %396 = vmatpush1.msra.mxu0 0.0
  %397 = vmatprep.subr.mxu0 0.0
  %398 = vmatpush1.msra.mxu0 0.0
  %399 = vmatprep.subr.mxu0 0.0
  %400 = vmatpush1.msra.mxu0 0.0
  %401 = vmatprep.subr.mxu0 0.0
  %402 = vmatpush1.msra.mxu0 0.0
  %403 = vmatprep.subr.mxu0 0.0
  %404 = vmatpush1.msra.mxu0 0.0
  %405 = vmatprep.subr.mxu0 0.0
  %406 = vmatpush1.msra.mxu0 0.0
  %407 = vmatprep.subr.mxu0 0.0
  %408 = vmatpush1.msra.mxu0 0.0
  %409 = vmatprep.subr.mxu0 0.0
  %410 = vmatpush1.msra.mxu0 0.0
  %411 = vmatprep.subr.mxu0 0.0
  %412 = vmatpush1.msra.mxu0 0.0
  %413 = vmatprep.subr.mxu0 0.0
  %414 = vmatpush1.msra.mxu0 0.0
  %415 = vmatprep.subr.mxu0 0.0
  %416 = vmatpush1.msra.mxu0 0.0
  %417 = vmatprep.subr.mxu0 0.0
  %418 = vmatpush1.msra.mxu0 0.0
  %419 = vmatprep.subr.mxu0 0.0
  %420 = vmatpush1.msra.mxu0 0.0
  %421 = vmatprep.subr.mxu0 0.0
  %422 = vmatpush1.msra.mxu0 0.0
  %423 = vmatprep.subr.mxu0 0.0
  %424 = vmatpush1.msra.mxu0 0.0
  %425 = vmatprep.subr.mxu0 0.0
  %426 = vmatpush1.msra.mxu0 0.0
  %427 = vmatprep.subr.mxu0 0.0
  %428 = vmatpush1.msra.mxu0 0.0
  %429 = vmatprep.mubr.f32.mxu0 0.0
  %430 = vmatmul.mubr.f32.gmra.mrb[0].mxu0 %v363
  %v431 = vpop.f32.mrb[0].mxu0
  %v432 = vadd.f32 0.0, %v431
  %v433 = vpop.f32.mrb[0].mxu0
  %v434 = vadd.f32 0.0, %v433
  %435 = vdwg.mxu0
  %v436 = vadd.f32 %v352, %v432
  %v437 = vxor.u32 %v436, 2147483648
  %v438 = vmul.f32 %v437, 1.442695
  %v439 = vpow.pop %v438
  %v440 = vadd.f32 %v439, 1.0
  %v441 = vrcp.pop %v440
  %v442 = vmul.f32 1.0, %v441
  %v443 = vadd.f32 %v434, %v42
  %v444 = vmul.f32 %v442, %v443
  %v446 = vrot.slane %v352, 2
  %v448 = vadd.f32 %v446, %v444
  %v449 = vtanh.pop %v448
  %v450 = vsub.f32 1.0, %v442
  %452 = vrot.lane.b32.xlu0 %v449, 64
  %v453 = vpop.permute.xlu0 %452
  %v455 = vmul.f32 %v450, %v453
  %v456 = vmul.f32 %v442, %v350
  %v457 = vadd.f32 %v455, %v456
  %s458 = scalar_lea.vmem [#allocation2], 8
  %v459 = vld [vmem:[%s458] sm:$0xf]
  %v462 = vunpack.c.l.s4 1983009808
  %v463 = vunpack.c.0.s8 %v462
  %v464 = vlaneseq
  %v465 = vshrl.u32 %v464, 7
  %v466 = vsub.s32 %v463, %v465
  %v467 = vrot.slane %v457, %v466
  %468 = vrot.lane.b32.xlu0 %v467, 64
  %v469 = vpop.permute.xlu0 %468
  %v470 = vsel %vm254, %v469, 0
  %472 = vmatprep.subr.mxu0 %v25
  %473 = vmatpush1.msra.mxu0 %v24
  %474 = vmatprep.subr.mxu0 %v27
  %475 = vmatpush1.msra.mxu0 %v26
  %476 = vmatprep.subr.mxu0 %v29
  %477 = vmatpush1.msra.mxu0 %v28
  %478 = vmatprep.subr.mxu0 %v31
  %479 = vmatpush1.msra.mxu0 %v30
  %480 = vmatprep.subr.mxu0 %v33
  %481 = vmatpush1.msra.mxu0 %v32
  %482 = vmatprep.subr.mxu0 %v35
  %483 = vmatpush1.msra.mxu0 %v34
  %484 = vmatprep.subr.mxu0 %v37
  %485 = vmatpush1.msra.mxu0 %v36
  %486 = vmatprep.subr.mxu0 %v39
  %487 = vmatpush1.msra.mxu0 %v38
  %488 = vmatprep.subr.mxu0 0.0
  %489 = vmatpush1.msra.mxu0 0.0
  %490 = vmatprep.subr.mxu0 0.0
  %491 = vmatpush1.msra.mxu0 0.0
  %492 = vmatprep.subr.mxu0 0.0
  %493 = vmatpush1.msra.mxu0 0.0
  %494 = vmatprep.subr.mxu0 0.0
  %495 = vmatpush1.msra.mxu0 0.0
  %496 = vmatprep.subr.mxu0 0.0
  %497 = vmatpush1.msra.mxu0 0.0
  %498 = vmatprep.subr.mxu0 0.0
  %499 = vmatpush1.msra.mxu0 0.0
  %500 = vmatprep.subr.mxu0 0.0
  %501 = vmatpush1.msra.mxu0 0.0
  %502 = vmatprep.subr.mxu0 0.0
  %503 = vmatpush1.msra.mxu0 0.0
  %504 = vmatprep.subr.mxu0 0.0
  %505 = vmatpush1.msra.mxu0 0.0
  %506 = vmatprep.subr.mxu0 0.0
  %507 = vmatpush1.msra.mxu0 0.0
  %508 = vmatprep.subr.mxu0 0.0
  %509 = vmatpush1.msra.mxu0 0.0
  %510 = vmatprep.subr.mxu0 0.0
  %511 = vmatpush1.msra.mxu0 0.0
  %512 = vmatprep.subr.mxu0 0.0
  %513 = vmatpush1.msra.mxu0 0.0
  %514 = vmatprep.subr.mxu0 0.0
  %515 = vmatpush1.msra.mxu0 0.0
  %516 = vmatprep.subr.mxu0 0.0
  %517 = vmatpush1.msra.mxu0 0.0
  %518 = vmatprep.subr.mxu0 0.0
  %519 = vmatpush1.msra.mxu0 0.0
  %520 = vmatprep.subr.mxu0 0.0
  %521 = vmatpush1.msra.mxu0 0.0
  %522 = vmatprep.subr.mxu0 0.0
  %523 = vmatpush1.msra.mxu0 0.0
  %524 = vmatprep.subr.mxu0 0.0
  %525 = vmatpush1.msra.mxu0 0.0
  %526 = vmatprep.subr.mxu0 0.0
  %527 = vmatpush1.msra.mxu0 0.0
  %528 = vmatprep.subr.mxu0 0.0
  %529 = vmatpush1.msra.mxu0 0.0
  %530 = vmatprep.subr.mxu0 0.0
  %531 = vmatpush1.msra.mxu0 0.0
  %532 = vmatprep.subr.mxu0 0.0
  %533 = vmatpush1.msra.mxu0 0.0
  %534 = vmatprep.subr.mxu0 0.0
  %535 = vmatpush1.msra.mxu0 0.0
  %536 = vmatprep.mubr.f32.mxu0 0.0
  %537 = vmatmul.mubr.f32.gmra.mrb[0].mxu0 %v470
  %v538 = vpop.f32.mrb[0].mxu0
  %v539 = vadd.f32 0.0, %v538
  %v540 = vpop.f32.mrb[0].mxu0
  %v541 = vadd.f32 0.0, %v540
  %542 = vdwg.mxu0
  %v543 = vadd.f32 %v459, %v539
  %v544 = vxor.u32 %v543, 2147483648
  %v545 = vmul.f32 %v544, 1.442695
  %v546 = vpow.pop %v545
  %v547 = vadd.f32 %v546, 1.0
  %v548 = vrcp.pop %v547
  %v549 = vmul.f32 1.0, %v548
  %v550 = vadd.f32 %v541, %v42
  %v551 = vmul.f32 %v549, %v550
  %v553 = vrot.slane %v459, 2
  %v555 = vadd.f32 %v553, %v551
  %v556 = vtanh.pop %v555
  %v557 = vsub.f32 1.0, %v549
  %559 = vrot.lane.b32.xlu0 %v556, 64
  %v560 = vpop.permute.xlu0 %559
  %v562 = vmul.f32 %v557, %v560
  %v563 = vmul.f32 %v549, %v457
  %v564 = vadd.f32 %v562, %v563
  %s565 = scalar_lea.vmem [#allocation2], 12
  %v566 = vld [vmem:[%s565] sm:$0xf]
  %v569 = vunpack.c.l.s4 1983009808
  %v570 = vunpack.c.0.s8 %v569
  %v571 = vlaneseq
  %v572 = vshrl.u32 %v571, 7
  %v573 = vsub.s32 %v570, %v572
  %v574 = vrot.slane %v564, %v573
  %575 = vrot.lane.b32.xlu0 %v574, 64
  %v576 = vpop.permute.xlu0 %575
  %v577 = vsel %vm254, %v576, 0
  %579 = vmatprep.subr.mxu0 %v25
  %580 = vmatpush1.msra.mxu0 %v24
  %581 = vmatprep.subr.mxu0 %v27
  %582 = vmatpush1.msra.mxu0 %v26
  %583 = vmatprep.subr.mxu0 %v29
  %584 = vmatpush1.msra.mxu0 %v28
  %585 = vmatprep.subr.mxu0 %v31
  %586 = vmatpush1.msra.mxu0 %v30
  %587 = vmatprep.subr.mxu0 %v33
  %588 = vmatpush1.msra.mxu0 %v32
  %589 = vmatprep.subr.mxu0 %v35
  %590 = vmatpush1.msra.mxu0 %v34
  %591 = vmatprep.subr.mxu0 %v37
  %592 = vmatpush1.msra.mxu0 %v36
  %593 = vmatprep.subr.mxu0 %v39
  %594 = vmatpush1.msra.mxu0 %v38
  %595 = vmatprep.subr.mxu0 0.0
  %596 = vmatpush1.msra.mxu0 0.0
  %597 = vmatprep.subr.mxu0 0.0
  %598 = vmatpush1.msra.mxu0 0.0
  %599 = vmatprep.subr.mxu0 0.0
  %600 = vmatpush1.msra.mxu0 0.0
  %601 = vmatprep.subr.mxu0 0.0
  %602 = vmatpush1.msra.mxu0 0.0
  %603 = vmatprep.subr.mxu0 0.0
  %604 = vmatpush1.msra.mxu0 0.0
  %605 = vmatprep.subr.mxu0 0.0
  %606 = vmatpush1.msra.mxu0 0.0
  %607 = vmatprep.subr.mxu0 0.0
  %608 = vmatpush1.msra.mxu0 0.0
  %609 = vmatprep.subr.mxu0 0.0
  %610 = vmatpush1.msra.mxu0 0.0
  %611 = vmatprep.subr.mxu0 0.0
  %612 = vmatpush1.msra.mxu0 0.0
  %613 = vmatprep.subr.mxu0 0.0
  %614 = vmatpush1.msra.mxu0 0.0
  %615 = vmatprep.subr.mxu0 0.0
  %616 = vmatpush1.msra.mxu0 0.0
  %617 = vmatprep.subr.mxu0 0.0
  %618 = vmatpush1.msra.mxu0 0.0
  %619 = vmatprep.subr.mxu0 0.0
  %620 = vmatpush1.msra.mxu0 0.0
  %621 = vmatprep.subr.mxu0 0.0
  %622 = vmatpush1.msra.mxu0 0.0
  %623 = vmatprep.subr.mxu0 0.0
  %624 = vmatpush1.msra.mxu0 0.0
  %625 = vmatprep.subr.mxu0 0.0
  %626 = vmatpush1.msra.mxu0 0.0
  %627 = vmatprep.subr.mxu0 0.0
  %628 = vmatpush1.msra.mxu0 0.0
  %629 = vmatprep.subr.mxu0 0.0
  %630 = vmatpush1.msra.mxu0 0.0
  %631 = vmatprep.subr.mxu0 0.0
  %632 = vmatpush1.msra.mxu0 0.0
  %633 = vmatprep.subr.mxu0 0.0
  %634 = vmatpush1.msra.mxu0 0.0
  %635 = vmatprep.subr.mxu0 0.0
  %636 = vmatpush1.msra.mxu0 0.0
  %637 = vmatprep.subr.mxu0 0.0
  %638 = vmatpush1.msra.mxu0 0.0
  %639 = vmatprep.subr.mxu0 0.0
  %640 = vmatpush1.msra.mxu0 0.0
  %641 = vmatprep.subr.mxu0 0.0
  %642 = vmatpush1.msra.mxu0 0.0
  %643 = vmatprep.mubr.f32.mxu0 0.0
  %644 = vmatmul.mubr.f32.gmra.mrb[0].mxu0 %v577
  %v645 = vpop.f32.mrb[0].mxu0
  %v646 = vadd.f32 0.0, %v645
  %v647 = vpop.f32.mrb[0].mxu0
  %v648 = vadd.f32 0.0, %v647
  %649 = vdwg.mxu0
  %v650 = vadd.f32 %v566, %v646
  %v651 = vxor.u32 %v650, 2147483648
  %v652 = vmul.f32 %v651, 1.442695
  %v653 = vpow.pop %v652
  %v654 = vadd.f32 %v653, 1.0
  %v655 = vrcp.pop %v654
  %v656 = vmul.f32 1.0, %v655
  %v657 = vadd.f32 %v648, %v42
  %v658 = vmul.f32 %v656, %v657
  %v660 = vrot.slane %v566, 2
  %v662 = vadd.f32 %v660, %v658
  %v663 = vtanh.pop %v662
  %v664 = vsub.f32 1.0, %v656
  %666 = vrot.lane.b32.xlu0 %v663, 64
  %v667 = vpop.permute.xlu0 %666
  %v669 = vmul.f32 %v664, %v667
  %v670 = vmul.f32 %v656, %v564
  %v671 = vadd.f32 %v669, %v670
  %s672 = scalar_lea.vmem [#allocation2], 16
  %v673 = vld [vmem:[%s672] sm:$0xf]
  %v676 = vunpack.c.l.s4 1983009808
  %v677 = vunpack.c.0.s8 %v676
  %v678 = vlaneseq
  %v679 = vshrl.u32 %v678, 7
  %v680 = vsub.s32 %v677, %v679
  %v681 = vrot.slane %v671, %v680
  %682 = vrot.lane.b32.xlu0 %v681, 64
  %v683 = vpop.permute.xlu0 %682
  %v684 = vsel %vm254, %v683, 0
  %686 = vmatprep.subr.mxu0 %v25
  %687 = vmatpush1.msra.mxu0 %v24
  %688 = vmatprep.subr.mxu0 %v27
  %689 = vmatpush1.msra.mxu0 %v26
  %690 = vmatprep.subr.mxu0 %v29
  %691 = vmatpush1.msra.mxu0 %v28
  %692 = vmatprep.subr.mxu0 %v31
  %693 = vmatpush1.msra.mxu0 %v30
  %694 = vmatprep.subr.mxu0 %v33
  %695 = vmatpush1.msra.mxu0 %v32
  %696 = vmatprep.subr.mxu0 %v35
  %697 = vmatpush1.msra.mxu0 %v34
  %698 = vmatprep.subr.mxu0 %v37
  %699 = vmatpush1.msra.mxu0 %v36
  %700 = vmatprep.subr.mxu0 %v39
  %701 = vmatpush1.msra.mxu0 %v38
  %702 = vmatprep.subr.mxu0 0.0
  %703 = vmatpush1.msra.mxu0 0.0
  %704 = vmatprep.subr.mxu0 0.0
  %705 = vmatpush1.msra.mxu0 0.0
  %706 = vmatprep.subr.mxu0 0.0
  %707 = vmatpush1.msra.mxu0 0.0
  %708 = vmatprep.subr.mxu0 0.0
  %709 = vmatpush1.msra.mxu0 0.0
  %710 = vmatprep.subr.mxu0 0.0
  %711 = vmatpush1.msra.mxu0 0.0
  %712 = vmatprep.subr.mxu0 0.0
  %713 = vmatpush1.msra.mxu0 0.0
  %714 = vmatprep.subr.mxu0 0.0
  %715 = vmatpush1.msra.mxu0 0.0
  %716 = vmatprep.subr.mxu0 0.0
  %717 = vmatpush1.msra.mxu0 0.0
  %718 = vmatprep.subr.mxu0 0.0
  %719 = vmatpush1.msra.mxu0 0.0
  %720 = vmatprep.subr.mxu0 0.0
  %721 = vmatpush1.msra.mxu0 0.0
  %722 = vmatprep.subr.mxu0 0.0
  %723 = vmatpush1.msra.mxu0 0.0
  %724 = vmatprep.subr.mxu0 0.0
  %725 = vmatpush1.msra.mxu0 0.0
  %726 = vmatprep.subr.mxu0 0.0
  %727 = vmatpush1.msra.mxu0 0.0
  %728 = vmatprep.subr.mxu0 0.0
  %729 = vmatpush1.msra.mxu0 0.0
  %730 = vmatprep.subr.mxu0 0.0
  %731 = vmatpush1.msra.mxu0 0.0
  %732 = vmatprep.subr.mxu0 0.0
  %733 = vmatpush1.msra.mxu0 0.0
  %734 = vmatprep.subr.mxu0 0.0
  %735 = vmatpush1.msra.mxu0 0.0
  %736 = vmatprep.subr.mxu0 0.0
  %737 = vmatpush1.msra.mxu0 0.0
  %738 = vmatprep.subr.mxu0 0.0
  %739 = vmatpush1.msra.mxu0 0.0
  %740 = vmatprep.subr.mxu0 0.0
  %741 = vmatpush1.msra.mxu0 0.0
  %742 = vmatprep.subr.mxu0 0.0
  %743 = vmatpush1.msra.mxu0 0.0
  %744 = vmatprep.subr.mxu0 0.0
  %745 = vmatpush1.msra.mxu0 0.0
  %746 = vmatprep.subr.mxu0 0.0
  %747 = vmatpush1.msra.mxu0 0.0
  %748 = vmatprep.subr.mxu0 0.0
  %749 = vmatpush1.msra.mxu0 0.0
  %750 = vmatprep.mubr.f32.mxu0 0.0
  %751 = vmatmul.mubr.f32.gmra.mrb[0].mxu0 %v684
  %v752 = vpop.f32.mrb[0].mxu0
  %v753 = vadd.f32 0.0, %v752
  %v754 = vpop.f32.mrb[0].mxu0
  %v755 = vadd.f32 0.0, %v754
  %756 = vdwg.mxu0
  %v757 = vadd.f32 %v673, %v753
  %v758 = vxor.u32 %v757, 2147483648
  %v759 = vmul.f32 %v758, 1.442695
  %v760 = vpow.pop %v759
  %v761 = vadd.f32 %v760, 1.0
  %v762 = vrcp.pop %v761
  %v763 = vmul.f32 1.0, %v762
  %v764 = vadd.f32 %v755, %v42
  %v765 = vmul.f32 %v763, %v764
  %v767 = vrot.slane %v673, 2
  %v769 = vadd.f32 %v767, %v765
  %v770 = vtanh.pop %v769
  %v771 = vsub.f32 1.0, %v763
  %773 = vrot.lane.b32.xlu0 %v770, 64
  %v774 = vpop.permute.xlu0 %773
  %v776 = vmul.f32 %v771, %v774
  %v777 = vmul.f32 %v763, %v671
  %v778 = vadd.f32 %v776, %v777
  %s779 = scalar_lea.vmem [#allocation2], 20
  %v780 = vld [vmem:[%s779] sm:$0xf]
  %v783 = vunpack.c.l.s4 1983009808
  %v784 = vunpack.c.0.s8 %v783
  %v785 = vlaneseq
  %v786 = vshrl.u32 %v785, 7
  %v787 = vsub.s32 %v784, %v786
  %v788 = vrot.slane %v778, %v787
  %789 = vrot.lane.b32.xlu0 %v788, 64
  %v790 = vpop.permute.xlu0 %789
  %v791 = vsel %vm254, %v790, 0
  %793 = vmatprep.subr.mxu0 %v25
  %794 = vmatpush1.msra.mxu0 %v24
  %795 = vmatprep.subr.mxu0 %v27
  %796 = vmatpush1.msra.mxu0 %v26
  %797 = vmatprep.subr.mxu0 %v29
  %798 = vmatpush1.msra.mxu0 %v28
  %799 = vmatprep.subr.mxu0 %v31
  %800 = vmatpush1.msra.mxu0 %v30
  %801 = vmatprep.subr.mxu0 %v33
  %802 = vmatpush1.msra.mxu0 %v32
  %803 = vmatprep.subr.mxu0 %v35
  %804 = vmatpush1.msra.mxu0 %v34
  %805 = vmatprep.subr.mxu0 %v37
  %806 = vmatpush1.msra.mxu0 %v36
  %807 = vmatprep.subr.mxu0 %v39
  %808 = vmatpush1.msra.mxu0 %v38
  %809 = vmatprep.subr.mxu0 0.0
  %810 = vmatpush1.msra.mxu0 0.0
  %811 = vmatprep.subr.mxu0 0.0
  %812 = vmatpush1.msra.mxu0 0.0
  %813 = vmatprep.subr.mxu0 0.0
  %814 = vmatpush1.msra.mxu0 0.0
  %815 = vmatprep.subr.mxu0 0.0
  %816 = vmatpush1.msra.mxu0 0.0
  %817 = vmatprep.subr.mxu0 0.0
  %818 = vmatpush1.msra.mxu0 0.0
  %819 = vmatprep.subr.mxu0 0.0
  %820 = vmatpush1.msra.mxu0 0.0
  %821 = vmatprep.subr.mxu0 0.0
  %822 = vmatpush1.msra.mxu0 0.0
  %823 = vmatprep.subr.mxu0 0.0
  %824 = vmatpush1.msra.mxu0 0.0
  %825 = vmatprep.subr.mxu0 0.0
  %826 = vmatpush1.msra.mxu0 0.0
  %827 = vmatprep.subr.mxu0 0.0
  %828 = vmatpush1.msra.mxu0 0.0
  %829 = vmatprep.subr.mxu0 0.0
  %830 = vmatpush1.msra.mxu0 0.0
  %831 = vmatprep.subr.mxu0 0.0
  %832 = vmatpush1.msra.mxu0 0.0
  %833 = vmatprep.subr.mxu0 0.0
  %834 = vmatpush1.msra.mxu0 0.0
  %835 = vmatprep.subr.mxu0 0.0
  %836 = vmatpush1.msra.mxu0 0.0
  %837 = vmatprep.subr.mxu0 0.0
  %838 = vmatpush1.msra.mxu0 0.0
  %839 = vmatprep.subr.mxu0 0.0
  %840 = vmatpush1.msra.mxu0 0.0
  %841 = vmatprep.subr.mxu0 0.0
  %842 = vmatpush1.msra.mxu0 0.0
  %843 = vmatprep.subr.mxu0 0.0
  %844 = vmatpush1.msra.mxu0 0.0
  %845 = vmatprep.subr.mxu0 0.0
  %846 = vmatpush1.msra.mxu0 0.0
  %847 = vmatprep.subr.mxu0 0.0
  %848 = vmatpush1.msra.mxu0 0.0
  %849 = vmatprep.subr.mxu0 0.0
  %850 = vmatpush1.msra.mxu0 0.0
  %851 = vmatprep.subr.mxu0 0.0
  %852 = vmatpush1.msra.mxu0 0.0
  %853 = vmatprep.subr.mxu0 0.0
  %854 = vmatpush1.msra.mxu0 0.0
  %855 = vmatprep.subr.mxu0 0.0
  %856 = vmatpush1.msra.mxu0 0.0
  %857 = vmatprep.mubr.f32.mxu0 0.0
  %858 = vmatmul.mubr.f32.gmra.mrb[0].mxu0 %v791
  %v859 = vpop.f32.mrb[0].mxu0
  %v860 = vadd.f32 0.0, %v859
  %v861 = vpop.f32.mrb[0].mxu0
  %v862 = vadd.f32 0.0, %v861
  %863 = vdwg.mxu0
  %v864 = vadd.f32 %v780, %v860
  %v865 = vxor.u32 %v864, 2147483648
  %v866 = vmul.f32 %v865, 1.442695
  %v867 = vpow.pop %v866
  %v868 = vadd.f32 %v867, 1.0
  %v869 = vrcp.pop %v868
  %v870 = vmul.f32 1.0, %v869
  %v871 = vadd.f32 %v862, %v42
  %v872 = vmul.f32 %v870, %v871
  %v874 = vrot.slane %v780, 2
  %v876 = vadd.f32 %v874, %v872
  %v877 = vtanh.pop %v876
  %v878 = vsub.f32 1.0, %v870
  %880 = vrot.lane.b32.xlu0 %v877, 64
  %v881 = vpop.permute.xlu0 %880
  %v883 = vmul.f32 %v878, %v881
  %v884 = vmul.f32 %v870, %v778
  %v885 = vadd.f32 %v883, %v884
  %s886 = scalar_lea.vmem [#allocation2], 24
  %v887 = vld [vmem:[%s886] sm:$0xf]
  %v890 = vunpack.c.l.s4 1983009808
  %v891 = vunpack.c.0.s8 %v890
  %v892 = vlaneseq
  %v893 = vshrl.u32 %v892, 7
  %v894 = vsub.s32 %v891, %v893
  %v895 = vrot.slane %v885, %v894
  %896 = vrot.lane.b32.xlu0 %v895, 64
  %v897 = vpop.permute.xlu0 %896
  %v898 = vsel %vm254, %v897, 0
  %900 = vmatprep.subr.mxu0 %v25
  %901 = vmatpush1.msra.mxu0 %v24
  %902 = vmatprep.subr.mxu0 %v27
  %903 = vmatpush1.msra.mxu0 %v26
  %904 = vmatprep.subr.mxu0 %v29
  %905 = vmatpush1.msra.mxu0 %v28
  %906 = vmatprep.subr.mxu0 %v31
  %907 = vmatpush1.msra.mxu0 %v30
  %908 = vmatprep.subr.mxu0 %v33
  %909 = vmatpush1.msra.mxu0 %v32
  %910 = vmatprep.subr.mxu0 %v35
  %911 = vmatpush1.msra.mxu0 %v34
  %912 = vmatprep.subr.mxu0 %v37
  %913 = vmatpush1.msra.mxu0 %v36
  %914 = vmatprep.subr.mxu0 %v39
  %915 = vmatpush1.msra.mxu0 %v38
  %916 = vmatprep.subr.mxu0 0.0
  %917 = vmatpush1.msra.mxu0 0.0
  %918 = vmatprep.subr.mxu0 0.0
  %919 = vmatpush1.msra.mxu0 0.0
  %920 = vmatprep.subr.mxu0 0.0
  %921 = vmatpush1.msra.mxu0 0.0
  %922 = vmatprep.subr.mxu0 0.0
  %923 = vmatpush1.msra.mxu0 0.0
  %924 = vmatprep.subr.mxu0 0.0
  %925 = vmatpush1.msra.mxu0 0.0
  %926 = vmatprep.subr.mxu0 0.0
  %927 = vmatpush1.msra.mxu0 0.0
  %928 = vmatprep.subr.mxu0 0.0
  %929 = vmatpush1.msra.mxu0 0.0
  %930 = vmatprep.subr.mxu0 0.0
  %931 = vmatpush1.msra.mxu0 0.0
  %932 = vmatprep.subr.mxu0 0.0
  %933 = vmatpush1.msra.mxu0 0.0
  %934 = vmatprep.subr.mxu0 0.0
  %935 = vmatpush1.msra.mxu0 0.0
  %936 = vmatprep.subr.mxu0 0.0
  %937 = vmatpush1.msra.mxu0 0.0
  %938 = vmatprep.subr.mxu0 0.0
  %939 = vmatpush1.msra.mxu0 0.0
  %940 = vmatprep.subr.mxu0 0.0
  %941 = vmatpush1.msra.mxu0 0.0
  %942 = vmatprep.subr.mxu0 0.0
  %943 = vmatpush1.msra.mxu0 0.0
  %944 = vmatprep.subr.mxu0 0.0
  %945 = vmatpush1.msra.mxu0 0.0
  %946 = vmatprep.subr.mxu0 0.0
  %947 = vmatpush1.msra.mxu0 0.0
  %948 = vmatprep.subr.mxu0 0.0
  %949 = vmatpush1.msra.mxu0 0.0
  %950 = vmatprep.subr.mxu0 0.0
  %951 = vmatpush1.msra.mxu0 0.0
  %952 = vmatprep.subr.mxu0 0.0
  %953 = vmatpush1.msra.mxu0 0.0
  %954 = vmatprep.subr.mxu0 0.0
  %955 = vmatpush1.msra.mxu0 0.0
  %956 = vmatprep.subr.mxu0 0.0
  %957 = vmatpush1.msra.mxu0 0.0
  %958 = vmatprep.subr.mxu0 0.0
  %959 = vmatpush1.msra.mxu0 0.0
  %960 = vmatprep.subr.mxu0 0.0
  %961 = vmatpush1.msra.mxu0 0.0
  %962 = vmatprep.subr.mxu0 0.0
  %963 = vmatpush1.msra.mxu0 0.0
  %964 = vmatprep.mubr.f32.mxu0 0.0
  %965 = vmatmul.mubr.f32.gmra.mrb[0].mxu0 %v898
  %v966 = vpop.f32.mrb[0].mxu0
  %v967 = vadd.f32 0.0, %v966
  %v968 = vpop.f32.mrb[0].mxu0
  %v969 = vadd.f32 0.0, %v968
  %970 = vdwg.mxu0
  %v971 = vadd.f32 %v887, %v967
  %v972 = vxor.u32 %v971, 2147483648
  %v973 = vmul.f32 %v972, 1.442695
  %v974 = vpow.pop %v973
  %v975 = vadd.f32 %v974, 1.0
  %v976 = vrcp.pop %v975
  %v977 = vmul.f32 1.0, %v976
  %v978 = vadd.f32 %v969, %v42
  %v979 = vmul.f32 %v977, %v978
  %v981 = vrot.slane %v887, 2
  %v983 = vadd.f32 %v981, %v979
  %v984 = vtanh.pop %v983
  %v985 = vsub.f32 1.0, %v977
  %987 = vrot.lane.b32.xlu0 %v984, 64
  %v988 = vpop.permute.xlu0 %987
  %v990 = vmul.f32 %v985, %v988
  %v991 = vmul.f32 %v977, %v885
  %v992 = vadd.f32 %v990, %v991
  %s993 = scalar_lea.vmem [#allocation2], 28
  %v994 = vld [vmem:[%s993] sm:$0xf]
  %v997 = vunpack.c.l.s4 1983009808
  %v998 = vunpack.c.0.s8 %v997
  %v999 = vlaneseq
  %v1000 = vshrl.u32 %v999, 7
  %v1001 = vsub.s32 %v998, %v1000
  %v1002 = vrot.slane %v992, %v1001
  %1003 = vrot.lane.b32.xlu0 %v1002, 64
  %v1004 = vpop.permute.xlu0 %1003
  %v1005 = vsel %vm254, %v1004, 0
  %1007 = vmatprep.subr.mxu0 %v25
  %1008 = vmatpush1.msra.mxu0 %v24
  %1009 = vmatprep.subr.mxu0 %v27
  %1010 = vmatpush1.msra.mxu0 %v26
  %1011 = vmatprep.subr.mxu0 %v29
  %1012 = vmatpush1.msra.mxu0 %v28
  %1013 = vmatprep.subr.mxu0 %v31
  %1014 = vmatpush1.msra.mxu0 %v30
  %1015 = vmatprep.subr.mxu0 %v33
  %1016 = vmatpush1.msra.mxu0 %v32
  %1017 = vmatprep.subr.mxu0 %v35
  %1018 = vmatpush1.msra.mxu0 %v34
  %1019 = vmatprep.subr.mxu0 %v37
  %1020 = vmatpush1.msra.mxu0 %v36
  %1021 = vmatprep.subr.mxu0 %v39
  %1022 = vmatpush1.msra.mxu0 %v38
  %1023 = vmatprep.subr.mxu0 0.0
  %1024 = vmatpush1.msra.mxu0 0.0
  %1025 = vmatprep.subr.mxu0 0.0
  %1026 = vmatpush1.msra.mxu0 0.0
  %1027 = vmatprep.subr.mxu0 0.0
  %1028 = vmatpush1.msra.mxu0 0.0
  %1029 = vmatprep.subr.mxu0 0.0
  %1030 = vmatpush1.msra.mxu0 0.0
  %1031 = vmatprep.subr.mxu0 0.0
  %1032 = vmatpush1.msra.mxu0 0.0
  %1033 = vmatprep.subr.mxu0 0.0
  %1034 = vmatpush1.msra.mxu0 0.0
  %1035 = vmatprep.subr.mxu0 0.0
  %1036 = vmatpush1.msra.mxu0 0.0
  %1037 = vmatprep.subr.mxu0 0.0
  %1038 = vmatpush1.msra.mxu0 0.0
  %1039 = vmatprep.subr.mxu0 0.0
  %1040 = vmatpush1.msra.mxu0 0.0
  %1041 = vmatprep.subr.mxu0 0.0
  %1042 = vmatpush1.msra.mxu0 0.0
  %1043 = vmatprep.subr.mxu0 0.0
  %1044 = vmatpush1.msra.mxu0 0.0
  %1045 = vmatprep.subr.mxu0 0.0
  %1046 = vmatpush1.msra.mxu0 0.0
  %1047 = vmatprep.subr.mxu0 0.0
  %1048 = vmatpush1.msra.mxu0 0.0
  %1049 = vmatprep.subr.mxu0 0.0
  %1050 = vmatpush1.msra.mxu0 0.0
  %1051 = vmatprep.subr.mxu0 0.0
  %1052 = vmatpush1.msra.mxu0 0.0
  %1053 = vmatprep.subr.mxu0 0.0
  %1054 = vmatpush1.msra.mxu0 0.0
  %1055 = vmatprep.subr.mxu0 0.0
  %1056 = vmatpush1.msra.mxu0 0.0
  %1057 = vmatprep.subr.mxu0 0.0
  %1058 = vmatpush1.msra.mxu0 0.0
  %1059 = vmatprep.subr.mxu0 0.0
  %1060 = vmatpush1.msra.mxu0 0.0
  %1061 = vmatprep.subr.mxu0 0.0
  %1062 = vmatpush1.msra.mxu0 0.0
  %1063 = vmatprep.subr.mxu0 0.0
  %1064 = vmatpush1.msra.mxu0 0.0
  %1065 = vmatprep.subr.mxu0 0.0
  %1066 = vmatpush1.msra.mxu0 0.0
  %1067 = vmatprep.subr.mxu0 0.0
  %1068 = vmatpush1.msra.mxu0 0.0
  %1069 = vmatprep.subr.mxu0 0.0
  %1070 = vmatpush1.msra.mxu0 0.0
  %1071 = vmatprep.mubr.f32.mxu0 0.0
  %1072 = vmatmul.mubr.f32.gmra.mrb[0].mxu0 %v1005
  %v1073 = vpop.f32.mrb[0].mxu0
  %v1074 = vadd.f32 0.0, %v1073
  %v1075 = vpop.f32.mrb[0].mxu0
  %v1076 = vadd.f32 0.0, %v1075
  %1077 = vdwg.mxu0
  %v1078 = vadd.f32 %v994, %v1074
  %v1079 = vxor.u32 %v1078, 2147483648
  %v1080 = vmul.f32 %v1079, 1.442695
  %v1081 = vpow.pop %v1080
  %v1082 = vadd.f32 %v1081, 1.0
  %v1083 = vrcp.pop %v1082
  %v1084 = vmul.f32 1.0, %v1083
  %v1085 = vadd.f32 %v1076, %v42
  %v1086 = vmul.f32 %v1084, %v1085
  %v1088 = vrot.slane %v994, 2
  %v1090 = vadd.f32 %v1088, %v1086
  %v1091 = vtanh.pop %v1090
  %v1092 = vsub.f32 1.0, %v1084
  %1094 = vrot.lane.b32.xlu0 %v1091, 64
  %v1095 = vpop.permute.xlu0 %1094
  %v1097 = vmul.f32 %v1092, %v1095
  %v1098 = vmul.f32 %v1084, %v992
  %v1099 = vadd.f32 %v1097, %v1098
  %v1102 = vunpack.c.l.s4 1983009808
  %v1103 = vunpack.c.0.s8 %v1102
  %v1104 = vlaneseq
  %v1105 = vshrl.u32 %v1104, 7
  %v1106 = vsub.s32 %v1103, %v1105
  %v1107 = vrot.slane %v1099, %v1106
  %1108 = vrot.lane.b32.xlu0 %v1107, 64
  %v1109 = vpop.permute.xlu0 %1108
  %v1110 = vsel %vm254, %v1109, 0
  %1112 = vmatprep.subr.mxu0 0.0
  %1113 = vmatpush1.msra.mxu0 %v43
  %1114 = vmatprep.subr.mxu0 0.0
  %1115 = vmatpush1.msra.mxu0 %v44
  %1116 = vmatprep.subr.mxu0 0.0
  %1117 = vmatpush1.msra.mxu0 %v45
  %1118 = vmatprep.subr.mxu0 0.0
  %1119 = vmatpush1.msra.mxu0 %v46
  %1120 = vmatprep.subr.mxu0 0.0
  %1121 = vmatpush1.msra.mxu0 %v47
  %1122 = vmatprep.subr.mxu0 0.0
  %1123 = vmatpush1.msra.mxu0 %v48
  %1124 = vmatprep.subr.mxu0 0.0
  %1125 = vmatpush1.msra.mxu0 %v49
  %1126 = vmatprep.subr.mxu0 0.0
  %1127 = vmatpush1.msra.mxu0 %v50
  %1128 = vmatprep.subr.mxu0 0.0
  %1129 = vmatpush1.msra.mxu0 0.0
  %1130 = vmatprep.subr.mxu0 0.0
  %1131 = vmatpush1.msra.mxu0 0.0
  %1132 = vmatprep.subr.mxu0 0.0
  %1133 = vmatpush1.msra.mxu0 0.0
  %1134 = vmatprep.subr.mxu0 0.0
  %1135 = vmatpush1.msra.mxu0 0.0
  %1136 = vmatprep.subr.mxu0 0.0
  %1137 = vmatpush1.msra.mxu0 0.0
  %1138 = vmatprep.subr.mxu0 0.0
  %1139 = vmatpush1.msra.mxu0 0.0
  %1140 = vmatprep.subr.mxu0 0.0
  %1141 = vmatpush1.msra.mxu0 0.0
  %1142 = vmatprep.subr.mxu0 0.0
  %1143 = vmatpush1.msra.mxu0 0.0
  %1144 = vmatprep.subr.mxu0 0.0
  %1145 = vmatpush1.msra.mxu0 0.0
  %1146 = vmatprep.subr.mxu0 0.0
  %1147 = vmatpush1.msra.mxu0 0.0
  %1148 = vmatprep.subr.mxu0 0.0
  %1149 = vmatpush1.msra.mxu0 0.0
  %1150 = vmatprep.subr.mxu0 0.0
  %1151 = vmatpush1.msra.mxu0 0.0
  %1152 = vmatprep.subr.mxu0 0.0
  %1153 = vmatpush1.msra.mxu0 0.0
  %1154 = vmatprep.subr.mxu0 0.0
  %1155 = vmatpush1.msra.mxu0 0.0
  %1156 = vmatprep.subr.mxu0 0.0
  %1157 = vmatpush1.msra.mxu0 0.0
  %1158 = vmatprep.subr.mxu0 0.0
  %1159 = vmatpush1.msra.mxu0 0.0
  %1160 = vmatprep.subr.mxu0 0.0
  %1161 = vmatpush1.msra.mxu0 0.0
  %1162 = vmatprep.subr.mxu0 0.0
  %1163 = vmatpush1.msra.mxu0 0.0
  %1164 = vmatprep.subr.mxu0 0.0
  %1165 = vmatpush1.msra.mxu0 0.0
  %1166 = vmatprep.subr.mxu0 0.0
  %1167 = vmatpush1.msra.mxu0 0.0
  %1168 = vmatprep.subr.mxu0 0.0
  %1169 = vmatpush1.msra.mxu0 0.0
  %1170 = vmatprep.subr.mxu0 0.0
  %1171 = vmatpush1.msra.mxu0 0.0
  %1172 = vmatprep.subr.mxu0 0.0
  %1173 = vmatpush1.msra.mxu0 0.0
  %1174 = vmatprep.subr.mxu0 0.0
  %1175 = vmatpush1.msra.mxu0 0.0
  %1176 = vmatprep.mubr.f32.mxu0 0.0
  %1177 = vmatmul.mubr.f32.gmra.mrb[0].mxu0 %v1110
  %v1178 = vpop.f32.mrb[0].mxu0
  %v1179 = vadd.f32 %v51, %v1178
  %v1180 = vpop.f32.mrb[0].mxu0
  %1181 = vdwg.mxu0
  %vm1182 = vcmask 254976
  %1183 = vst.msk [vmem:[%s6] sm:$0x3] %vm1182, %v1179
  %v1184 = vmul.f32 %v1179, 0.5
  %v1185 = vmul.f32 %v1184, 1.442695
  %v1186 = vpow.pop %v1185
  %v1187 = vld [vmem:[%s1] sm:$0x3]
  %1189 = vrot.lane.b32.xlu0 %v1187, 16
  %v1190 = vpop.permute.xlu0 %1189
  %v1192 = vmul.f32 %v1186, %v1190
  %1194 = vrot.lane.b32.xlu0 %v1192, 112
  %v1195 = vpop.permute.xlu0 %1194
  %v1197 = vadd.f32 %v1179, %v1195
  %vm1198 = vcmask 130048
  %v1200 = vsel %vm1198, %v1197, 0
  %1202 = vmatprep.subr.mxu0 0.0
  %1203 = vmatpush1.msra.mxu0 %v56
  %1204 = vmatprep.subr.mxu0 0.0
  %1205 = vmatpush1.msra.mxu0 %v57
  %1206 = vmatprep.subr.mxu0 0.0
  %1207 = vmatpush1.msra.mxu0 0.0
  %1208 = vmatprep.subr.mxu0 0.0
  %1209 = vmatpush1.msra.mxu0 0.0
  %1210 = vmatprep.subr.mxu0 0.0
  %1211 = vmatpush1.msra.mxu0 0.0
  %1212 = vmatprep.subr.mxu0 0.0
  %1213 = vmatpush1.msra.mxu0 0.0
  %1214 = vmatprep.subr.mxu0 0.0
  %1215 = vmatpush1.msra.mxu0 0.0
  %1216 = vmatprep.subr.mxu0 0.0
  %1217 = vmatpush1.msra.mxu0 0.0
  %1218 = vmatprep.subr.mxu0 0.0
  %1219 = vmatpush1.msra.mxu0 0.0
  %1220 = vmatprep.subr.mxu0 0.0
  %1221 = vmatpush1.msra.mxu0 0.0
  %1222 = vmatprep.subr.mxu0 0.0
  %1223 = vmatpush1.msra.mxu0 0.0
  %1224 = vmatprep.subr.mxu0 0.0
  %1225 = vmatpush1.msra.mxu0 0.0
  %1226 = vmatprep.subr.mxu0 0.0
  %1227 = vmatpush1.msra.mxu0 0.0
  %1228 = vmatprep.subr.mxu0 0.0
  %1229 = vmatpush1.msra.mxu0 0.0
  %1230 = vmatprep.subr.mxu0 0.0
  %1231 = vmatpush1.msra.mxu0 0.0
  %1232 = vmatprep.subr.mxu0 0.0
  %1233 = vmatpush1.msra.mxu0 0.0
  %1234 = vmatprep.subr.mxu0 0.0
  %1235 = vmatpush1.msra.mxu0 0.0
  %1236 = vmatprep.subr.mxu0 0.0
  %1237 = vmatpush1.msra.mxu0 0.0
  %1238 = vmatprep.subr.mxu0 0.0
  %1239 = vmatpush1.msra.mxu0 0.0
  %1240 = vmatprep.subr.mxu0 0.0
  %1241 = vmatpush1.msra.mxu0 0.0
  %1242 = vmatprep.subr.mxu0 0.0
  %1243 = vmatpush1.msra.mxu0 0.0
  %1244 = vmatprep.subr.mxu0 0.0
  %1245 = vmatpush1.msra.mxu0 0.0
  %1246 = vmatprep.subr.mxu0 0.0
  %1247 = vmatpush1.msra.mxu0 0.0
  %1248 = vmatprep.subr.mxu0 0.0
  %1249 = vmatpush1.msra.mxu0 0.0
  %1250 = vmatprep.subr.mxu0 0.0
  %1251 = vmatpush1.msra.mxu0 0.0
  %1252 = vmatprep.subr.mxu0 0.0
  %1253 = vmatpush1.msra.mxu0 0.0
  %1254 = vmatprep.subr.mxu0 0.0
  %1255 = vmatpush1.msra.mxu0 0.0
  %1256 = vmatprep.subr.mxu0 0.0
  %1257 = vmatpush1.msra.mxu0 0.0
  %1258 = vmatprep.subr.mxu0 0.0
  %1259 = vmatpush1.msra.mxu0 0.0
  %1260 = vmatprep.subr.mxu0 0.0
  %1261 = vmatpush1.msra.mxu0 0.0
  %1262 = vmatprep.subr.mxu0 0.0
  %1263 = vmatpush1.msra.mxu0 0.0
  %1264 = vmatprep.subr.mxu0 0.0
  %1265 = vmatpush1.msra.mxu0 0.0
  %1266 = vmatprep.mubr.f32.mxu0 0.0
  %1267 = vmatmul.mubr.f32.gmra.mrb[0].mxu0 %v1200
  %v1268 = vpop.f32.mrb[0].mxu0
  %v1269 = vadd.f32 0.0, %v1268
  %v1270 = vpop.f32.mrb[0].mxu0
  %1271 = vdwg.mxu0
  %vm1272 = vcmask 261120
  %v1273 = vsel %vm1272, %v1109, 0
  %1275 = vmatprep.subr.mxu0 0.0
  %1276 = vmatpush1.msra.mxu0 %v52
  %1277 = vmatprep.subr.mxu0 0.0
  %1278 = vmatpush1.msra.mxu0 %v53
  %1279 = vmatprep.subr.mxu0 0.0
  %1280 = vmatpush1.msra.mxu0 %v54
  %1281 = vmatprep.subr.mxu0 0.0
  %1282 = vmatpush1.msra.mxu0 %v55
  %1283 = vmatprep.subr.mxu0 0.0
  %1284 = vmatpush1.msra.mxu0 0.0
  %1285 = vmatprep.subr.mxu0 0.0
  %1286 = vmatpush1.msra.mxu0 0.0
  %1287 = vmatprep.subr.mxu0 0.0
  %1288 = vmatpush1.msra.mxu0 0.0
  %1289 = vmatprep.subr.mxu0 0.0
  %1290 = vmatpush1.msra.mxu0 0.0
  %1291 = vmatprep.subr.mxu0 0.0
  %1292 = vmatpush1.msra.mxu0 0.0
  %1293 = vmatprep.subr.mxu0 0.0
  %1294 = vmatpush1.msra.mxu0 0.0
  %1295 = vmatprep.subr.mxu0 0.0
  %1296 = vmatpush1.msra.mxu0 0.0
  %1297 = vmatprep.subr.mxu0 0.0
  %1298 = vmatpush1.msra.mxu0 0.0
  %1299 = vmatprep.subr.mxu0 0.0
  %1300 = vmatpush1.msra.mxu0 0.0
  %1301 = vmatprep.subr.mxu0 0.0
  %1302 = vmatpush1.msra.mxu0 0.0
  %1303 = vmatprep.subr.mxu0 0.0
  %1304 = vmatpush1.msra.mxu0 0.0
  %1305 = vmatprep.subr.mxu0 0.0
  %1306 = vmatpush1.msra.mxu0 0.0
  %1307 = vmatprep.subr.mxu0 0.0
  %1308 = vmatpush1.msra.mxu0 0.0
  %1309 = vmatprep.subr.mxu0 0.0
  %1310 = vmatpush1.msra.mxu0 0.0
  %1311 = vmatprep.subr.mxu0 0.0
  %1312 = vmatpush1.msra.mxu0 0.0
  %1313 = vmatprep.subr.mxu0 0.0
  %1314 = vmatpush1.msra.mxu0 0.0
  %1315 = vmatprep.subr.mxu0 0.0
  %1316 = vmatpush1.msra.mxu0 0.0
  %1317 = vmatprep.subr.mxu0 0.0
  %1318 = vmatpush1.msra.mxu0 0.0
  %1319 = vmatprep.subr.mxu0 0.0
  %1320 = vmatpush1.msra.mxu0 0.0
  %1321 = vmatprep.subr.mxu0 0.0
  %1322 = vmatpush1.msra.mxu0 0.0
  %1323 = vmatprep.subr.mxu0 0.0
  %1324 = vmatpush1.msra.mxu0 0.0
  %1325 = vmatprep.subr.mxu0 0.0
  %1326 = vmatpush1.msra.mxu0 0.0
  %1327 = vmatprep.subr.mxu0 0.0
  %1328 = vmatpush1.msra.mxu0 0.0
  %1329 = vmatprep.subr.mxu0 0.0
  %1330 = vmatpush1.msra.mxu0 0.0
  %1331 = vmatprep.subr.mxu0 0.0
  %1332 = vmatpush1.msra.mxu0 0.0
  %1333 = vmatprep.subr.mxu0 0.0
  %1334 = vmatpush1.msra.mxu0 0.0
  %1335 = vmatprep.subr.mxu0 0.0
  %1336 = vmatpush1.msra.mxu0 0.0
  %1337 = vmatprep.subr.mxu0 0.0
  %1338 = vmatpush1.msra.mxu0 0.0
  %1339 = vmatprep.mubr.f32.mxu0 0.0
  %1340 = vmatmul.mubr.f32.gmra.mrb[0].mxu0 %v1273
  %v1341 = vpop.f32.mrb[0].mxu0
  %v1342 = vadd.f32 %v1269, %v1341
  %v1343 = vpop.f32.mrb[0].mxu0
  %1344 = vdwg.mxu0
  %v1345 = vadd.f32 %v1342, %v58
  %v1346 = vtanh.pop %v1345
  %1348 = vrot.lane.b32.xlu0 %v1346, 96
  %v1349 = vpop.permute.xlu0 %1348
  %v1350 = vsel %vm1198, %v1349, 0
  %1352 = vmatprep.subr.mxu0 0.0
  %1353 = vmatpush1.msra.mxu0 %v59
  %1354 = vmatprep.subr.mxu0 0.0
  %1355 = vmatpush1.msra.mxu0 %v60
  %1356 = vmatprep.subr.mxu0 0.0
  %1357 = vmatpush1.msra.mxu0 0.0
  %1358 = vmatprep.subr.mxu0 0.0
  %1359 = vmatpush1.msra.mxu0 0.0
  %1360 = vmatprep.subr.mxu0 0.0
  %1361 = vmatpush1.msra.mxu0 0.0
  %1362 = vmatprep.subr.mxu0 0.0
  %1363 = vmatpush1.msra.mxu0 0.0
  %1364 = vmatprep.subr.mxu0 0.0
  %1365 = vmatpush1.msra.mxu0 0.0
  %1366 = vmatprep.subr.mxu0 0.0
  %1367 = vmatpush1.msra.mxu0 0.0
  %1368 = vmatprep.subr.mxu0 0.0
  %1369 = vmatpush1.msra.mxu0 0.0
  %1370 = vmatprep.subr.mxu0 0.0
  %1371 = vmatpush1.msra.mxu0 0.0
  %1372 = vmatprep.subr.mxu0 0.0
  %1373 = vmatpush1.msra.mxu0 0.0
  %1374 = vmatprep.subr.mxu0 0.0
  %1375 = vmatpush1.msra.mxu0 0.0
  %1376 = vmatprep.subr.mxu0 0.0
  %1377 = vmatpush1.msra.mxu0 0.0
  %1378 = vmatprep.subr.mxu0 0.0
  %1379 = vmatpush1.msra.mxu0 0.0
  %1380 = vmatprep.subr.mxu0 0.0
  %1381 = vmatpush1.msra.mxu0 0.0
  %1382 = vmatprep.subr.mxu0 0.0
  %1383 = vmatpush1.msra.mxu0 0.0
  %1384 = vmatprep.subr.mxu0 0.0
  %1385 = vmatpush1.msra.mxu0 0.0
  %1386 = vmatprep.subr.mxu0 0.0
  %1387 = vmatpush1.msra.mxu0 0.0
  %1388 = vmatprep.subr.mxu0 0.0
  %1389 = vmatpush1.msra.mxu0 0.0
  %1390 = vmatprep.subr.mxu0 0.0
  %1391 = vmatpush1.msra.mxu0 0.0
  %1392 = vmatprep.subr.mxu0 0.0
  %1393 = vmatpush1.msra.mxu0 0.0
  %1394 = vmatprep.subr.mxu0 0.0
  %1395 = vmatpush1.msra.mxu0 0.0
  %1396 = vmatprep.subr.mxu0 0.0
  %1397 = vmatpush1.msra.mxu0 0.0
  %1398 = vmatprep.subr.mxu0 0.0
  %1399 = vmatpush1.msra.mxu0 0.0
  %1400 = vmatprep.subr.mxu0 0.0
  %1401 = vmatpush1.msra.mxu0 0.0
  %1402 = vmatprep.subr.mxu0 0.0
  %1403 = vmatpush1.msra.mxu0 0.0
  %1404 = vmatprep.subr.mxu0 0.0
  %1405 = vmatpush1.msra.mxu0 0.0
  %1406 = vmatprep.subr.mxu0 0.0
  %1407 = vmatpush1.msra.mxu0 0.0
  %1408 = vmatprep.subr.mxu0 0.0
  %1409 = vmatpush1.msra.mxu0 0.0
  %1410 = vmatprep.subr.mxu0 0.0
  %1411 = vmatpush1.msra.mxu0 0.0
  %1412 = vmatprep.subr.mxu0 0.0
  %1413 = vmatpush1.msra.mxu0 0.0
  %1414 = vmatprep.subr.mxu0 0.0
  %1415 = vmatpush1.msra.mxu0 0.0
  %1416 = vmatprep.mubr.f32.mxu0 0.0
  %1417 = vmatmul.mubr.f32.gmra.mrb[0].mxu0 %v1350
  %v1418 = vpop.f32.mrb[0].mxu0
  %v1419 = vadd.f32 %v65, %v1418
  %v1420 = vpop.f32.mrb[0].mxu0
  %1421 = vdwg.mxu0
  %v1422 = vsel %vm1272, %v1346, 0
  %1424 = vmatprep.subr.mxu0 0.0
  %1425 = vmatpush1.msra.mxu0 %v61
  %1426 = vmatprep.subr.mxu0 0.0
  %1427 = vmatpush1.msra.mxu0 %v62
  %1428 = vmatprep.subr.mxu0 0.0
  %1429 = vmatpush1.msra.mxu0 %v63
  %1430 = vmatprep.subr.mxu0 0.0
  %1431 = vmatpush1.msra.mxu0 %v64
  %1432 = vmatprep.subr.mxu0 0.0
  %1433 = vmatpush1.msra.mxu0 0.0
  %1434 = vmatprep.subr.mxu0 0.0
  %1435 = vmatpush1.msra.mxu0 0.0
  %1436 = vmatprep.subr.mxu0 0.0
  %1437 = vmatpush1.msra.mxu0 0.0
  %1438 = vmatprep.subr.mxu0 0.0
  %1439 = vmatpush1.msra.mxu0 0.0
  %1440 = vmatprep.subr.mxu0 0.0
  %1441 = vmatpush1.msra.mxu0 0.0
  %1442 = vmatprep.subr.mxu0 0.0
  %1443 = vmatpush1.msra.mxu0 0.0
  %1444 = vmatprep.subr.mxu0 0.0
  %1445 = vmatpush1.msra.mxu0 0.0
  %1446 = vmatprep.subr.mxu0 0.0
  %1447 = vmatpush1.msra.mxu0 0.0
  %1448 = vmatprep.subr.mxu0 0.0
  %1449 = vmatpush1.msra.mxu0 0.0
  %1450 = vmatprep.subr.mxu0 0.0
  %1451 = vmatpush1.msra.mxu0 0.0
  %1452 = vmatprep.subr.mxu0 0.0
  %1453 = vmatpush1.msra.mxu0 0.0
  %1454 = vmatprep.subr.mxu0 0.0
  %1455 = vmatpush1.msra.mxu0 0.0
  %1456 = vmatprep.subr.mxu0 0.0
  %1457 = vmatpush1.msra.mxu0 0.0
  %1458 = vmatprep.subr.mxu0 0.0
  %1459 = vmatpush1.msra.mxu0 0.0
  %1460 = vmatprep.subr.mxu0 0.0
  %1461 = vmatpush1.msra.mxu0 0.0
  %1462 = vmatprep.subr.mxu0 0.0
  %1463 = vmatpush1.msra.mxu0 0.0
  %1464 = vmatprep.subr.mxu0 0.0
  %1465 = vmatpush1.msra.mxu0 0.0
  %1466 = vmatprep.subr.mxu0 0.0
  %1467 = vmatpush1.msra.mxu0 0.0
  %1468 = vmatprep.subr.mxu0 0.0
  %1469 = vmatpush1.msra.mxu0 0.0
  %1470 = vmatprep.subr.mxu0 0.0
  %1471 = vmatpush1.msra.mxu0 0.0
  %1472 = vmatprep.subr.mxu0 0.0
  %1473 = vmatpush1.msra.mxu0 0.0
  %1474 = vmatprep.subr.mxu0 0.0
  %1475 = vmatpush1.msra.mxu0 0.0
  %1476 = vmatprep.subr.mxu0 0.0
  %1477 = vmatpush1.msra.mxu0 0.0
  %1478 = vmatprep.subr.mxu0 0.0
  %1479 = vmatpush1.msra.mxu0 0.0
  %1480 = vmatprep.subr.mxu0 0.0
  %1481 = vmatpush1.msra.mxu0 0.0
  %1482 = vmatprep.subr.mxu0 0.0
  %1483 = vmatpush1.msra.mxu0 0.0
  %1484 = vmatprep.subr.mxu0 0.0
  %1485 = vmatpush1.msra.mxu0 0.0
  %1486 = vmatprep.subr.mxu0 0.0
  %1487 = vmatpush1.msra.mxu0 0.0
  %1488 = vmatprep.mubr.f32.mxu0 0.0
  %1489 = vmatmul.mubr.f32.gmra.mrb[0].mxu0 %v1422
  %v1490 = vpop.f32.mrb[0].mxu0
  %v1491 = vadd.f32 0.0, %v1490
  %v1492 = vpop.f32.mrb[0].mxu0
  %1493 = vdwg.mxu0
  %v1494 = vadd.f32 %v1419, %v1491
  %v1495 = vxor.u32 %v1494, 2147483648
  %v1496 = vmul.f32 %v1495, 1.442695
  %v1497 = vpow.pop %v1496
  %v1498 = vadd.f32 %v1497, 1.0
  %v1499 = vrcp.pop %v1498
  %v1500 = vmul.f32 1.0, %v1499
  %1502 = vrot.lane.b32.xlu0 %v66, 64
  %v1503 = vpop.permute.xlu0 %1502
  %v1505 = vadd.f32 %v1491, %v1503
  %1507 = vrot.lane.b32.xlu0 %v1505, 64
  %v1508 = vpop.permute.xlu0 %1507
  %v1510 = vmul.f32 %v1500, %v1508
  %1512 = vrot.lane.b32.xlu0 %v1510, 64
  %v1513 = vpop.permute.xlu0 %1512
  %v1515 = vadd.f32 %v1419, %v1513
  %v1516 = vtanh.pop %v1515
  %v1517 = vsub.f32 1.0, %v1500
  %1519 = vrot.lane.b32.xlu0 %v1516, 96
  %v1520 = vpop.permute.xlu0 %1519
  %v1522 = vmul.f32 %v1517, %v1520
  %1523 = vrot.lane.b32.xlu0 %v1346, 32
  %v1524 = vpop.permute.xlu0 %1523
  %v1526 = vmul.f32 %v1500, %v1524
  %v1527 = vadd.f32 %v1522, %v1526
  %1529 = vrot.lane.b32.xlu0 %v1527, 96
  %v1530 = vpop.permute.xlu0 %1529
  %1532 = vst.msk [vmem:[#allocation4] sm:$0x3] %vm1182, %v1530
  %v1533 = vsel %vm1272, %v1530, 0
  %1535 = vmatprep.subr.mxu0 0.0
  %1536 = vmatpush1.msra.mxu0 %v61
  %1537 = vmatprep.subr.mxu0 0.0
  %1538 = vmatpush1.msra.mxu0 %v62
  %1539 = vmatprep.subr.mxu0 0.0
  %1540 = vmatpush1.msra.mxu0 %v63
  %1541 = vmatprep.subr.mxu0 0.0
  %1542 = vmatpush1.msra.mxu0 %v64
  %1543 = vmatprep.subr.mxu0 0.0
  %1544 = vmatpush1.msra.mxu0 0.0
  %1545 = vmatprep.subr.mxu0 0.0
  %1546 = vmatpush1.msra.mxu0 0.0
  %1547 = vmatprep.subr.mxu0 0.0
  %1548 = vmatpush1.msra.mxu0 0.0
  %1549 = vmatprep.subr.mxu0 0.0
  %1550 = vmatpush1.msra.mxu0 0.0
  %1551 = vmatprep.subr.mxu0 0.0
  %1552 = vmatpush1.msra.mxu0 0.0
  %1553 = vmatprep.subr.mxu0 0.0
  %1554 = vmatpush1.msra.mxu0 0.0
  %1555 = vmatprep.subr.mxu0 0.0
  %1556 = vmatpush1.msra.mxu0 0.0
  %1557 = vmatprep.subr.mxu0 0.0
  %1558 = vmatpush1.msra.mxu0 0.0
  %1559 = vmatprep.subr.mxu0 0.0
  %1560 = vmatpush1.msra.mxu0 0.0
  %1561 = vmatprep.subr.mxu0 0.0
  %1562 = vmatpush1.msra.mxu0 0.0
  %1563 = vmatprep.subr.mxu0 0.0
  %1564 = vmatpush1.msra.mxu0 0.0
  %1565 = vmatprep.subr.mxu0 0.0
  %1566 = vmatpush1.msra.mxu0 0.0
  %1567 = vmatprep.subr.mxu0 0.0
  %1568 = vmatpush1.msra.mxu0 0.0
  %1569 = vmatprep.subr.mxu0 0.0
  %1570 = vmatpush1.msra.mxu0 0.0
  %1571 = vmatprep.subr.mxu0 0.0
  %1572 = vmatpush1.msra.mxu0 0.0
  %1573 = vmatprep.subr.mxu0 0.0
  %1574 = vmatpush1.msra.mxu0 0.0
  %1575 = vmatprep.subr.mxu0 0.0
  %1576 = vmatpush1.msra.mxu0 0.0
  %1577 = vmatprep.subr.mxu0 0.0
  %1578 = vmatpush1.msra.mxu0 0.0
  %1579 = vmatprep.subr.mxu0 0.0
  %1580 = vmatpush1.msra.mxu0 0.0
  %1581 = vmatprep.subr.mxu0 0.0
  %1582 = vmatpush1.msra.mxu0 0.0
  %1583 = vmatprep.subr.mxu0 0.0
  %1584 = vmatpush1.msra.mxu0 0.0
  %1585 = vmatprep.subr.mxu0 0.0
  %1586 = vmatpush1.msra.mxu0 0.0
  %1587 = vmatprep.subr.mxu0 0.0
  %1588 = vmatpush1.msra.mxu0 0.0
  %1589 = vmatprep.subr.mxu0 0.0
  %1590 = vmatpush1.msra.mxu0 0.0
  %1591 = vmatprep.subr.mxu0 0.0
  %1592 = vmatpush1.msra.mxu0 0.0
  %1593 = vmatprep.subr.mxu0 0.0
  %1594 = vmatpush1.msra.mxu0 0.0
  %1595 = vmatprep.subr.mxu0 0.0
  %1596 = vmatpush1.msra.mxu0 0.0
  %1597 = vmatprep.subr.mxu0 0.0
  %1598 = vmatpush1.msra.mxu0 0.0
  %1599 = vmatprep.mubr.f32.mxu0 0.0
  %1600 = vmatmul.mubr.f32.gmra.mrb[0].mxu0 %v1533
  %v1601 = vpop.f32.mrb[0].mxu0
  %v1602 = vadd.f32 0.0, %v1601
  %v1603 = vpop.f32.mrb[0].mxu0
  %1604 = vdwg.mxu0
  %v1605 = vadd.f32 %v1419, %v1602
  %v1606 = vxor.u32 %v1605, 2147483648
  %v1607 = vmul.f32 %v1606, 1.442695
  %v1608 = vpow.pop %v1607
  %v1609 = vadd.f32 %v1608, 1.0
  %v1610 = vrcp.pop %v1609
  %v1611 = vmul.f32 1.0, %v1610
  %v1612 = vadd.f32 %v1602, %v1503
  %1614 = vrot.lane.b32.xlu0 %v1612, 64
  %v1615 = vpop.permute.xlu0 %1614
  %v1617 = vmul.f32 %v1611, %v1615
  %1619 = vrot.lane.b32.xlu0 %v1617, 64
  %v1620 = vpop.permute.xlu0 %1619
  %v1622 = vadd.f32 %v1419, %v1620
  %v1623 = vtanh.pop %v1622
  %v1624 = vsub.f32 1.0, %v1611
  %1626 = vrot.lane.b32.xlu0 %v1623, 96
  %v1627 = vpop.permute.xlu0 %1626
  %v1629 = vmul.f32 %v1624, %v1627
  %v1630 = vmul.f32 %v1611, %v1527
  %v1631 = vadd.f32 %v1629, %v1630
  %1633 = vrot.lane.b32.xlu0 %v1631, 96
  %v1634 = vpop.permute.xlu0 %1633
  %s1636 = scalar_lea.vmem [#allocation4], 2
  %1637 = vst.msk [vmem:[%s1636] sm:$0x3] %vm1182, %v1634
  %v1638 = vsel %vm1272, %v1634, 0
  %1640 = vmatprep.subr.mxu0 0.0
  %1641 = vmatpush1.msra.mxu0 %v61
  %1642 = vmatprep.subr.mxu0 0.0
  %1643 = vmatpush1.msra.mxu0 %v62
  %1644 = vmatprep.subr.mxu0 0.0
  %1645 = vmatpush1.msra.mxu0 %v63
  %1646 = vmatprep.subr.mxu0 0.0
  %1647 = vmatpush1.msra.mxu0 %v64
  %1648 = vmatprep.subr.mxu0 0.0
  %1649 = vmatpush1.msra.mxu0 0.0
  %1650 = vmatprep.subr.mxu0 0.0
  %1651 = vmatpush1.msra.mxu0 0.0
  %1652 = vmatprep.subr.mxu0 0.0
  %1653 = vmatpush1.msra.mxu0 0.0
  %1654 = vmatprep.subr.mxu0 0.0
  %1655 = vmatpush1.msra.mxu0 0.0
  %1656 = vmatprep.subr.mxu0 0.0
  %1657 = vmatpush1.msra.mxu0 0.0
  %1658 = vmatprep.subr.mxu0 0.0
  %1659 = vmatpush1.msra.mxu0 0.0
  %1660 = vmatprep.subr.mxu0 0.0
  %1661 = vmatpush1.msra.mxu0 0.0
  %1662 = vmatprep.subr.mxu0 0.0
  %1663 = vmatpush1.msra.mxu0 0.0
  %1664 = vmatprep.subr.mxu0 0.0
  %1665 = vmatpush1.msra.mxu0 0.0
  %1666 = vmatprep.subr.mxu0 0.0
  %1667 = vmatpush1.msra.mxu0 0.0
  %1668 = vmatprep.subr.mxu0 0.0
  %1669 = vmatpush1.msra.mxu0 0.0
  %1670 = vmatprep.subr.mxu0 0.0
  %1671 = vmatpush1.msra.mxu0 0.0
  %1672 = vmatprep.subr.mxu0 0.0
  %1673 = vmatpush1.msra.mxu0 0.0
  %1674 = vmatprep.subr.mxu0 0.0
  %1675 = vmatpush1.msra.mxu0 0.0
  %1676 = vmatprep.subr.mxu0 0.0
  %1677 = vmatpush1.msra.mxu0 0.0
  %1678 = vmatprep.subr.mxu0 0.0
  %1679 = vmatpush1.msra.mxu0 0.0
  %1680 = vmatprep.subr.mxu0 0.0
  %1681 = vmatpush1.msra.mxu0 0.0
  %1682 = vmatprep.subr.mxu0 0.0
  %1683 = vmatpush1.msra.mxu0 0.0
  %1684 = vmatprep.subr.mxu0 0.0
  %1685 = vmatpush1.msra.mxu0 0.0
  %1686 = vmatprep.subr.mxu0 0.0
  %1687 = vmatpush1.msra.mxu0 0.0
  %1688 = vmatprep.subr.mxu0 0.0
  %1689 = vmatpush1.msra.mxu0 0.0
  %1690 = vmatprep.subr.mxu0 0.0
  %1691 = vmatpush1.msra.mxu0 0.0
  %1692 = vmatprep.subr.mxu0 0.0
  %1693 = vmatpush1.msra.mxu0 0.0
  %1694 = vmatprep.subr.mxu0 0.0
  %1695 = vmatpush1.msra.mxu0 0.0
  %1696 = vmatprep.subr.mxu0 0.0
  %1697 = vmatpush1.msra.mxu0 0.0
  %1698 = vmatprep.subr.mxu0 0.0
  %1699 = vmatpush1.msra.mxu0 0.0
  %1700 = vmatprep.subr.mxu0 0.0
  %1701 = vmatpush1.msra.mxu0 0.0
  %1702 = vmatprep.subr.mxu0 0.0
  %1703 = vmatpush1.msra.mxu0 0.0
  %1704 = vmatprep.mubr.f32.mxu0 0.0
  %1705 = vmatmul.mubr.f32.gmra.mrb[0].mxu0 %v1638
  %v1706 = vpop.f32.mrb[0].mxu0
  %v1707 = vadd.f32 0.0, %v1706
  %v1708 = vpop.f32.mrb[0].mxu0
  %1709 = vdwg.mxu0
  %v1710 = vadd.f32 %v1419, %v1707
  %v1711 = vxor.u32 %v1710, 2147483648
  %v1712 = vmul.f32 %v1711, 1.442695
  %v1713 = vpow.pop %v1712
  %v1714 = vadd.f32 %v1713, 1.0
  %v1715 = vrcp.pop %v1714
  %v1716 = vmul.f32 1.0, %v1715
  %v1717 = vadd.f32 %v1707, %v1503
  %1719 = vrot.lane.b32.xlu0 %v1717, 64
  %v1720 = vpop.permute.xlu0 %1719
  %v1722 = vmul.f32 %v1716, %v1720
  %1724 = vrot.lane.b32.xlu0 %v1722, 64
  %v1725 = vpop.permute.xlu0 %1724
  %v1727 = vadd.f32 %v1419, %v1725
  %v1728 = vtanh.pop %v1727
  %v1729 = vsub.f32 1.0, %v1716
  %1731 = vrot.lane.b32.xlu0 %v1728, 96
  %v1732 = vpop.permute.xlu0 %1731
  %v1734 = vmul.f32 %v1729, %v1732
  %v1735 = vmul.f32 %v1716, %v1631
  %v1736 = vadd.f32 %v1734, %v1735
  %1738 = vrot.lane.b32.xlu0 %v1736, 96
  %v1739 = vpop.permute.xlu0 %1738
  %s1741 = scalar_lea.vmem [#allocation4], 4
  %1742 = vst.msk [vmem:[%s1741] sm:$0x3] %vm1182, %v1739
  %v1743 = vsel %vm1272, %v1739, 0
  %1745 = vmatprep.subr.mxu0 0.0
  %1746 = vmatpush1.msra.mxu0 %v61
  %1747 = vmatprep.subr.mxu0 0.0
  %1748 = vmatpush1.msra.mxu0 %v62
  %1749 = vmatprep.subr.mxu0 0.0
  %1750 = vmatpush1.msra.mxu0 %v63
  %1751 = vmatprep.subr.mxu0 0.0
  %1752 = vmatpush1.msra.mxu0 %v64
  %1753 = vmatprep.subr.mxu0 0.0
  %1754 = vmatpush1.msra.mxu0 0.0
  %1755 = vmatprep.subr.mxu0 0.0
  %1756 = vmatpush1.msra.mxu0 0.0
  %1757 = vmatprep.subr.mxu0 0.0
  %1758 = vmatpush1.msra.mxu0 0.0
  %1759 = vmatprep.subr.mxu0 0.0
  %1760 = vmatpush1.msra.mxu0 0.0
  %1761 = vmatprep.subr.mxu0 0.0
  %1762 = vmatpush1.msra.mxu0 0.0
  %1763 = vmatprep.subr.mxu0 0.0
  %1764 = vmatpush1.msra.mxu0 0.0
  %1765 = vmatprep.subr.mxu0 0.0
  %1766 = vmatpush1.msra.mxu0 0.0
  %1767 = vmatprep.subr.mxu0 0.0
  %1768 = vmatpush1.msra.mxu0 0.0
  %1769 = vmatprep.subr.mxu0 0.0
  %1770 = vmatpush1.msra.mxu0 0.0
  %1771 = vmatprep.subr.mxu0 0.0
  %1772 = vmatpush1.msra.mxu0 0.0
  %1773 = vmatprep.subr.mxu0 0.0
  %1774 = vmatpush1.msra.mxu0 0.0
  %1775 = vmatprep.subr.mxu0 0.0
  %1776 = vmatpush1.msra.mxu0 0.0
  %1777 = vmatprep.subr.mxu0 0.0
  %1778 = vmatpush1.msra.mxu0 0.0
  %1779 = vmatprep.subr.mxu0 0.0
  %1780 = vmatpush1.msra.mxu0 0.0
  %1781 = vmatprep.subr.mxu0 0.0
  %1782 = vmatpush1.msra.mxu0 0.0
  %1783 = vmatprep.subr.mxu0 0.0
  %1784 = vmatpush1.msra.mxu0 0.0
  %1785 = vmatprep.subr.mxu0 0.0
  %1786 = vmatpush1.msra.mxu0 0.0
  %1787 = vmatprep.subr.mxu0 0.0
  %1788 = vmatpush1.msra.mxu0 0.0
  %1789 = vmatprep.subr.mxu0 0.0
  %1790 = vmatpush1.msra.mxu0 0.0
  %1791 = vmatprep.subr.mxu0 0.0
  %1792 = vmatpush1.msra.mxu0 0.0
  %1793 = vmatprep.subr.mxu0 0.0
  %1794 = vmatpush1.msra.mxu0 0.0
  %1795 = vmatprep.subr.mxu0 0.0
  %1796 = vmatpush1.msra.mxu0 0.0
  %1797 = vmatprep.subr.mxu0 0.0
  %1798 = vmatpush1.msra.mxu0 0.0
  %1799 = vmatprep.subr.mxu0 0.0
  %1800 = vmatpush1.msra.mxu0 0.0
  %1801 = vmatprep.subr.mxu0 0.0
  %1802 = vmatpush1.msra.mxu0 0.0
  %1803 = vmatprep.subr.mxu0 0.0
  %1804 = vmatpush1.msra.mxu0 0.0
  %1805 = vmatprep.subr.mxu0 0.0
  %1806 = vmatpush1.msra.mxu0 0.0
  %1807 = vmatprep.subr.mxu0 0.0
  %1808 = vmatpush1.msra.mxu0 0.0
  %1809 = vmatprep.mubr.f32.mxu0 0.0
  %1810 = vmatmul.mubr.f32.gmra.mrb[0].mxu0 %v1743
  %v1811 = vpop.f32.mrb[0].mxu0
  %v1812 = vadd.f32 0.0, %v1811
  %v1813 = vpop.f32.mrb[0].mxu0
  %1814 = vdwg.mxu0
  %v1815 = vadd.f32 %v1419, %v1812
  %v1816 = vxor.u32 %v1815, 2147483648
  %v1817 = vmul.f32 %v1816, 1.442695
  %v1818 = vpow.pop %v1817
  %v1819 = vadd.f32 %v1818, 1.0
  %v1820 = vrcp.pop %v1819
  %v1821 = vmul.f32 1.0, %v1820
  %v1822 = vadd.f32 %v1812, %v1503
  %1824 = vrot.lane.b32.xlu0 %v1822, 64
  %v1825 = vpop.permute.xlu0 %1824
  %v1827 = vmul.f32 %v1821, %v1825
  %1829 = vrot.lane.b32.xlu0 %v1827, 64
  %v1830 = vpop.permute.xlu0 %1829
  %v1832 = vadd.f32 %v1419, %v1830
  %v1833 = vtanh.pop %v1832
  %v1834 = vsub.f32 1.0, %v1821
  %1836 = vrot.lane.b32.xlu0 %v1833, 96
  %v1837 = vpop.permute.xlu0 %1836
  %v1839 = vmul.f32 %v1834, %v1837
  %v1840 = vmul.f32 %v1821, %v1736
  %v1841 = vadd.f32 %v1839, %v1840
  %1843 = vrot.lane.b32.xlu0 %v1841, 96
  %v1844 = vpop.permute.xlu0 %1843
  %s1846 = scalar_lea.vmem [#allocation4], 6
  %1847 = vst.msk [vmem:[%s1846] sm:$0x3] %vm1182, %v1844
  %v1848 = vsel %vm1272, %v1844, 0
  %1850 = vmatprep.subr.mxu0 0.0
  %1851 = vmatpush1.msra.mxu0 %v61
  %1852 = vmatprep.subr.mxu0 0.0
  %1853 = vmatpush1.msra.mxu0 %v62
  %1854 = vmatprep.subr.mxu0 0.0
  %1855 = vmatpush1.msra.mxu0 %v63
  %1856 = vmatprep.subr.mxu0 0.0
  %1857 = vmatpush1.msra.mxu0 %v64
  %1858 = vmatprep.subr.mxu0 0.0
  %1859 = vmatpush1.msra.mxu0 0.0
  %1860 = vmatprep.subr.mxu0 0.0
  %1861 = vmatpush1.msra.mxu0 0.0
  %1862 = vmatprep.subr.mxu0 0.0
  %1863 = vmatpush1.msra.mxu0 0.0
  %1864 = vmatprep.subr.mxu0 0.0
  %1865 = vmatpush1.msra.mxu0 0.0
  %1866 = vmatprep.subr.mxu0 0.0
  %1867 = vmatpush1.msra.mxu0 0.0
  %1868 = vmatprep.subr.mxu0 0.0
  %1869 = vmatpush1.msra.mxu0 0.0
  %1870 = vmatprep.subr.mxu0 0.0
  %1871 = vmatpush1.msra.mxu0 0.0
  %1872 = vmatprep.subr.mxu0 0.0
  %1873 = vmatpush1.msra.mxu0 0.0
  %1874 = vmatprep.subr.mxu0 0.0
  %1875 = vmatpush1.msra.mxu0 0.0
  %1876 = vmatprep.subr.mxu0 0.0
  %1877 = vmatpush1.msra.mxu0 0.0
  %1878 = vmatprep.subr.mxu0 0.0
  %1879 = vmatpush1.msra.mxu0 0.0
  %1880 = vmatprep.subr.mxu0 0.0
  %1881 = vmatpush1.msra.mxu0 0.0
  %1882 = vmatprep.subr.mxu0 0.0
  %1883 = vmatpush1.msra.mxu0 0.0
  %1884 = vmatprep.subr.mxu0 0.0
  %1885 = vmatpush1.msra.mxu0 0.0
  %1886 = vmatprep.subr.mxu0 0.0
  %1887 = vmatpush1.msra.mxu0 0.0
  %1888 = vmatprep.subr.mxu0 0.0
  %1889 = vmatpush1.msra.mxu0 0.0
  %1890 = vmatprep.subr.mxu0 0.0
  %1891 = vmatpush1.msra.mxu0 0.0
  %1892 = vmatprep.subr.mxu0 0.0
  %1893 = vmatpush1.msra.mxu0 0.0
  %1894 = vmatprep.subr.mxu0 0.0
  %1895 = vmatpush1.msra.mxu0 0.0
  %1896 = vmatprep.subr.mxu0 0.0
  %1897 = vmatpush1.msra.mxu0 0.0
  %1898 = vmatprep.subr.mxu0 0.0
  %1899 = vmatpush1.msra.mxu0 0.0
  %1900 = vmatprep.subr.mxu0 0.0
  %1901 = vmatpush1.msra.mxu0 0.0
  %1902 = vmatprep.subr.mxu0 0.0
  %1903 = vmatpush1.msra.mxu0 0.0
  %1904 = vmatprep.subr.mxu0 0.0
  %1905 = vmatpush1.msra.mxu0 0.0
  %1906 = vmatprep.subr.mxu0 0.0
  %1907 = vmatpush1.msra.mxu0 0.0
  %1908 = vmatprep.subr.mxu0 0.0
  %1909 = vmatpush1.msra.mxu0 0.0
  %1910 = vmatprep.subr.mxu0 0.0
  %1911 = vmatpush1.msra.mxu0 0.0
  %1912 = vmatprep.subr.mxu0 0.0
  %1913 = vmatpush1.msra.mxu0 0.0
  %1914 = vmatprep.mubr.f32.mxu0 0.0
  %1915 = vmatmul.mubr.f32.gmra.mrb[0].mxu0 %v1848
  %v1916 = vpop.f32.mrb[0].mxu0
  %v1917 = vadd.f32 0.0, %v1916
  %v1918 = vpop.f32.mrb[0].mxu0
  %1919 = vdwg.mxu0
  %v1920 = vadd.f32 %v1419, %v1917
  %v1921 = vxor.u32 %v1920, 2147483648
  %v1922 = vmul.f32 %v1921, 1.442695
  %v1923 = vpow.pop %v1922
  %v1924 = vadd.f32 %v1923, 1.0
  %v1925 = vrcp.pop %v1924
  %v1926 = vmul.f32 1.0, %v1925
  %v1927 = vadd.f32 %v1917, %v1503
  %1929 = vrot.lane.b32.xlu0 %v1927, 64
  %v1930 = vpop.permute.xlu0 %1929
  %v1932 = vmul.f32 %v1926, %v1930
  %1934 = vrot.lane.b32.xlu0 %v1932, 64
  %v1935 = vpop.permute.xlu0 %1934
  %v1937 = vadd.f32 %v1419, %v1935
  %v1938 = vtanh.pop %v1937
  %v1939 = vsub.f32 1.0, %v1926
  %1941 = vrot.lane.b32.xlu0 %v1938, 96
  %v1942 = vpop.permute.xlu0 %1941
  %v1944 = vmul.f32 %v1939, %v1942
  %v1945 = vmul.f32 %v1926, %v1841
  %v1946 = vadd.f32 %v1944, %v1945
  %1948 = vrot.lane.b32.xlu0 %v1946, 96
  %v1949 = vpop.permute.xlu0 %1948
  %s1951 = scalar_lea.vmem [#allocation4], 8
  %1952 = vst.msk [vmem:[%s1951] sm:$0x3] %vm1182, %v1949
  %v1953 = vsel %vm1272, %v1949, 0
  %1955 = vmatprep.subr.mxu0 0.0
  %1956 = vmatpush1.msra.mxu0 %v61
  %1957 = vmatprep.subr.mxu0 0.0
  %1958 = vmatpush1.msra.mxu0 %v62
  %1959 = vmatprep.subr.mxu0 0.0
  %1960 = vmatpush1.msra.mxu0 %v63
  %1961 = vmatprep.subr.mxu0 0.0
  %1962 = vmatpush1.msra.mxu0 %v64
  %1963 = vmatprep.subr.mxu0 0.0
  %1964 = vmatpush1.msra.mxu0 0.0
  %1965 = vmatprep.subr.mxu0 0.0
  %1966 = vmatpush1.msra.mxu0 0.0
  %1967 = vmatprep.subr.mxu0 0.0
  %1968 = vmatpush1.msra.mxu0 0.0
  %1969 = vmatprep.subr.mxu0 0.0
  %1970 = vmatpush1.msra.mxu0 0.0
  %1971 = vmatprep.subr.mxu0 0.0
  %1972 = vmatpush1.msra.mxu0 0.0
  %1973 = vmatprep.subr.mxu0 0.0
  %1974 = vmatpush1.msra.mxu0 0.0
  %1975 = vmatprep.subr.mxu0 0.0
  %1976 = vmatpush1.msra.mxu0 0.0
  %1977 = vmatprep.subr.mxu0 0.0
  %1978 = vmatpush1.msra.mxu0 0.0
  %1979 = vmatprep.subr.mxu0 0.0
  %1980 = vmatpush1.msra.mxu0 0.0
  %1981 = vmatprep.subr.mxu0 0.0
  %1982 = vmatpush1.msra.mxu0 0.0
  %1983 = vmatprep.subr.mxu0 0.0
  %1984 = vmatpush1.msra.mxu0 0.0
  %1985 = vmatprep.subr.mxu0 0.0
  %1986 = vmatpush1.msra.mxu0 0.0
  %1987 = vmatprep.subr.mxu0 0.0
  %1988 = vmatpush1.msra.mxu0 0.0
  %1989 = vmatprep.subr.mxu0 0.0
  %1990 = vmatpush1.msra.mxu0 0.0
  %1991 = vmatprep.subr.mxu0 0.0
  %1992 = vmatpush1.msra.mxu0 0.0
  %1993 = vmatprep.subr.mxu0 0.0
  %1994 = vmatpush1.msra.mxu0 0.0
  %1995 = vmatprep.subr.mxu0 0.0
  %1996 = vmatpush1.msra.mxu0 0.0
  %1997 = vmatprep.subr.mxu0 0.0
  %1998 = vmatpush1.msra.mxu0 0.0
  %1999 = vmatprep.subr.mxu0 0.0
  %2000 = vmatpush1.msra.mxu0 0.0
  %2001 = vmatprep.subr.mxu0 0.0
  %2002 = vmatpush1.msra.mxu0 0.0
  %2003 = vmatprep.subr.mxu0 0.0
  %2004 = vmatpush1.msra.mxu0 0.0
  %2005 = vmatprep.subr.mxu0 0.0
  %2006 = vmatpush1.msra.mxu0 0.0
  %2007 = vmatprep.subr.mxu0 0.0
  %2008 = vmatpush1.msra.mxu0 0.0
  %2009 = vmatprep.subr.mxu0 0.0
  %2010 = vmatpush1.msra.mxu0 0.0
  %2011 = vmatprep.subr.mxu0 0.0
  %2012 = vmatpush1.msra.mxu0 0.0
  %2013 = vmatprep.subr.mxu0 0.0
  %2014 = vmatpush1.msra.mxu0 0.0
  %2015 = vmatprep.subr.mxu0 0.0
  %2016 = vmatpush1.msra.mxu0 0.0
  %2017 = vmatprep.subr.mxu0 0.0
  %2018 = vmatpush1.msra.mxu0 0.0
  %2019 = vmatprep.mubr.f32.mxu0 0.0
  %2020 = vmatmul.mubr.f32.gmra.mrb[0].mxu0 %v1953
  %v2021 = vpop.f32.mrb[0].mxu0
  %v2022 = vadd.f32 0.0, %v2021
  %v2023 = vpop.f32.mrb[0].mxu0
  %2024 = vdwg.mxu0
  %v2025 = vadd.f32 %v1419, %v2022
  %v2026 = vxor.u32 %v2025, 2147483648
  %v2027 = vmul.f32 %v2026, 1.442695
  %v2028 = vpow.pop %v2027
  %v2029 = vadd.f32 %v2028, 1.0
  %v2030 = vrcp.pop %v2029
  %v2031 = vmul.f32 1.0, %v2030
  %v2032 = vadd.f32 %v2022, %v1503
  %2034 = vrot.lane.b32.xlu0 %v2032, 64
  %v2035 = vpop.permute.xlu0 %2034
  %v2037 = vmul.f32 %v2031, %v2035
  %2039 = vrot.lane.b32.xlu0 %v2037, 64
  %v2040 = vpop.permute.xlu0 %2039
  %v2042 = vadd.f32 %v1419, %v2040
  %v2043 = vtanh.pop %v2042
  %v2044 = vsub.f32 1.0, %v2031
  %2046 = vrot.lane.b32.xlu0 %v2043, 96
  %v2047 = vpop.permute.xlu0 %2046
  %v2049 = vmul.f32 %v2044, %v2047
  %v2050 = vmul.f32 %v2031, %v1946
  %v2051 = vadd.f32 %v2049, %v2050
  %2053 = vrot.lane.b32.xlu0 %v2051, 96
  %v2054 = vpop.permute.xlu0 %2053
  %s2056 = scalar_lea.vmem [#allocation4], 10
  %2057 = vst.msk [vmem:[%s2056] sm:$0x3] %vm1182, %v2054
  %v2058 = vsel %vm1272, %v2054, 0
  %2060 = vmatprep.subr.mxu0 0.0
  %2061 = vmatpush1.msra.mxu0 %v61
  %2062 = vmatprep.subr.mxu0 0.0
  %2063 = vmatpush1.msra.mxu0 %v62
  %2064 = vmatprep.subr.mxu0 0.0
  %2065 = vmatpush1.msra.mxu0 %v63
  %2066 = vmatprep.subr.mxu0 0.0
  %2067 = vmatpush1.msra.mxu0 %v64
  %2068 = vmatprep.subr.mxu0 0.0
  %2069 = vmatpush1.msra.mxu0 0.0
  %2070 = vmatprep.subr.mxu0 0.0
  %2071 = vmatpush1.msra.mxu0 0.0
  %2072 = vmatprep.subr.mxu0 0.0
  %2073 = vmatpush1.msra.mxu0 0.0
  %2074 = vmatprep.subr.mxu0 0.0
  %2075 = vmatpush1.msra.mxu0 0.0
  %2076 = vmatprep.subr.mxu0 0.0
  %2077 = vmatpush1.msra.mxu0 0.0
  %2078 = vmatprep.subr.mxu0 0.0
  %2079 = vmatpush1.msra.mxu0 0.0
  %2080 = vmatprep.subr.mxu0 0.0
  %2081 = vmatpush1.msra.mxu0 0.0
  %2082 = vmatprep.subr.mxu0 0.0
  %2083 = vmatpush1.msra.mxu0 0.0
  %2084 = vmatprep.subr.mxu0 0.0
  %2085 = vmatpush1.msra.mxu0 0.0
  %2086 = vmatprep.subr.mxu0 0.0
  %2087 = vmatpush1.msra.mxu0 0.0
  %2088 = vmatprep.subr.mxu0 0.0
  %2089 = vmatpush1.msra.mxu0 0.0
  %2090 = vmatprep.subr.mxu0 0.0
  %2091 = vmatpush1.msra.mxu0 0.0
  %2092 = vmatprep.subr.mxu0 0.0
  %2093 = vmatpush1.msra.mxu0 0.0
  %2094 = vmatprep.subr.mxu0 0.0
  %2095 = vmatpush1.msra.mxu0 0.0
  %2096 = vmatprep.subr.mxu0 0.0
  %2097 = vmatpush1.msra.mxu0 0.0
  %2098 = vmatprep.subr.mxu0 0.0
  %2099 = vmatpush1.msra.mxu0 0.0
  %2100 = vmatprep.subr.mxu0 0.0
  %2101 = vmatpush1.msra.mxu0 0.0
  %2102 = vmatprep.subr.mxu0 0.0
  %2103 = vmatpush1.msra.mxu0 0.0
  %2104 = vmatprep.subr.mxu0 0.0
  %2105 = vmatpush1.msra.mxu0 0.0
  %2106 = vmatprep.subr.mxu0 0.0
  %2107 = vmatpush1.msra.mxu0 0.0
  %2108 = vmatprep.subr.mxu0 0.0
  %2109 = vmatpush1.msra.mxu0 0.0
  %2110 = vmatprep.subr.mxu0 0.0
  %2111 = vmatpush1.msra.mxu0 0.0
  %2112 = vmatprep.subr.mxu0 0.0
  %2113 = vmatpush1.msra.mxu0 0.0
  %2114 = vmatprep.subr.mxu0 0.0
  %2115 = vmatpush1.msra.mxu0 0.0
  %2116 = vmatprep.subr.mxu0 0.0
  %2117 = vmatpush1.msra.mxu0 0.0
  %2118 = vmatprep.subr.mxu0 0.0
  %2119 = vmatpush1.msra.mxu0 0.0
  %2120 = vmatprep.subr.mxu0 0.0
  %2121 = vmatpush1.msra.mxu0 0.0
  %2122 = vmatprep.subr.mxu0 0.0
  %2123 = vmatpush1.msra.mxu0 0.0
  %2124 = vmatprep.mubr.f32.mxu0 0.0
  %2125 = vmatmul.mubr.f32.gmra.mrb[0].mxu0 %v2058
  %v2126 = vpop.f32.mrb[0].mxu0
  %v2127 = vadd.f32 0.0, %v2126
  %v2128 = vpop.f32.mrb[0].mxu0
  %2129 = vdwg.mxu0
  %v2130 = vadd.f32 %v1419, %v2127
  %v2131 = vxor.u32 %v2130, 2147483648
  %v2132 = vmul.f32 %v2131, 1.442695
  %v2133 = vpow.pop %v2132
  %v2134 = vadd.f32 %v2133, 1.0
  %v2135 = vrcp.pop %v2134
  %v2136 = vmul.f32 1.0, %v2135
  %v2137 = vadd.f32 %v2127, %v1503
  %2139 = vrot.lane.b32.xlu0 %v2137, 64
  %v2140 = vpop.permute.xlu0 %2139
  %v2142 = vmul.f32 %v2136, %v2140
  %2144 = vrot.lane.b32.xlu0 %v2142, 64
  %v2145 = vpop.permute.xlu0 %2144
  %v2147 = vadd.f32 %v1419, %v2145
  %v2148 = vtanh.pop %v2147
  %v2149 = vsub.f32 1.0, %v2136
  %2151 = vrot.lane.b32.xlu0 %v2148, 96
  %v2152 = vpop.permute.xlu0 %2151
  %v2154 = vmul.f32 %v2149, %v2152
  %v2155 = vmul.f32 %v2136, %v2051
  %v2156 = vadd.f32 %v2154, %v2155
  %2158 = vrot.lane.b32.xlu0 %v2156, 96
  %v2159 = vpop.permute.xlu0 %2158
  %s2161 = scalar_lea.vmem [#allocation4], 12
  %2162 = vst.msk [vmem:[%s2161] sm:$0x3] %vm1182, %v2159
  %v2163 = vsel %vm1272, %v2159, 0
  %2165 = vmatprep.subr.mxu0 0.0
  %2166 = vmatpush1.msra.mxu0 %v61
  %2167 = vmatprep.subr.mxu0 0.0
  %2168 = vmatpush1.msra.mxu0 %v62
  %2169 = vmatprep.subr.mxu0 0.0
  %2170 = vmatpush1.msra.mxu0 %v63
  %2171 = vmatprep.subr.mxu0 0.0
  %2172 = vmatpush1.msra.mxu0 %v64
  %2173 = vmatprep.subr.mxu0 0.0
  %2174 = vmatpush1.msra.mxu0 0.0
  %2175 = vmatprep.subr.mxu0 0.0
  %2176 = vmatpush1.msra.mxu0 0.0
  %2177 = vmatprep.subr.mxu0 0.0
  %2178 = vmatpush1.msra.mxu0 0.0
  %2179 = vmatprep.subr.mxu0 0.0
  %2180 = vmatpush1.msra.mxu0 0.0
  %2181 = vmatprep.subr.mxu0 0.0
  %2182 = vmatpush1.msra.mxu0 0.0
  %2183 = vmatprep.subr.mxu0 0.0
  %2184 = vmatpush1.msra.mxu0 0.0
  %2185 = vmatprep.subr.mxu0 0.0
  %2186 = vmatpush1.msra.mxu0 0.0
  %2187 = vmatprep.subr.mxu0 0.0
  %2188 = vmatpush1.msra.mxu0 0.0
  %2189 = vmatprep.subr.mxu0 0.0
  %2190 = vmatpush1.msra.mxu0 0.0
  %2191 = vmatprep.subr.mxu0 0.0
  %2192 = vmatpush1.msra.mxu0 0.0
  %2193 = vmatprep.subr.mxu0 0.0
  %2194 = vmatpush1.msra.mxu0 0.0
  %2195 = vmatprep.subr.mxu0 0.0
  %2196 = vmatpush1.msra.mxu0 0.0
  %2197 = vmatprep.subr.mxu0 0.0
  %2198 = vmatpush1.msra.mxu0 0.0
  %2199 = vmatprep.subr.mxu0 0.0
  %2200 = vmatpush1.msra.mxu0 0.0
  %2201 = vmatprep.subr.mxu0 0.0
  %2202 = vmatpush1.msra.mxu0 0.0
  %2203 = vmatprep.subr.mxu0 0.0
  %2204 = vmatpush1.msra.mxu0 0.0
  %2205 = vmatprep.subr.mxu0 0.0
  %2206 = vmatpush1.msra.mxu0 0.0
  %2207 = vmatprep.subr.mxu0 0.0
  %2208 = vmatpush1.msra.mxu0 0.0
  %2209 = vmatprep.subr.mxu0 0.0
  %2210 = vmatpush1.msra.mxu0 0.0
  %2211 = vmatprep.subr.mxu0 0.0
  %2212 = vmatpush1.msra.mxu0 0.0
  %2213 = vmatprep.subr.mxu0 0.0
  %2214 = vmatpush1.msra.mxu0 0.0
  %2215 = vmatprep.subr.mxu0 0.0
  %2216 = vmatpush1.msra.mxu0 0.0
  %2217 = vmatprep.subr.mxu0 0.0
  %2218 = vmatpush1.msra.mxu0 0.0
  %2219 = vmatprep.subr.mxu0 0.0
  %2220 = vmatpush1.msra.mxu0 0.0
  %2221 = vmatprep.subr.mxu0 0.0
  %2222 = vmatpush1.msra.mxu0 0.0
  %2223 = vmatprep.subr.mxu0 0.0
  %2224 = vmatpush1.msra.mxu0 0.0
  %2225 = vmatprep.subr.mxu0 0.0
  %2226 = vmatpush1.msra.mxu0 0.0
  %2227 = vmatprep.subr.mxu0 0.0
  %2228 = vmatpush1.msra.mxu0 0.0
  %2229 = vmatprep.mubr.f32.mxu0 0.0
  %2230 = vmatmul.mubr.f32.gmra.mrb[0].mxu0 %v2163
  %v2231 = vpop.f32.mrb[0].mxu0
  %v2232 = vadd.f32 0.0, %v2231
  %v2233 = vpop.f32.mrb[0].mxu0
  %2234 = vdwg.mxu0
  %v2235 = vadd.f32 %v1419, %v2232
  %v2236 = vxor.u32 %v2235, 2147483648
  %v2237 = vmul.f32 %v2236, 1.442695
  %v2238 = vpow.pop %v2237
  %v2239 = vadd.f32 %v2238, 1.0
  %v2240 = vrcp.pop %v2239
  %v2241 = vmul.f32 1.0, %v2240
  %v2242 = vadd.f32 %v2232, %v1503
  %2244 = vrot.lane.b32.xlu0 %v2242, 64
  %v2245 = vpop.permute.xlu0 %2244
  %v2247 = vmul.f32 %v2241, %v2245
  %2249 = vrot.lane.b32.xlu0 %v2247, 64
  %v2250 = vpop.permute.xlu0 %2249
  %v2252 = vadd.f32 %v1419, %v2250
  %v2253 = vtanh.pop %v2252
  %v2254 = vsub.f32 1.0, %v2241
  %2256 = vrot.lane.b32.xlu0 %v2253, 96
  %v2257 = vpop.permute.xlu0 %2256
  %v2259 = vmul.f32 %v2254, %v2257
  %v2260 = vmul.f32 %v2241, %v2156
  %v2261 = vadd.f32 %v2259, %v2260
  %2263 = vrot.lane.b32.xlu0 %v2261, 96
  %v2264 = vpop.permute.xlu0 %2263
  %s2266 = scalar_lea.vmem [#allocation4], 14
  %2267 = vst.msk [vmem:[%s2266] sm:$0x3] %vm1182, %v2264
  %v2268 = vld [vmem:[#allocation4] sm:$0x3]
  %v2269 = vld [vmem:[#allocation4 + $0x2] sm:$0x3]
  %v2270 = vld [vmem:[#allocation4 + $0x4] sm:$0x3]
  %v2271 = vld [vmem:[#allocation4 + $0x6] sm:$0x3]
  %v2272 = vld [vmem:[#allocation4 + $0x8] sm:$0x3]
  %v2273 = vld [vmem:[#allocation4 + $0xa] sm:$0x3]
  %v2274 = vld [vmem:[#allocation4 + $0xc] sm:$0x3]
  %v2275 = vld [vmem:[#allocation4 + $0xe] sm:$0x3]
  %v2284 = vcombine.low %v2268, %v2269
  %v2285 = vcombine.low %v2270, %v2271
  %v2287 = vunpack.c.l.s4 1983009808
  %v2288 = vunpack.c.0.s8 %v2287
  %v2289 = vlaneseq
  %v2290 = vshrl.u32 %v2289, 7
  %v2291 = vsub.s32 %v2288, %v2290
  %v2292 = vrot.slane %v2284, %v2291
  %v2294 = vunpack.c.l.s4 1983009808
  %v2295 = vunpack.c.0.s8 %v2294
  %v2296 = vlaneseq
  %v2297 = vshrl.u32 %v2296, 7
  %v2298 = vsub.s32 %v2295, %v2297
  %v2299 = vrot.slane %v2285, %v2298
  %v2300 = vcombine.low %v2292, %v2299
  %v2301 = vcombine.low %v2272, %v2273
  %v2302 = vcombine.low %v2274, %v2275
  %v2304 = vunpack.c.l.s4 1983009808
  %v2305 = vunpack.c.0.s8 %v2304
  %v2306 = vlaneseq
  %v2307 = vshrl.u32 %v2306, 7
  %v2308 = vsub.s32 %v2305, %v2307
  %v2309 = vrot.slane %v2301, %v2308
  %v2311 = vunpack.c.l.s4 1983009808
  %v2312 = vunpack.c.0.s8 %v2311
  %v2313 = vlaneseq
  %v2314 = vshrl.u32 %v2313, 7
  %v2315 = vsub.s32 %v2312, %v2314
  %v2316 = vrot.slane %v2302, %v2315
  %v2317 = vcombine.low %v2309, %v2316
  %v2318 = vsel %vm1272, %v2300, 0
  %v2320 = vsel %vm1272, %v2317, 0
  %2322 = vmatprep.subr.mxu0 0.0
  %2323 = vmatpush1.msra.mxu0 %v67
  %2324 = vmatprep.subr.mxu0 0.0
  %2325 = vmatpush1.msra.mxu0 %v68
  %2326 = vmatprep.subr.mxu0 0.0
  %2327 = vmatpush1.msra.mxu0 %v69
  %2328 = vmatprep.subr.mxu0 0.0
  %2329 = vmatpush1.msra.mxu0 %v70
  %2330 = vmatprep.subr.mxu0 0.0
  %2331 = vmatpush1.msra.mxu0 0.0
  %2332 = vmatprep.subr.mxu0 0.0
  %2333 = vmatpush1.msra.mxu0 0.0
  %2334 = vmatprep.subr.mxu0 0.0
  %2335 = vmatpush1.msra.mxu0 0.0
  %2336 = vmatprep.subr.mxu0 0.0
  %2337 = vmatpush1.msra.mxu0 0.0
  %2338 = vmatprep.subr.mxu0 0.0
  %2339 = vmatpush1.msra.mxu0 0.0
  %2340 = vmatprep.subr.mxu0 0.0
  %2341 = vmatpush1.msra.mxu0 0.0
  %2342 = vmatprep.subr.mxu0 0.0
  %2343 = vmatpush1.msra.mxu0 0.0
  %2344 = vmatprep.subr.mxu0 0.0
  %2345 = vmatpush1.msra.mxu0 0.0
  %2346 = vmatprep.subr.mxu0 0.0
  %2347 = vmatpush1.msra.mxu0 0.0
  %2348 = vmatprep.subr.mxu0 0.0
  %2349 = vmatpush1.msra.mxu0 0.0
  %2350 = vmatprep.subr.mxu0 0.0
  %2351 = vmatpush1.msra.mxu0 0.0
  %2352 = vmatprep.subr.mxu0 0.0
  %2353 = vmatpush1.msra.mxu0 0.0
  %2354 = vmatprep.subr.mxu0 0.0
  %2355 = vmatpush1.msra.mxu0 0.0
  %2356 = vmatprep.subr.mxu0 0.0
  %2357 = vmatpush1.msra.mxu0 0.0
  %2358 = vmatprep.subr.mxu0 0.0
  %2359 = vmatpush1.msra.mxu0 0.0
  %2360 = vmatprep.subr.mxu0 0.0
  %2361 = vmatpush1.msra.mxu0 0.0
  %2362 = vmatprep.subr.mxu0 0.0
  %2363 = vmatpush1.msra.mxu0 0.0
  %2364 = vmatprep.subr.mxu0 0.0
  %2365 = vmatpush1.msra.mxu0 0.0
  %2366 = vmatprep.subr.mxu0 0.0
  %2367 = vmatpush1.msra.mxu0 0.0
  %2368 = vmatprep.subr.mxu0 0.0
  %2369 = vmatpush1.msra.mxu0 0.0
  %2370 = vmatprep.subr.mxu0 0.0
  %2371 = vmatpush1.msra.mxu0 0.0
  %2372 = vmatprep.subr.mxu0 0.0
  %2373 = vmatpush1.msra.mxu0 0.0
  %2374 = vmatprep.subr.mxu0 0.0
  %2375 = vmatpush1.msra.mxu0 0.0
  %2376 = vmatprep.subr.mxu0 0.0
  %2377 = vmatpush1.msra.mxu0 0.0
  %2378 = vmatprep.subr.mxu0 0.0
  %2379 = vmatpush1.msra.mxu0 0.0
  %2380 = vmatprep.subr.mxu0 0.0
  %2381 = vmatpush1.msra.mxu0 0.0
  %2382 = vmatprep.subr.mxu0 0.0
  %2383 = vmatpush1.msra.mxu0 0.0
  %2384 = vmatprep.subr.mxu0 0.0
  %2385 = vmatpush1.msra.mxu0 0.0
  %2386 = vmatprep.mubr.f32.mxu0 0.0
  %2387 = vmatmul.mubr.f32.gmra.mrb[0].mxu0 %v2318
  %v2388 = vpop.f32.mrb[0].mxu0
  %v2389 = vadd.f32 %v71, %v2388
  %v2390 = vpop.f32.mrb[0].mxu0
  %2391 = vmatprep.mubr.f32.mxu0 0.0
  %2392 = vmatmul.mubr.f32.gmra.mrb[0].mxu0 %v2320
  %v2393 = vpop.f32.mrb[0].mxu0
  %v2394 = vadd.f32 %v71, %v2393
  %v2395 = vpop.f32.mrb[0].mxu0
  %2396 = vdwg.mxu0
  %v2397 = vld [vmem:[%s3] sm:$0xff]
  %v2398 = vld [vmem:[%s3 + $0x8] sm:$0xff]
  %v2399 = vld [vmem:[%s3 + $0x10] sm:$0xff]
  %v2400 = vld [vmem:[%s3 + $0x18] sm:$0xff]
  %v2401 = vld [vmem:[%s3 + $0x20] sm:$0xff]
  %v2402 = vld [vmem:[%s3 + $0x28] sm:$0xff]
  %v2403 = vld [vmem:[%s3 + $0x30] sm:$0xff]
  %v2404 = vld [vmem:[%s3 + $0x38] sm:$0xff]
  %v2405 = vld [vmem:[%s3 + $0x40] sm:$0xff]
  %v2406 = vld [vmem:[%s3 + $0x48] sm:$0xff]
  %v2407 = vld [vmem:[%s3 + $0x50] sm:$0xff]
  %v2408 = vld [vmem:[%s3 + $0x58] sm:$0xff]
  %v2409 = vld [vmem:[%s3 + $0x60] sm:$0xff]
  %v2410 = vld [vmem:[%s3 + $0x68] sm:$0xff]
  %v2411 = vld [vmem:[%s3 + $0x70] sm:$0xff]
  %v2412 = vld [vmem:[%s3 + $0x78] sm:$0xff]
  %v2413 = vld [vmem:[%s3 + $0x80] sm:$0xff]
  %v2414 = vld [vmem:[%s3 + $0x88] sm:$0xff]
  %v2415 = vld [vmem:[%s3 + $0x90] sm:$0xff]
  %v2416 = vld [vmem:[%s3 + $0x98] sm:$0xff]
  %v2417 = vld [vmem:[%s3 + $0xa0] sm:$0xff]
  %v2418 = vld [vmem:[%s3 + $0xa8] sm:$0xff]
  %v2419 = vld [vmem:[%s3 + $0xb0] sm:$0xff]
  %v2420 = vld [vmem:[%s3 + $0xb8] sm:$0xff]
  %v2421 = vld [vmem:[%s3 + $0xc0] sm:$0xff]
  %v2422 = vld [vmem:[%s3 + $0xc8] sm:$0xff]
  %v2423 = vld [vmem:[%s3 + $0xd0] sm:$0xff]
  %v2424 = vld [vmem:[%s3 + $0xd8] sm:$0xff]
  %v2425 = vld [vmem:[%s3 + $0xe0] sm:$0xff]
  %v2426 = vld [vmem:[%s3 + $0xe8] sm:$0xff]
  %v2427 = vld [vmem:[%s3 + $0xf0] sm:$0xff]
  %v2428 = vld [vmem:[%s3 + $0xf8] sm:$0xff]
  %v2429 = vld [vmem:[%s3 + $0x100] sm:$0xff]
  %v2430 = vld [vmem:[%s3 + $0x108] sm:$0xff]
  %v2431 = vld [vmem:[%s3 + $0x110] sm:$0xff]
  %v2432 = vld [vmem:[%s3 + $0x118] sm:$0xff]
  %v2433 = vld [vmem:[%s3 + $0x120] sm:$0xff]
  %v2434 = vld [vmem:[%s3 + $0x128] sm:$0xff]
  %v2435 = vld [vmem:[%s3 + $0x130] sm:$0xff]
  %v2436 = vld [vmem:[%s3 + $0x138] sm:$0xff]
  %v2437 = vld [vmem:[%s3 + $0x140] sm:$0xff]
  %v2438 = vld [vmem:[%s3 + $0x148] sm:$0xff]
  %v2439 = vld [vmem:[%s3 + $0x150] sm:$0xff]
  %v2440 = vld [vmem:[%s3 + $0x158] sm:$0xff]
  %v2441 = vld [vmem:[%s3 + $0x160] sm:$0xff]
  %v2442 = vld [vmem:[%s3 + $0x168] sm:$0xff]
  %v2443 = vld [vmem:[%s3 + $0x170] sm:$0xff]
  %v2444 = vld [vmem:[%s3 + $0x178] sm:$0xff]
  %v2445 = vld [vmem:[%s3 + $0x180] sm:$0xff]
  %v2446 = vld [vmem:[%s3 + $0x188] sm:$0xff]
  %v2447 = vld [vmem:[%s3 + $0x190] sm:$0xff]
  %v2448 = vld [vmem:[%s3 + $0x198] sm:$0xff]
  %v2449 = vld [vmem:[%s3 + $0x1a0] sm:$0xff]
  %v2450 = vld [vmem:[%s3 + $0x1a8] sm:$0xff]
  %v2451 = vld [vmem:[%s3 + $0x1b0] sm:$0xff]
  %v2452 = vld [vmem:[%s3 + $0x1b8] sm:$0xff]
  %v2453 = vld [vmem:[%s3 + $0x1c0] sm:$0xff]
  %v2454 = vld [vmem:[%s3 + $0x1c8] sm:$0xff]
  %v2455 = vld [vmem:[%s3 + $0x1d0] sm:$0xff]
  %v2456 = vld [vmem:[%s3 + $0x1d8] sm:$0xff]
  %v2457 = vld [vmem:[%s3 + $0x1e0] sm:$0xff]
  %v2458 = vld [vmem:[%s3 + $0x1e8] sm:$0xff]
  %v2459 = vld [vmem:[%s3 + $0x1f0] sm:$0xff]
  %v2460 = vld [vmem:[%s3 + $0x1f8] sm:$0xff]
  %vm2461 = vcmask 220160
  %v2463 = vsel %vm2461, %v2397, 0
  %v2466 = vsel %vm2461, %v2398, 0
  %v2469 = vsel %vm2461, %v2399, 0
  %v2472 = vsel %vm2461, %v2400, 0
  %v2475 = vsel %vm2461, %v2401, 0
  %v2478 = vsel %vm2461, %v2402, 0
  %v2481 = vsel %vm2461, %v2403, 0
  %v2484 = vsel %vm2461, %v2404, 0
  %v2487 = vsel %vm2461, %v2405, 0
  %v2490 = vsel %vm2461, %v2406, 0
  %v2493 = vsel %vm2461, %v2407, 0
  %v2496 = vsel %vm2461, %v2408, 0
  %v2499 = vsel %vm2461, %v2409, 0
  %v2502 = vsel %vm2461, %v2410, 0
  %v2505 = vsel %vm2461, %v2411, 0
  %v2508 = vsel %vm2461, %v2412, 0
  %v2511 = vsel %vm2461, %v2413, 0
  %v2514 = vsel %vm2461, %v2414, 0
  %v2517 = vsel %vm2461, %v2415, 0
  %v2520 = vsel %vm2461, %v2416, 0
  %v2523 = vsel %vm2461, %v2417, 0
  %v2526 = vsel %vm2461, %v2418, 0
  %v2529 = vsel %vm2461, %v2419, 0
  %v2532 = vsel %vm2461, %v2420, 0
  %v2535 = vsel %vm2461, %v2421, 0
  %v2538 = vsel %vm2461, %v2422, 0
  %v2541 = vsel %vm2461, %v2423, 0
  %v2544 = vsel %vm2461, %v2424, 0
  %v2547 = vsel %vm2461, %v2425, 0
  %v2550 = vsel %vm2461, %v2426, 0
  %v2553 = vsel %vm2461, %v2427, 0
  %v2556 = vsel %vm2461, %v2428, 0
  %v2559 = vsel %vm2461, %v2429, 0
  %v2562 = vsel %vm2461, %v2430, 0
  %v2565 = vsel %vm2461, %v2431, 0
  %v2568 = vsel %vm2461, %v2432, 0
  %v2571 = vsel %vm2461, %v2433, 0
  %v2574 = vsel %vm2461, %v2434, 0
  %v2577 = vsel %vm2461, %v2435, 0
  %v2580 = vsel %vm2461, %v2436, 0
  %v2583 = vsel %vm2461, %v2437, 0
  %v2586 = vsel %vm2461, %v2438, 0
  %v2589 = vsel %vm2461, %v2439, 0
  %v2592 = vsel %vm2461, %v2440, 0
  %v2595 = vsel %vm2461, %v2441, 0
  %v2598 = vsel %vm2461, %v2442, 0
  %v2601 = vsel %vm2461, %v2443, 0
  %v2604 = vsel %vm2461, %v2444, 0
  %v2607 = vsel %vm2461, %v2445, 0
  %v2610 = vsel %vm2461, %v2446, 0
  %v2613 = vsel %vm2461, %v2447, 0
  %v2616 = vsel %vm2461, %v2448, 0
  %v2619 = vsel %vm2461, %v2449, 0
  %v2622 = vsel %vm2461, %v2450, 0
  %v2625 = vsel %vm2461, %v2451, 0
  %v2628 = vsel %vm2461, %v2452, 0
  %v2631 = vsel %vm2461, %v2453, 0
  %v2634 = vsel %vm2461, %v2454, 0
  %v2637 = vsel %vm2461, %v2455, 0
  %v2640 = vsel %vm2461, %v2456, 0
  %v2643 = vsel %vm2461, %v2457, 0
  %v2646 = vsel %vm2461, %v2458, 0
  %v2649 = vsel %vm2461, %v2459, 0
  %v2652 = vsel %vm2461, %v2460, 0
  %vm2654 = vcmask 1042432
  %v2656 = vsel %vm2654, %v75, 0
  %2658 = vmatprep.subr.mxu0 0.0
  %2659 = vmatpush1.msra.mxu0 %v72
  %2660 = vmatprep.subr.mxu0 0.0
  %2661 = vmatpush1.msra.mxu0 %v73
  %2662 = vmatprep.subr.mxu0 0.0
  %2663 = vmatpush1.msra.mxu0 %v74
  %2664 = vmatprep.subr.mxu0 0.0
  %2665 = vmatpush1.msra.mxu0 %v2656
  %2666 = vmatprep.subr.mxu0 0.0
  %2667 = vmatpush1.msra.mxu0 0.0
  %2668 = vmatprep.subr.mxu0 0.0
  %2669 = vmatpush1.msra.mxu0 0.0
  %2670 = vmatprep.subr.mxu0 0.0
  %2671 = vmatpush1.msra.mxu0 0.0
  %2672 = vmatprep.subr.mxu0 0.0
  %2673 = vmatpush1.msra.mxu0 0.0
  %2674 = vmatprep.subr.mxu0 0.0
  %2675 = vmatpush1.msra.mxu0 0.0
  %2676 = vmatprep.subr.mxu0 0.0
  %2677 = vmatpush1.msra.mxu0 0.0
  %2678 = vmatprep.subr.mxu0 0.0
  %2679 = vmatpush1.msra.mxu0 0.0
  %2680 = vmatprep.subr.mxu0 0.0
  %2681 = vmatpush1.msra.mxu0 0.0
  %2682 = vmatprep.subr.mxu0 0.0
  %2683 = vmatpush1.msra.mxu0 0.0
  %2684 = vmatprep.subr.mxu0 0.0
  %2685 = vmatpush1.msra.mxu0 0.0
  %2686 = vmatprep.subr.mxu0 0.0
  %2687 = vmatpush1.msra.mxu0 0.0
  %2688 = vmatprep.subr.mxu0 0.0
  %2689 = vmatpush1.msra.mxu0 0.0
  %2690 = vmatprep.subr.mxu0 0.0
  %2691 = vmatpush1.msra.mxu0 0.0
  %2692 = vmatprep.subr.mxu0 0.0
  %2693 = vmatpush1.msra.mxu0 0.0
  %2694 = vmatprep.subr.mxu0 0.0
  %2695 = vmatpush1.msra.mxu0 0.0
  %2696 = vmatprep.subr.mxu0 0.0
  %2697 = vmatpush1.msra.mxu0 0.0
  %2698 = vmatprep.subr.mxu0 0.0
  %2699 = vmatpush1.msra.mxu0 0.0
  %2700 = vmatprep.subr.mxu0 0.0
  %2701 = vmatpush1.msra.mxu0 0.0
  %2702 = vmatprep.subr.mxu0 0.0
  %2703 = vmatpush1.msra.mxu0 0.0
  %2704 = vmatprep.subr.mxu0 0.0
  %2705 = vmatpush1.msra.mxu0 0.0
  %2706 = vmatprep.subr.mxu0 0.0
  %2707 = vmatpush1.msra.mxu0 0.0
  %2708 = vmatprep.subr.mxu0 0.0
  %2709 = vmatpush1.msra.mxu0 0.0
  %2710 = vmatprep.subr.mxu0 0.0
  %2711 = vmatpush1.msra.mxu0 0.0
  %2712 = vmatprep.subr.mxu0 0.0
  %2713 = vmatpush1.msra.mxu0 0.0
  %2714 = vmatprep.subr.mxu0 0.0
  %2715 = vmatpush1.msra.mxu0 0.0
  %2716 = vmatprep.subr.mxu0 0.0
  %2717 = vmatpush1.msra.mxu0 0.0
  %2718 = vmatprep.subr.mxu0 0.0
  %2719 = vmatpush1.msra.mxu0 0.0
  %2720 = vmatprep.subr.mxu0 0.0
  %2721 = vmatpush1.msra.mxu0 0.0
  %2722 = vmatprep.mubr.f32.mxu0 0.0
  %2723 = vmatmul.mubr.f32.gmra.mrb[0].mxu0 %v2463
  %v2724 = vpop.f32.mrb[0].mxu0
  %v2725 = vadd.f32 %v76, %v2724
  %v2726 = vpop.f32.mrb[0].mxu0
  %2727 = vmatprep.mubr.f32.mxu0 0.0
  %2728 = vmatmul.mubr.f32.gmra.mrb[0].mxu0 %v2466
  %v2729 = vpop.f32.mrb[0].mxu0
  %v2730 = vadd.f32 %v76, %v2729
  %v2731 = vpop.f32.mrb[0].mxu0
  %2732 = vmatprep.mubr.f32.mxu0 0.0
  %2733 = vmatmul.mubr.f32.gmra.mrb[0].mxu0 %v2469
  %v2734 = vpop.f32.mrb[0].mxu0
  %v2735 = vadd.f32 %v76, %v2734
  %v2736 = vpop.f32.mrb[0].mxu0
  %2737 = vmatprep.mubr.f32.mxu0 0.0
  %2738 = vmatmul.mubr.f32.gmra.mrb[0].mxu0 %v2472
  %v2739 = vpop.f32.mrb[0].mxu0
  %v2740 = vadd.f32 %v76, %v2739
  %v2741 = vpop.f32.mrb[0].mxu0
  %2742 = vmatprep.mubr.f32.mxu0 0.0
  %2743 = vmatmul.mubr.f32.gmra.mrb[0].mxu0 %v2475
  %v2744 = vpop.f32.mrb[0].mxu0
  %v2745 = vadd.f32 %v76, %v2744
  %v2746 = vpop.f32.mrb[0].mxu0
  %2747 = vmatprep.mubr.f32.mxu0 0.0
  %2748 = vmatmul.mubr.f32.gmra.mrb[0].mxu0 %v2478
  %v2749 = vpop.f32.mrb[0].mxu0
  %v2750 = vadd.f32 %v76, %v2749
  %v2751 = vpop.f32.mrb[0].mxu0
  %2752 = vmatprep.mubr.f32.mxu0 0.0
  %2753 = vmatmul.mubr.f32.gmra.mrb[0].mxu0 %v2481
  %v2754 = vpop.f32.mrb[0].mxu0
  %v2755 = vadd.f32 %v76, %v2754
  %v2756 = vpop.f32.mrb[0].mxu0
  %2757 = vmatprep.mubr.f32.mxu0 0.0
  %2758 = vmatmul.mubr.f32.gmra.mrb[0].mxu0 %v2484
  %v2759 = vpop.f32.mrb[0].mxu0
  %v2760 = vadd.f32 %v76, %v2759
  %v2761 = vpop.f32.mrb[0].mxu0
  %2762 = vmatprep.mubr.f32.mxu0 0.0
  %2763 = vmatmul.mubr.f32.gmra.mrb[0].mxu0 %v2487
  %v2764 = vpop.f32.mrb[0].mxu0
  %v2765 = vadd.f32 %v76, %v2764
  %v2766 = vpop.f32.mrb[0].mxu0
  %2767 = vmatprep.mubr.f32.mxu0 0.0
  %2768 = vmatmul.mubr.f32.gmra.mrb[0].mxu0 %v2490
  %v2769 = vpop.f32.mrb[0].mxu0
  %v2770 = vadd.f32 %v76, %v2769
  %v2771 = vpop.f32.mrb[0].mxu0
  %2772 = vmatprep.mubr.f32.mxu0 0.0
  %2773 = vmatmul.mubr.f32.gmra.mrb[0].mxu0 %v2493
  %v2774 = vpop.f32.mrb[0].mxu0
  %v2775 = vadd.f32 %v76, %v2774
  %v2776 = vpop.f32.mrb[0].mxu0
  %2777 = vmatprep.mubr.f32.mxu0 0.0
  %2778 = vmatmul.mubr.f32.gmra.mrb[0].mxu0 %v2496
  %v2779 = vpop.f32.mrb[0].mxu0
  %v2780 = vadd.f32 %v76, %v2779
  %v2781 = vpop.f32.mrb[0].mxu0
  %2782 = vmatprep.mubr.f32.mxu0 0.0
  %2783 = vmatmul.mubr.f32.gmra.mrb[0].mxu0 %v2499
  %v2784 = vpop.f32.mrb[0].mxu0
  %v2785 = vadd.f32 %v76, %v2784
  %v2786 = vpop.f32.mrb[0].mxu0
  %2787 = vmatprep.mubr.f32.mxu0 0.0
  %2788 = vmatmul.mubr.f32.gmra.mrb[0].mxu0 %v2502
  %v2789 = vpop.f32.mrb[0].mxu0
  %v2790 = vadd.f32 %v76, %v2789
  %v2791 = vpop.f32.mrb[0].mxu0
  %2792 = vmatprep.mubr.f32.mxu0 0.0
  %2793 = vmatmul.mubr.f32.gmra.mrb[0].mxu0 %v2505
  %v2794 = vpop.f32.mrb[0].mxu0
  %v2795 = vadd.f32 %v76, %v2794
  %v2796 = vpop.f32.mrb[0].mxu0
  %2797 = vmatprep.mubr.f32.mxu0 0.0
  %2798 = vmatmul.mubr.f32.gmra.mrb[0].mxu0 %v2508
  %v2799 = vpop.f32.mrb[0].mxu0
  %v2800 = vadd.f32 %v76, %v2799
  %v2801 = vpop.f32.mrb[0].mxu0
  %2802 = vmatprep.mubr.f32.mxu0 0.0
  %2803 = vmatmul.mubr.f32.gmra.mrb[0].mxu0 %v2511
  %v2804 = vpop.f32.mrb[0].mxu0
  %v2805 = vadd.f32 %v76, %v2804
  %v2806 = vpop.f32.mrb[0].mxu0
  %2807 = vmatprep.mubr.f32.mxu0 0.0
  %2808 = vmatmul.mubr.f32.gmra.mrb[0].mxu0 %v2514
  %v2809 = vpop.f32.mrb[0].mxu0
  %v2810 = vadd.f32 %v76, %v2809
  %v2811 = vpop.f32.mrb[0].mxu0
  %2812 = vmatprep.mubr.f32.mxu0 0.0
  %2813 = vmatmul.mubr.f32.gmra.mrb[0].mxu0 %v2517
  %v2814 = vpop.f32.mrb[0].mxu0
  %v2815 = vadd.f32 %v76, %v2814
  %v2816 = vpop.f32.mrb[0].mxu0
  %2817 = vmatprep.mubr.f32.mxu0 0.0
  %2818 = vmatmul.mubr.f32.gmra.mrb[0].mxu0 %v2520
  %v2819 = vpop.f32.mrb[0].mxu0
  %v2820 = vadd.f32 %v76, %v2819
  %v2821 = vpop.f32.mrb[0].mxu0
  %2822 = vmatprep.mubr.f32.mxu0 0.0
  %2823 = vmatmul.mubr.f32.gmra.mrb[0].mxu0 %v2523
  %v2824 = vpop.f32.mrb[0].mxu0
  %v2825 = vadd.f32 %v76, %v2824
  %v2826 = vpop.f32.mrb[0].mxu0
  %2827 = vmatprep.mubr.f32.mxu0 0.0
  %2828 = vmatmul.mubr.f32.gmra.mrb[0].mxu0 %v2526
  %v2829 = vpop.f32.mrb[0].mxu0
  %v2830 = vadd.f32 %v76, %v2829
  %v2831 = vpop.f32.mrb[0].mxu0
  %2832 = vmatprep.mubr.f32.mxu0 0.0
  %2833 = vmatmul.mubr.f32.gmra.mrb[0].mxu0 %v2529
  %v2834 = vpop.f32.mrb[0].mxu0
  %v2835 = vadd.f32 %v76, %v2834
  %v2836 = vpop.f32.mrb[0].mxu0
  %2837 = vmatprep.mubr.f32.mxu0 0.0
  %2838 = vmatmul.mubr.f32.gmra.mrb[0].mxu0 %v2532
  %v2839 = vpop.f32.mrb[0].mxu0
  %v2840 = vadd.f32 %v76, %v2839
  %v2841 = vpop.f32.mrb[0].mxu0
  %2842 = vmatprep.mubr.f32.mxu0 0.0
  %2843 = vmatmul.mubr.f32.gmra.mrb[0].mxu0 %v2535
  %v2844 = vpop.f32.mrb[0].mxu0
  %v2845 = vadd.f32 %v76, %v2844
  %v2846 = vpop.f32.mrb[0].mxu0
  %2847 = vmatprep.mubr.f32.mxu0 0.0
  %2848 = vmatmul.mubr.f32.gmra.mrb[0].mxu0 %v2538
  %v2849 = vpop.f32.mrb[0].mxu0
  %v2850 = vadd.f32 %v76, %v2849
  %v2851 = vpop.f32.mrb[0].mxu0
  %2852 = vmatprep.mubr.f32.mxu0 0.0
  %2853 = vmatmul.mubr.f32.gmra.mrb[0].mxu0 %v2541
  %v2854 = vpop.f32.mrb[0].mxu0
  %v2855 = vadd.f32 %v76, %v2854
  %v2856 = vpop.f32.mrb[0].mxu0
  %2857 = vmatprep.mubr.f32.mxu0 0.0
  %2858 = vmatmul.mubr.f32.gmra.mrb[0].mxu0 %v2544
  %v2859 = vpop.f32.mrb[0].mxu0
  %v2860 = vadd.f32 %v76, %v2859
  %v2861 = vpop.f32.mrb[0].mxu0
  %2862 = vmatprep.mubr.f32.mxu0 0.0
  %2863 = vmatmul.mubr.f32.gmra.mrb[0].mxu0 %v2547
  %v2864 = vpop.f32.mrb[0].mxu0
  %v2865 = vadd.f32 %v76, %v2864
  %v2866 = vpop.f32.mrb[0].mxu0
  %2867 = vmatprep.mubr.f32.mxu0 0.0
  %2868 = vmatmul.mubr.f32.gmra.mrb[0].mxu0 %v2550
  %v2869 = vpop.f32.mrb[0].mxu0
  %v2870 = vadd.f32 %v76, %v2869
  %v2871 = vpop.f32.mrb[0].mxu0
  %2872 = vmatprep.mubr.f32.mxu0 0.0
  %2873 = vmatmul.mubr.f32.gmra.mrb[0].mxu0 %v2553
  %v2874 = vpop.f32.mrb[0].mxu0
  %v2875 = vadd.f32 %v76, %v2874
  %v2876 = vpop.f32.mrb[0].mxu0
  %2877 = vmatprep.mubr.f32.mxu0 0.0
  %2878 = vmatmul.mubr.f32.gmra.mrb[0].mxu0 %v2556
  %v2879 = vpop.f32.mrb[0].mxu0
  %v2880 = vadd.f32 %v76, %v2879
  %v2881 = vpop.f32.mrb[0].mxu0
  %2882 = vmatprep.mubr.f32.mxu0 0.0
  %2883 = vmatmul.mubr.f32.gmra.mrb[0].mxu0 %v2559
  %v2884 = vpop.f32.mrb[0].mxu0
  %v2885 = vadd.f32 %v76, %v2884
  %v2886 = vpop.f32.mrb[0].mxu0
  %2887 = vmatprep.mubr.f32.mxu0 0.0
  %2888 = vmatmul.mubr.f32.gmra.mrb[0].mxu0 %v2562
  %v2889 = vpop.f32.mrb[0].mxu0
  %v2890 = vadd.f32 %v76, %v2889
  %v2891 = vpop.f32.mrb[0].mxu0
  %2892 = vmatprep.mubr.f32.mxu0 0.0
  %2893 = vmatmul.mubr.f32.gmra.mrb[0].mxu0 %v2565
  %v2894 = vpop.f32.mrb[0].mxu0
  %v2895 = vadd.f32 %v76, %v2894
  %v2896 = vpop.f32.mrb[0].mxu0
  %2897 = vmatprep.mubr.f32.mxu0 0.0
  %2898 = vmatmul.mubr.f32.gmra.mrb[0].mxu0 %v2568
  %v2899 = vpop.f32.mrb[0].mxu0
  %v2900 = vadd.f32 %v76, %v2899
  %v2901 = vpop.f32.mrb[0].mxu0
  %2902 = vmatprep.mubr.f32.mxu0 0.0
  %2903 = vmatmul.mubr.f32.gmra.mrb[0].mxu0 %v2571
  %v2904 = vpop.f32.mrb[0].mxu0
  %v2905 = vadd.f32 %v76, %v2904
  %v2906 = vpop.f32.mrb[0].mxu0
  %2907 = vmatprep.mubr.f32.mxu0 0.0
  %2908 = vmatmul.mubr.f32.gmra.mrb[0].mxu0 %v2574
  %v2909 = vpop.f32.mrb[0].mxu0
  %v2910 = vadd.f32 %v76, %v2909
  %v2911 = vpop.f32.mrb[0].mxu0
  %2912 = vmatprep.mubr.f32.mxu0 0.0
  %2913 = vmatmul.mubr.f32.gmra.mrb[0].mxu0 %v2577
  %v2914 = vpop.f32.mrb[0].mxu0
  %v2915 = vadd.f32 %v76, %v2914
  %v2916 = vpop.f32.mrb[0].mxu0
  %2917 = vmatprep.mubr.f32.mxu0 0.0
  %2918 = vmatmul.mubr.f32.gmra.mrb[0].mxu0 %v2580
  %v2919 = vpop.f32.mrb[0].mxu0
  %v2920 = vadd.f32 %v76, %v2919
  %v2921 = vpop.f32.mrb[0].mxu0
  %2922 = vmatprep.mubr.f32.mxu0 0.0
  %2923 = vmatmul.mubr.f32.gmra.mrb[0].mxu0 %v2583
  %v2924 = vpop.f32.mrb[0].mxu0
  %v2925 = vadd.f32 %v76, %v2924
  %v2926 = vpop.f32.mrb[0].mxu0
  %2927 = vmatprep.mubr.f32.mxu0 0.0
  %2928 = vmatmul.mubr.f32.gmra.mrb[0].mxu0 %v2586
  %v2929 = vpop.f32.mrb[0].mxu0
  %v2930 = vadd.f32 %v76, %v2929
  %v2931 = vpop.f32.mrb[0].mxu0
  %2932 = vmatprep.mubr.f32.mxu0 0.0
  %2933 = vmatmul.mubr.f32.gmra.mrb[0].mxu0 %v2589
  %v2934 = vpop.f32.mrb[0].mxu0
  %v2935 = vadd.f32 %v76, %v2934
  %v2936 = vpop.f32.mrb[0].mxu0
  %2937 = vmatprep.mubr.f32.mxu0 0.0
  %2938 = vmatmul.mubr.f32.gmra.mrb[0].mxu0 %v2592
  %v2939 = vpop.f32.mrb[0].mxu0
  %v2940 = vadd.f32 %v76, %v2939
  %v2941 = vpop.f32.mrb[0].mxu0
  %2942 = vmatprep.mubr.f32.mxu0 0.0
  %2943 = vmatmul.mubr.f32.gmra.mrb[0].mxu0 %v2595
  %v2944 = vpop.f32.mrb[0].mxu0
  %v2945 = vadd.f32 %v76, %v2944
  %v2946 = vpop.f32.mrb[0].mxu0
  %2947 = vmatprep.mubr.f32.mxu0 0.0
  %2948 = vmatmul.mubr.f32.gmra.mrb[0].mxu0 %v2598
  %v2949 = vpop.f32.mrb[0].mxu0
  %v2950 = vadd.f32 %v76, %v2949
  %v2951 = vpop.f32.mrb[0].mxu0
  %2952 = vmatprep.mubr.f32.mxu0 0.0
  %2953 = vmatmul.mubr.f32.gmra.mrb[0].mxu0 %v2601
  %v2954 = vpop.f32.mrb[0].mxu0
  %v2955 = vadd.f32 %v76, %v2954
  %v2956 = vpop.f32.mrb[0].mxu0
  %2957 = vmatprep.mubr.f32.mxu0 0.0
  %2958 = vmatmul.mubr.f32.gmra.mrb[0].mxu0 %v2604
  %v2959 = vpop.f32.mrb[0].mxu0
  %v2960 = vadd.f32 %v76, %v2959
  %v2961 = vpop.f32.mrb[0].mxu0
  %2962 = vmatprep.mubr.f32.mxu0 0.0
  %2963 = vmatmul.mubr.f32.gmra.mrb[0].mxu0 %v2607
  %v2964 = vpop.f32.mrb[0].mxu0
  %v2965 = vadd.f32 %v76, %v2964
  %v2966 = vpop.f32.mrb[0].mxu0
  %2967 = vmatprep.mubr.f32.mxu0 0.0
  %2968 = vmatmul.mubr.f32.gmra.mrb[0].mxu0 %v2610
  %v2969 = vpop.f32.mrb[0].mxu0
  %v2970 = vadd.f32 %v76, %v2969
  %v2971 = vpop.f32.mrb[0].mxu0
  %2972 = vmatprep.mubr.f32.mxu0 0.0
  %2973 = vmatmul.mubr.f32.gmra.mrb[0].mxu0 %v2613
  %v2974 = vpop.f32.mrb[0].mxu0
  %v2975 = vadd.f32 %v76, %v2974
  %v2976 = vpop.f32.mrb[0].mxu0
  %2977 = vmatprep.mubr.f32.mxu0 0.0
  %2978 = vmatmul.mubr.f32.gmra.mrb[0].mxu0 %v2616
  %v2979 = vpop.f32.mrb[0].mxu0
  %v2980 = vadd.f32 %v76, %v2979
  %v2981 = vpop.f32.mrb[0].mxu0
  %2982 = vmatprep.mubr.f32.mxu0 0.0
  %2983 = vmatmul.mubr.f32.gmra.mrb[0].mxu0 %v2619
  %v2984 = vpop.f32.mrb[0].mxu0
  %v2985 = vadd.f32 %v76, %v2984
  %v2986 = vpop.f32.mrb[0].mxu0
  %2987 = vmatprep.mubr.f32.mxu0 0.0
  %2988 = vmatmul.mubr.f32.gmra.mrb[0].mxu0 %v2622
  %v2989 = vpop.f32.mrb[0].mxu0
  %v2990 = vadd.f32 %v76, %v2989
  %v2991 = vpop.f32.mrb[0].mxu0
  %2992 = vmatprep.mubr.f32.mxu0 0.0
  %2993 = vmatmul.mubr.f32.gmra.mrb[0].mxu0 %v2625
  %v2994 = vpop.f32.mrb[0].mxu0
  %v2995 = vadd.f32 %v76, %v2994
  %v2996 = vpop.f32.mrb[0].mxu0
  %2997 = vmatprep.mubr.f32.mxu0 0.0
  %2998 = vmatmul.mubr.f32.gmra.mrb[0].mxu0 %v2628
  %v2999 = vpop.f32.mrb[0].mxu0
  %v3000 = vadd.f32 %v76, %v2999
  %v3001 = vpop.f32.mrb[0].mxu0
  %3002 = vmatprep.mubr.f32.mxu0 0.0
  %3003 = vmatmul.mubr.f32.gmra.mrb[0].mxu0 %v2631
  %v3004 = vpop.f32.mrb[0].mxu0
  %v3005 = vadd.f32 %v76, %v3004
  %v3006 = vpop.f32.mrb[0].mxu0
  %3007 = vmatprep.mubr.f32.mxu0 0.0
  %3008 = vmatmul.mubr.f32.gmra.mrb[0].mxu0 %v2634
  %v3009 = vpop.f32.mrb[0].mxu0
  %v3010 = vadd.f32 %v76, %v3009
  %v3011 = vpop.f32.mrb[0].mxu0
  %3012 = vmatprep.mubr.f32.mxu0 0.0
  %3013 = vmatmul.mubr.f32.gmra.mrb[0].mxu0 %v2637
  %v3014 = vpop.f32.mrb[0].mxu0
  %v3015 = vadd.f32 %v76, %v3014
  %v3016 = vpop.f32.mrb[0].mxu0
  %3017 = vmatprep.mubr.f32.mxu0 0.0
  %3018 = vmatmul.mubr.f32.gmra.mrb[0].mxu0 %v2640
  %v3019 = vpop.f32.mrb[0].mxu0
  %v3020 = vadd.f32 %v76, %v3019
  %v3021 = vpop.f32.mrb[0].mxu0
  %3022 = vmatprep.mubr.f32.mxu0 0.0
  %3023 = vmatmul.mubr.f32.gmra.mrb[0].mxu0 %v2643
  %v3024 = vpop.f32.mrb[0].mxu0
  %v3025 = vadd.f32 %v76, %v3024
  %v3026 = vpop.f32.mrb[0].mxu0
  %3027 = vmatprep.mubr.f32.mxu0 0.0
  %3028 = vmatmul.mubr.f32.gmra.mrb[0].mxu0 %v2646
  %v3029 = vpop.f32.mrb[0].mxu0
  %v3030 = vadd.f32 %v76, %v3029
  %v3031 = vpop.f32.mrb[0].mxu0
  %3032 = vmatprep.mubr.f32.mxu0 0.0
  %3033 = vmatmul.mubr.f32.gmra.mrb[0].mxu0 %v2649
  %v3034 = vpop.f32.mrb[0].mxu0
  %v3035 = vadd.f32 %v76, %v3034
  %v3036 = vpop.f32.mrb[0].mxu0
  %3037 = vmatprep.mubr.f32.mxu0 0.0
  %3038 = vmatmul.mubr.f32.gmra.mrb[0].mxu0 %v2652
  %v3039 = vpop.f32.mrb[0].mxu0
  %v3040 = vadd.f32 %v76, %v3039
  %v3041 = vpop.f32.mrb[0].mxu0
  %3042 = vdwg.mxu0
  %v3043 = vmax.f32 %v2725, 0.0
  %v3044 = vmax.f32 %v2730, 0.0
  %v3045 = vmax.f32 %v2735, 0.0
  %v3046 = vmax.f32 %v2740, 0.0
  %v3047 = vmax.f32 %v2745, 0.0
  %v3048 = vmax.f32 %v2750, 0.0
  %v3049 = vmax.f32 %v2755, 0.0
  %v3050 = vmax.f32 %v2760, 0.0
  %v3051 = vmax.f32 %v2765, 0.0
  %v3052 = vmax.f32 %v2770, 0.0
  %v3053 = vmax.f32 %v2775, 0.0
  %v3054 = vmax.f32 %v2780, 0.0
  %v3055 = vmax.f32 %v2785, 0.0
  %v3056 = vmax.f32 %v2790, 0.0
  %v3057 = vmax.f32 %v2795, 0.0
  %v3058 = vmax.f32 %v2800, 0.0
  %v3059 = vmax.f32 %v2805, 0.0
  %v3060 = vmax.f32 %v2810, 0.0
  %v3061 = vmax.f32 %v2815, 0.0
  %v3062 = vmax.f32 %v2820, 0.0
  %v3063 = vmax.f32 %v2825, 0.0
  %v3064 = vmax.f32 %v2830, 0.0
  %v3065 = vmax.f32 %v2835, 0.0
  %v3066 = vmax.f32 %v2840, 0.0
  %v3067 = vmax.f32 %v2845, 0.0
  %v3068 = vmax.f32 %v2850, 0.0
  %v3069 = vmax.f32 %v2855, 0.0
  %v3070 = vmax.f32 %v2860, 0.0
  %v3071 = vmax.f32 %v2865, 0.0
  %v3072 = vmax.f32 %v2870, 0.0
  %v3073 = vmax.f32 %v2875, 0.0
  %v3074 = vmax.f32 %v2880, 0.0
  %v3075 = vmax.f32 %v2885, 0.0
  %v3076 = vmax.f32 %v2890, 0.0
  %v3077 = vmax.f32 %v2895, 0.0
  %v3078 = vmax.f32 %v2900, 0.0
  %v3079 = vmax.f32 %v2905, 0.0
  %v3080 = vmax.f32 %v2910, 0.0
  %v3081 = vmax.f32 %v2915, 0.0
  %v3082 = vmax.f32 %v2920, 0.0
  %v3083 = vmax.f32 %v2925, 0.0
  %v3084 = vmax.f32 %v2930, 0.0
  %v3085 = vmax.f32 %v2935, 0.0
  %v3086 = vmax.f32 %v2940, 0.0
  %v3087 = vmax.f32 %v2945, 0.0
  %v3088 = vmax.f32 %v2950, 0.0
  %v3089 = vmax.f32 %v2955, 0.0
  %v3090 = vmax.f32 %v2960, 0.0
  %v3091 = vmax.f32 %v2965, 0.0
  %v3092 = vmax.f32 %v2970, 0.0
  %v3093 = vmax.f32 %v2975, 0.0
  %v3094 = vmax.f32 %v2980, 0.0
  %v3095 = vmax.f32 %v2985, 0.0
  %v3096 = vmax.f32 %v2990, 0.0
  %v3097 = vmax.f32 %v2995, 0.0
  %v3098 = vmax.f32 %v3000, 0.0
  %v3099 = vmax.f32 %v3005, 0.0
  %v3100 = vmax.f32 %v3010, 0.0
  %v3101 = vmax.f32 %v3015, 0.0
  %v3102 = vmax.f32 %v3020, 0.0
  %v3103 = vmax.f32 %v3025, 0.0
  %v3104 = vmax.f32 %v3030, 0.0
  %v3105 = vmax.f32 %v3035, 0.0
  %v3106 = vmax.f32 %v3040, 0.0
  %v3107 = vld [vmem:[%s2] sm:$0x3]
  %v3108 = vadd.f32 %v3107, %v2389
  %v3110 = vrot.slane %v2389, 2
  %v3112 = vadd.f32 %v3108, %v3110
  %v3113 = vrot.slane %v2389, 4
  %v3115 = vadd.f32 %v3112, %v3113
  %v3116 = vrot.slane %v2389, 6
  %v3118 = vadd.f32 %v3115, %v3116
  %v3119 = vadd.f32 %v3118, %v2394
  %v3121 = vrot.slane %v2394, 2
  %v3123 = vadd.f32 %v3119, %v3121
  %v3124 = vrot.slane %v2394, 4
  %v3126 = vadd.f32 %v3123, %v3124
  %v3127 = vrot.slane %v2394, 6
  %v3129 = vadd.f32 %v3126, %v3127
  %v3131 = vrot.slane %v3112, 6
  %v3134 = vrot.slane %v3115, 4
  %v3137 = vrot.slane %v3118, 2
  %v3140 = vrot.slane %v3123, 6
  %v3143 = vrot.slane %v3126, 4
  %v3146 = vrot.slane %v3129, 2
  %v3148 = vsel %vm242, %v3108, %v3131
  %v3149 = vsel %vm110, %v3148, %v3134
  %vm3150 = vcmask 1045504
  %v3151 = vsel %vm3150, %v3149, %v3137
  %v3152 = vsel %vm242, %v3119, %v3140
  %v3153 = vsel %vm110, %v3152, %v3143
  %v3154 = vsel %vm3150, %v3153, %v3146
  %v3155 = vadd.f32 %v3151, 0.5
  %v3156 = vadd.f32 %v3154, 0.5
  %v3157 = vfloor.f32 %v3155
  %v3158 = vfloor.f32 %v3156
  %v3159 = vmax.f32 %v3157, 0.0
  %v3160 = vmax.f32 %v3158, 0.0
  %v3161 = vmin.f32 %v3159, 15.0
  %v3162 = vmin.f32 %v3160, 15.0
  %v3163 = vcvt.f32.s32.to.zero.pseudo %v3161
  %v3164 = vcvt.f32.s32.to.zero.pseudo %v3162
  %v3165 = vmul.u32 %v3163, 16
  %v3166 = vmul.u32 %v3164, 16
  %3167 = vrot.lane.b32.xlu0 %v3163, 127
  %v3168 = vpop.permute.xlu0 %3167
  %3169 = vrot.lane.b32.xlu0 %v3164, 127
  %v3170 = vpop.permute.xlu0 %3169
  %v3171 = vadd.s32 %v3165, %v3168
  %v3172 = vadd.s32 %v3166, %v3170
  %v3173 = vlaneseq
  %v3174 = vand.u32 %v3173, 127
  %v3175 = vadd.s32 %v3174, 128
  %3176 = vset.pattern.permute.xlu0 0
  %3177 = vperm.xlu0 %3176, %v3171
  %v3178 = vpop.permute.xlu0 %3177
  %3179 = vset.pattern.permute.xlu0 0
  %3180 = vperm.xlu0 %3179, %v3172
  %v3181 = vpop.permute.xlu0 %3180
  %vm3182 = vcmp.eq.s32.totalorder %v3174, %v3178
  %vm3183 = vcmp.eq.s32.totalorder %v3175, %v3178
  %vm3184 = vcmp.eq.s32.totalorder %v3174, %v3181
  %vm3185 = vcmp.eq.s32.totalorder %v3175, %v3181
  %v3186 = vlaneseq
  %v3187 = vshrl.u32 %v3186, 7
  %v3188 = vadd.s32 %v3187, 8
  %vm3189 = vcmp.lt.s32.totalorder %v3187, 0
  %v3190 = vsub.s32 0, %v3187
  %v3191 = vsel %vm3189, %v3190, %v3187
  %v3192 = vshrl.u32 %v3191, 1
  %v3193 = vand.u32 %v3191, 1
  %v3194 = vsub.s32 0, %v3193
  %v3195 = vsel %vm3189, %v3194, %v3193
  %vm3196 = vcmp.lt.s32.totalorder %v3188, 0
  %v3197 = vsub.s32 0, %v3188
  %v3198 = vsel %vm3196, %v3197, %v3188
  %v3199 = vshrl.u32 %v3198, 1
  %v3200 = vand.u32 %v3198, 1
  %v3201 = vsub.s32 0, %v3200
  %v3202 = vsel %vm3196, %v3201, %v3200
  %vm3203 = vcmp.ne.s32.totalorder %v3195, 0
  %vm3204 = vcmp.ne.s32.totalorder %v3202, 0
  %vm3205 = vcmp.lt.s32.totalorder %v3195, 0
  %vm3206 = vcmp.lt.s32.totalorder %v3202, 0
  %vm3207 = vmand %vm3205, %vm3203
  %vm3208 = vmand %vm3206, %vm3204
  %v3209 = vadd.s32 %v3195, 2
  %v3210 = vadd.s32 %v3202, 2
  %v3211 = vsel %vm3207, %v3209, %v3195
  %v3212 = vsel %vm3208, %v3210, %v3202
  %vm3213 = vcmp.eq.s32.totalorder %v3211, 0
  %vm3214 = vcmp.eq.s32.totalorder %v3212, 0
  %v3215 = vsel %vm3213, 1, 0
  %v3216 = vsel %vm3214, 1, 0
  %vm3217 = vcmp.eq.s32.totalorder %v3215, 1
  %vm3218 = vcmp.eq.s32.totalorder %v3216, 1
  %vm3219 = vmand %vm3182, %vm3217
  %vm3220 = vmand %vm3183, %vm3217
  %vm3221 = vmand %vm3184, %vm3218
  %vm3222 = vmand %vm3185, %vm3218
  %v3223 = vsel %vm3219, 1.0, 0.0
  %v3224 = vsel %vm3220, 1.0, 0.0
  %v3225 = vsel %vm3221, 1.0, 0.0
  %v3226 = vsel %vm3222, 1.0, 0.0
  %vm3227 = vcmp.eq.s32.totalorder %v3211, 1
  %vm3228 = vcmp.eq.s32.totalorder %v3212, 1
  %v3229 = vsel %vm3227, 1, 0
  %v3230 = vsel %vm3228, 1, 0
  %vm3231 = vcmp.eq.s32.totalorder %v3229, 1
  %vm3232 = vcmp.eq.s32.totalorder %v3230, 1
  %vm3233 = vmand %vm3182, %vm3231
  %vm3234 = vmand %vm3183, %vm3231
  %vm3235 = vmand %vm3184, %vm3232
  %vm3236 = vmand %vm3185, %vm3232
  %v3237 = vsel %vm3233, 1.0, 0.0
  %v3238 = vsel %vm3234, 1.0, 0.0
  %v3239 = vsel %vm3235, 1.0, 0.0
  %v3240 = vsel %vm3236, 1.0, 0.0
  %3241 = vmatprep.subr.mxu0 0.0
  %3242 = vmatpush1.msra.mxu0 %v3075
  %3243 = vmatprep.subr.mxu0 0.0
  %3244 = vmatpush1.msra.mxu0 %v3076
  %3245 = vmatprep.subr.mxu0 0.0
  %3246 = vmatpush1.msra.mxu0 %v3077
  %3247 = vmatprep.subr.mxu0 0.0
  %3248 = vmatpush1.msra.mxu0 %v3078
  %3249 = vmatprep.subr.mxu0 0.0
  %3250 = vmatpush1.msra.mxu0 %v3079
  %3251 = vmatprep.subr.mxu0 0.0
  %3252 = vmatpush1.msra.mxu0 %v3080
  %3253 = vmatprep.subr.mxu0 0.0
  %3254 = vmatpush1.msra.mxu0 %v3081
  %3255 = vmatprep.subr.mxu0 0.0
  %3256 = vmatpush1.msra.mxu0 %v3082
  %3257 = vmatprep.subr.mxu0 0.0
  %3258 = vmatpush1.msra.mxu0 %v3083
  %3259 = vmatprep.subr.mxu0 0.0
  %3260 = vmatpush1.msra.mxu0 %v3084
  %3261 = vmatprep.subr.mxu0 0.0
  %3262 = vmatpush1.msra.mxu0 %v3085
  %3263 = vmatprep.subr.mxu0 0.0
  %3264 = vmatpush1.msra.mxu0 %v3086
  %3265 = vmatprep.subr.mxu0 0.0
  %3266 = vmatpush1.msra.mxu0 %v3087
  %3267 = vmatprep.subr.mxu0 0.0
  %3268 = vmatpush1.msra.mxu0 %v3088
  %3269 = vmatprep.subr.mxu0 0.0
  %3270 = vmatpush1.msra.mxu0 %v3089
  %3271 = vmatprep.subr.mxu0 0.0
  %3272 = vmatpush1.msra.mxu0 %v3090
  %3273 = vmatprep.subr.mxu0 0.0
  %3274 = vmatpush1.msra.mxu0 %v3091
  %3275 = vmatprep.subr.mxu0 0.0
  %3276 = vmatpush1.msra.mxu0 %v3092
  %3277 = vmatprep.subr.mxu0 0.0
  %3278 = vmatpush1.msra.mxu0 %v3093
  %3279 = vmatprep.subr.mxu0 0.0
  %3280 = vmatpush1.msra.mxu0 %v3094
  %3281 = vmatprep.subr.mxu0 0.0
  %3282 = vmatpush1.msra.mxu0 %v3095
  %3283 = vmatprep.subr.mxu0 0.0
  %3284 = vmatpush1.msra.mxu0 %v3096
  %3285 = vmatprep.subr.mxu0 0.0
  %3286 = vmatpush1.msra.mxu0 %v3097
  %3287 = vmatprep.subr.mxu0 0.0
  %3288 = vmatpush1.msra.mxu0 %v3098
  %3289 = vmatprep.subr.mxu0 0.0
  %3290 = vmatpush1.msra.mxu0 %v3099
  %3291 = vmatprep.subr.mxu0 0.0
  %3292 = vmatpush1.msra.mxu0 %v3100
  %3293 = vmatprep.subr.mxu0 0.0
  %3294 = vmatpush1.msra.mxu0 %v3101
  %3295 = vmatprep.subr.mxu0 0.0
  %3296 = vmatpush1.msra.mxu0 %v3102
  %3297 = vmatprep.subr.mxu0 0.0
  %3298 = vmatpush1.msra.mxu0 %v3103
  %3299 = vmatprep.subr.mxu0 0.0
  %3300 = vmatpush1.msra.mxu0 %v3104
  %3301 = vmatprep.subr.mxu0 0.0
  %3302 = vmatpush1.msra.mxu0 %v3105
  %3303 = vmatprep.subr.mxu0 0.0
  %3304 = vmatpush1.msra.mxu0 %v3106
  %3305 = vmatprep.mubr.f32.mxu0 %v3238
  %3306 = vmatmul.mubr.f32.gmra.mrb[0].mxu0 %v3237
  %v3307 = vpop.f32.mrb[0].mxu0
  %v3308 = vadd.f32 0.0, %v3307
  %v3309 = vpop.f32.mrb[0].mxu0
  %3310 = vmatprep.mubr.f32.mxu0 %v3240
  %3311 = vmatmul.mubr.f32.gmra.mrb[0].mxu0 %v3239
  %v3312 = vpop.f32.mrb[0].mxu0
  %v3313 = vadd.f32 0.0, %v3312
  %v3314 = vpop.f32.mrb[0].mxu0
  %3315 = vdwg.mxu0
  %3316 = vmatprep.subr.mxu0 0.0
  %3317 = vmatpush1.msra.mxu0 %v3043
  %3318 = vmatprep.subr.mxu0 0.0
  %3319 = vmatpush1.msra.mxu0 %v3044
  %3320 = vmatprep.subr.mxu0 0.0
  %3321 = vmatpush1.msra.mxu0 %v3045
  %3322 = vmatprep.subr.mxu0 0.0
  %3323 = vmatpush1.msra.mxu0 %v3046
  %3324 = vmatprep.subr.mxu0 0.0
  %3325 = vmatpush1.msra.mxu0 %v3047
  %3326 = vmatprep.subr.mxu0 0.0
  %3327 = vmatpush1.msra.mxu0 %v3048
  %3328 = vmatprep.subr.mxu0 0.0
  %3329 = vmatpush1.msra.mxu0 %v3049
  %3330 = vmatprep.subr.mxu0 0.0
  %3331 = vmatpush1.msra.mxu0 %v3050
  %3332 = vmatprep.subr.mxu0 0.0
  %3333 = vmatpush1.msra.mxu0 %v3051
  %3334 = vmatprep.subr.mxu0 0.0
  %3335 = vmatpush1.msra.mxu0 %v3052
  %3336 = vmatprep.subr.mxu0 0.0
  %3337 = vmatpush1.msra.mxu0 %v3053
  %3338 = vmatprep.subr.mxu0 0.0
  %3339 = vmatpush1.msra.mxu0 %v3054
  %3340 = vmatprep.subr.mxu0 0.0
  %3341 = vmatpush1.msra.mxu0 %v3055
  %3342 = vmatprep.subr.mxu0 0.0
  %3343 = vmatpush1.msra.mxu0 %v3056
  %3344 = vmatprep.subr.mxu0 0.0
  %3345 = vmatpush1.msra.mxu0 %v3057
  %3346 = vmatprep.subr.mxu0 0.0
  %3347 = vmatpush1.msra.mxu0 %v3058
  %3348 = vmatprep.subr.mxu0 0.0
  %3349 = vmatpush1.msra.mxu0 %v3059
  %3350 = vmatprep.subr.mxu0 0.0
  %3351 = vmatpush1.msra.mxu0 %v3060
  %3352 = vmatprep.subr.mxu0 0.0
  %3353 = vmatpush1.msra.mxu0 %v3061
  %3354 = vmatprep.subr.mxu0 0.0
  %3355 = vmatpush1.msra.mxu0 %v3062
  %3356 = vmatprep.subr.mxu0 0.0
  %3357 = vmatpush1.msra.mxu0 %v3063
  %3358 = vmatprep.subr.mxu0 0.0
  %3359 = vmatpush1.msra.mxu0 %v3064
  %3360 = vmatprep.subr.mxu0 0.0
  %3361 = vmatpush1.msra.mxu0 %v3065
  %3362 = vmatprep.subr.mxu0 0.0
  %3363 = vmatpush1.msra.mxu0 %v3066
  %3364 = vmatprep.subr.mxu0 0.0
  %3365 = vmatpush1.msra.mxu0 %v3067
  %3366 = vmatprep.subr.mxu0 0.0
  %3367 = vmatpush1.msra.mxu0 %v3068
  %3368 = vmatprep.subr.mxu0 0.0
  %3369 = vmatpush1.msra.mxu0 %v3069
  %3370 = vmatprep.subr.mxu0 0.0
  %3371 = vmatpush1.msra.mxu0 %v3070
  %3372 = vmatprep.subr.mxu0 0.0
  %3373 = vmatpush1.msra.mxu0 %v3071
  %3374 = vmatprep.subr.mxu0 0.0
  %3375 = vmatpush1.msra.mxu0 %v3072
  %3376 = vmatprep.subr.mxu0 0.0
  %3377 = vmatpush1.msra.mxu0 %v3073
  %3378 = vmatprep.subr.mxu0 0.0
  %3379 = vmatpush1.msra.mxu0 %v3074
  %3380 = vmatprep.mubr.f32.mxu0 %v3224
  %3381 = vmatmul.mubr.f32.gmra.mrb[0].mxu0 %v3223
  %v3382 = vpop.f32.mrb[0].mxu0
  %v3383 = vadd.f32 %v3308, %v3382
  %v3384 = vpop.f32.mrb[0].mxu0
  %3385 = vmatprep.mubr.f32.mxu0 %v3226
  %3386 = vmatmul.mubr.f32.gmra.mrb[0].mxu0 %v3225
  %v3387 = vpop.f32.mrb[0].mxu0
  %v3388 = vadd.f32 %v3313, %v3387
  %v3389 = vpop.f32.mrb[0].mxu0
  %3390 = vdwg.mxu0
  %vm3391 = vcmask 64512
  %v3393 = vsel %vm3391, %v3383, 0
  %v3396 = vsel %vm3391, %v3388, 0
  %3398 = vmatprep.subr.mxu0 0.0
  %3399 = vmatpush1.msra.mxu0 %v78
  %3400 = vmatprep.subr.mxu0 0.0
  %3401 = vmatpush1.msra.mxu0 0.0
  %3402 = vmatprep.subr.mxu0 0.0
  %3403 = vmatpush1.msra.mxu0 0.0
  %3404 = vmatprep.subr.mxu0 0.0
  %3405 = vmatpush1.msra.mxu0 0.0
  %3406 = vmatprep.subr.mxu0 0.0
  %3407 = vmatpush1.msra.mxu0 0.0
  %3408 = vmatprep.subr.mxu0 0.0
  %3409 = vmatpush1.msra.mxu0 0.0
  %3410 = vmatprep.subr.mxu0 0.0
  %3411 = vmatpush1.msra.mxu0 0.0
  %3412 = vmatprep.subr.mxu0 0.0
  %3413 = vmatpush1.msra.mxu0 0.0
  %3414 = vmatprep.subr.mxu0 0.0
  %3415 = vmatpush1.msra.mxu0 0.0
  %3416 = vmatprep.subr.mxu0 0.0
  %3417 = vmatpush1.msra.mxu0 0.0
  %3418 = vmatprep.subr.mxu0 0.0
  %3419 = vmatpush1.msra.mxu0 0.0
  %3420 = vmatprep.subr.mxu0 0.0
  %3421 = vmatpush1.msra.mxu0 0.0
  %3422 = vmatprep.subr.mxu0 0.0
  %3423 = vmatpush1.msra.mxu0 0.0
  %3424 = vmatprep.subr.mxu0 0.0
  %3425 = vmatpush1.msra.mxu0 0.0
  %3426 = vmatprep.subr.mxu0 0.0
  %3427 = vmatpush1.msra.mxu0 0.0
  %3428 = vmatprep.subr.mxu0 0.0
  %3429 = vmatpush1.msra.mxu0 0.0
  %3430 = vmatprep.subr.mxu0 0.0
  %3431 = vmatpush1.msra.mxu0 0.0
  %3432 = vmatprep.subr.mxu0 0.0
  %3433 = vmatpush1.msra.mxu0 0.0
  %3434 = vmatprep.subr.mxu0 0.0
  %3435 = vmatpush1.msra.mxu0 0.0
  %3436 = vmatprep.subr.mxu0 0.0
  %3437 = vmatpush1.msra.mxu0 0.0
  %3438 = vmatprep.subr.mxu0 0.0
  %3439 = vmatpush1.msra.mxu0 0.0
  %3440 = vmatprep.subr.mxu0 0.0
  %3441 = vmatpush1.msra.mxu0 0.0
  %3442 = vmatprep.subr.mxu0 0.0
  %3443 = vmatpush1.msra.mxu0 0.0
  %3444 = vmatprep.subr.mxu0 0.0
  %3445 = vmatpush1.msra.mxu0 0.0
  %3446 = vmatprep.subr.mxu0 0.0
  %3447 = vmatpush1.msra.mxu0 0.0
  %3448 = vmatprep.subr.mxu0 0.0
  %3449 = vmatpush1.msra.mxu0 0.0
  %3450 = vmatprep.subr.mxu0 0.0
  %3451 = vmatpush1.msra.mxu0 0.0
  %3452 = vmatprep.subr.mxu0 0.0
  %3453 = vmatpush1.msra.mxu0 0.0
  %3454 = vmatprep.subr.mxu0 0.0
  %3455 = vmatpush1.msra.mxu0 0.0
  %3456 = vmatprep.subr.mxu0 0.0
  %3457 = vmatpush1.msra.mxu0 0.0
  %3458 = vmatprep.subr.mxu0 0.0
  %3459 = vmatpush1.msra.mxu0 0.0
  %3460 = vmatprep.subr.mxu0 0.0
  %3461 = vmatpush1.msra.mxu0 0.0
  %3462 = vmatprep.mubr.f32.mxu0 0.0
  %3463 = vmatmul.mubr.f32.gmra.mrb[0].mxu0 %v3393
  %v3464 = vpop.f32.mrb[0].mxu0
  %v3465 = vadd.f32 0.0, %v3464
  %v3466 = vpop.f32.mrb[0].mxu0
  %3467 = vmatprep.mubr.f32.mxu0 0.0
  %3468 = vmatmul.mubr.f32.gmra.mrb[0].mxu0 %v3396
  %v3469 = vpop.f32.mrb[0].mxu0
  %v3470 = vadd.f32 0.0, %v3469
  %v3471 = vpop.f32.mrb[0].mxu0
  %3472 = vdwg.mxu0
  %vm3473 = vcmask 15360
  %v3474 = vsel %vm3473, %v2389, 0
  %v3476 = vsel %vm3473, %v2394, 0
  %v3479 = vsel %vm242, %v77, 0
  %3481 = vmatprep.subr.mxu0 0.0
  %3482 = vmatpush1.msra.mxu0 %v3479
  %3483 = vmatprep.subr.mxu0 0.0
  %3484 = vmatpush1.msra.mxu0 0.0
  %3485 = vmatprep.subr.mxu0 0.0
  %3486 = vmatpush1.msra.mxu0 0.0
  %3487 = vmatprep.subr.mxu0 0.0
  %3488 = vmatpush1.msra.mxu0 0.0
  %3489 = vmatprep.subr.mxu0 0.0
  %3490 = vmatpush1.msra.mxu0 0.0
  %3491 = vmatprep.subr.mxu0 0.0
  %3492 = vmatpush1.msra.mxu0 0.0
  %3493 = vmatprep.subr.mxu0 0.0
  %3494 = vmatpush1.msra.mxu0 0.0
  %3495 = vmatprep.subr.mxu0 0.0
  %3496 = vmatpush1.msra.mxu0 0.0
  %3497 = vmatprep.subr.mxu0 0.0
  %3498 = vmatpush1.msra.mxu0 0.0
  %3499 = vmatprep.subr.mxu0 0.0
  %3500 = vmatpush1.msra.mxu0 0.0
  %3501 = vmatprep.subr.mxu0 0.0
  %3502 = vmatpush1.msra.mxu0 0.0
  %3503 = vmatprep.subr.mxu0 0.0
  %3504 = vmatpush1.msra.mxu0 0.0
  %3505 = vmatprep.subr.mxu0 0.0
  %3506 = vmatpush1.msra.mxu0 0.0
  %3507 = vmatprep.subr.mxu0 0.0
  %3508 = vmatpush1.msra.mxu0 0.0
  %3509 = vmatprep.subr.mxu0 0.0
  %3510 = vmatpush1.msra.mxu0 0.0
  %3511 = vmatprep.subr.mxu0 0.0
  %3512 = vmatpush1.msra.mxu0 0.0
  %3513 = vmatprep.subr.mxu0 0.0
  %3514 = vmatpush1.msra.mxu0 0.0
  %3515 = vmatprep.subr.mxu0 0.0
  %3516 = vmatpush1.msra.mxu0 0.0
  %3517 = vmatprep.subr.mxu0 0.0
  %3518 = vmatpush1.msra.mxu0 0.0
  %3519 = vmatprep.subr.mxu0 0.0
  %3520 = vmatpush1.msra.mxu0 0.0
  %3521 = vmatprep.subr.mxu0 0.0
  %3522 = vmatpush1.msra.mxu0 0.0
  %3523 = vmatprep.subr.mxu0 0.0
  %3524 = vmatpush1.msra.mxu0 0.0
  %3525 = vmatprep.subr.mxu0 0.0
  %3526 = vmatpush1.msra.mxu0 0.0
  %3527 = vmatprep.subr.mxu0 0.0
  %3528 = vmatpush1.msra.mxu0 0.0
  %3529 = vmatprep.subr.mxu0 0.0
  %3530 = vmatpush1.msra.mxu0 0.0
  %3531 = vmatprep.subr.mxu0 0.0
  %3532 = vmatpush1.msra.mxu0 0.0
  %3533 = vmatprep.subr.mxu0 0.0
  %3534 = vmatpush1.msra.mxu0 0.0
  %3535 = vmatprep.subr.mxu0 0.0
  %3536 = vmatpush1.msra.mxu0 0.0
  %3537 = vmatprep.subr.mxu0 0.0
  %3538 = vmatpush1.msra.mxu0 0.0
  %3539 = vmatprep.subr.mxu0 0.0
  %3540 = vmatpush1.msra.mxu0 0.0
  %3541 = vmatprep.subr.mxu0 0.0
  %3542 = vmatpush1.msra.mxu0 0.0
  %3543 = vmatprep.subr.mxu0 0.0
  %3544 = vmatpush1.msra.mxu0 0.0
  %3545 = vmatprep.mubr.f32.mxu0 0.0
  %3546 = vmatmul.mubr.f32.gmra.mrb[0].mxu0 %v3474
  %v3547 = vpop.f32.mrb[0].mxu0
  %v3548 = vadd.f32 %v3465, %v3547
  %v3549 = vpop.f32.mrb[0].mxu0
  %3550 = vmatprep.mubr.f32.mxu0 0.0
  %3551 = vmatmul.mubr.f32.gmra.mrb[0].mxu0 %v3476
  %v3552 = vpop.f32.mrb[0].mxu0
  %v3553 = vadd.f32 %v3470, %v3552
  %v3554 = vpop.f32.mrb[0].mxu0
  %3555 = vdwg.mxu0
  %v3556 = vadd.f32 %v3548, %v83
  %v3557 = vadd.f32 %v3553, %v83
  %v3560 = vcombine.high %v3556, %v3556
  %v3562 = vunpack.c.l.s4 1983009808
  %v3563 = vunpack.c.0.s8 %v3562
  %v3564 = vlaneseq
  %v3565 = vshrl.u32 %v3564, 7
  %v3566 = vsub.s32 %v3563, %v3565
  %v3567 = vrot.slane %v3556, %v3566
  %v3569 = vunpack.c.l.s4 1983009808
  %v3570 = vunpack.c.0.s8 %v3569
  %v3571 = vlaneseq
  %v3572 = vshrl.u32 %v3571, 7
  %v3573 = vsub.s32 %v3570, %v3572
  %v3574 = vrot.slane %v3560, %v3573
  %v3575 = vcombine.high %v3567, %v3567
  %v3576 = vcombine.high %v3574, %v3574
  %v3577 = vcombine.high %v3557, %v3557
  %v3579 = vunpack.c.l.s4 1983009808
  %v3580 = vunpack.c.0.s8 %v3579
  %v3581 = vlaneseq
  %v3582 = vshrl.u32 %v3581, 7
  %v3583 = vsub.s32 %v3580, %v3582
  %v3584 = vrot.slane %v3557, %v3583
  %v3586 = vunpack.c.l.s4 1983009808
  %v3587 = vunpack.c.0.s8 %v3586
  %v3588 = vlaneseq
  %v3589 = vshrl.u32 %v3588, 7
  %v3590 = vsub.s32 %v3587, %v3589
  %v3591 = vrot.slane %v3577, %v3590
  %v3592 = vcombine.high %v3584, %v3584
  %v3593 = vcombine.high %v3591, %v3591
  %vm3602 = vcmask 779264
  %3603 = vst.msk [vmem:[#allocation3] sm:$0x3] %vm3602, %v3567
  %3604 = vst.msk [vmem:[#allocation3 + $0x2] sm:$0x3] %vm3602, %v3575
  %3605 = vst.msk [vmem:[#allocation3 + $0x4] sm:$0x3] %vm3602, %v3574
  %3606 = vst.msk [vmem:[#allocation3 + $0x6] sm:$0x3] %vm3602, %v3576
  %3607 = vst.msk [vmem:[#allocation3 + $0x8] sm:$0x3] %vm3602, %v3584
  %3608 = vst.msk [vmem:[#allocation3 + $0xa] sm:$0x3] %vm3602, %v3592
  %3609 = vst.msk [vmem:[#allocation3 + $0xc] sm:$0x3] %vm3602, %v3591
  %3610 = vst.msk [vmem:[#allocation3 + $0xe] sm:$0x3] %vm3602, %v3593
  %v3611 = vld [vmem:[#allocation3] sm:$0x3]
  %3612 = vmatprep.subr.mxu0 0.0
  %3613 = vmatpush1.msra.mxu0 %v79
  %3614 = vmatprep.subr.mxu0 0.0
  %3615 = vmatpush1.msra.mxu0 %v80
  %3616 = vmatprep.subr.mxu0 0.0
  %3617 = vmatpush1.msra.mxu0 %v81
  %3618 = vmatprep.subr.mxu0 0.0
  %3619 = vmatpush1.msra.mxu0 %v82
  %3620 = vmatprep.subr.mxu0 0.0
  %3621 = vmatpush1.msra.mxu0 0.0
  %3622 = vmatprep.subr.mxu0 0.0
  %3623 = vmatpush1.msra.mxu0 0.0
  %3624 = vmatprep.subr.mxu0 0.0
  %3625 = vmatpush1.msra.mxu0 0.0
  %3626 = vmatprep.subr.mxu0 0.0
  %3627 = vmatpush1.msra.mxu0 0.0
  %3628 = vmatprep.subr.mxu0 0.0
  %3629 = vmatpush1.msra.mxu0 0.0
  %3630 = vmatprep.subr.mxu0 0.0
  %3631 = vmatpush1.msra.mxu0 0.0
  %3632 = vmatprep.subr.mxu0 0.0
  %3633 = vmatpush1.msra.mxu0 0.0
  %3634 = vmatprep.subr.mxu0 0.0
  %3635 = vmatpush1.msra.mxu0 0.0
  %3636 = vmatprep.subr.mxu0 0.0
  %3637 = vmatpush1.msra.mxu0 0.0
  %3638 = vmatprep.subr.mxu0 0.0
  %3639 = vmatpush1.msra.mxu0 0.0
  %3640 = vmatprep.subr.mxu0 0.0
  %3641 = vmatpush1.msra.mxu0 0.0
  %3642 = vmatprep.subr.mxu0 0.0
  %3643 = vmatpush1.msra.mxu0 0.0
  %3644 = vmatprep.subr.mxu0 0.0
  %3645 = vmatpush1.msra.mxu0 0.0
  %3646 = vmatprep.subr.mxu0 0.0
  %3647 = vmatpush1.msra.mxu0 0.0
  %3648 = vmatprep.subr.mxu0 0.0
  %3649 = vmatpush1.msra.mxu0 0.0
  %3650 = vmatprep.subr.mxu0 0.0
  %3651 = vmatpush1.msra.mxu0 0.0
  %3652 = vmatprep.subr.mxu0 0.0
  %3653 = vmatpush1.msra.mxu0 0.0
  %3654 = vmatprep.subr.mxu0 0.0
  %3655 = vmatpush1.msra.mxu0 0.0
  %3656 = vmatprep.subr.mxu0 0.0
  %3657 = vmatpush1.msra.mxu0 0.0
  %3658 = vmatprep.subr.mxu0 0.0
  %3659 = vmatpush1.msra.mxu0 0.0
  %3660 = vmatprep.subr.mxu0 0.0
  %3661 = vmatpush1.msra.mxu0 0.0
  %3662 = vmatprep.subr.mxu0 0.0
  %3663 = vmatpush1.msra.mxu0 0.0
  %3664 = vmatprep.subr.mxu0 0.0
  %3665 = vmatpush1.msra.mxu0 0.0
  %3666 = vmatprep.subr.mxu0 0.0
  %3667 = vmatpush1.msra.mxu0 0.0
  %3668 = vmatprep.subr.mxu0 0.0
  %3669 = vmatpush1.msra.mxu0 0.0
  %3670 = vmatprep.subr.mxu0 0.0
  %3671 = vmatpush1.msra.mxu0 0.0
  %3672 = vmatprep.subr.mxu0 0.0
  %3673 = vmatpush1.msra.mxu0 0.0
  %3674 = vmatprep.subr.mxu0 0.0
  %3675 = vmatpush1.msra.mxu0 0.0
  %3676 = vmatprep.mubr.f32.mxu0 0.0
  %3677 = vmatmul.mubr.f32.gmra.mrb[0].mxu0 %v1273
  %v3678 = vpop.f32.mrb[0].mxu0
  %v3679 = vadd.f32 0.0, %v3678
  %v3680 = vpop.f32.mrb[0].mxu0
  %3681 = vdwg.mxu0
  %v3682 = vadd.f32 %v3611, %v3679
  %v3683 = vxor.u32 %v3682, 2147483648
  %v3684 = vmul.f32 %v3683, 1.442695
  %v3685 = vpow.pop %v3684
  %v3686 = vadd.f32 %v3685, 1.0
  %v3687 = vrcp.pop %v3686
  %v3688 = vmul.f32 1.0, %v3687
  %3690 = vrot.lane.b32.xlu0 %v84, 64
  %v3691 = vpop.permute.xlu0 %3690
  %v3693 = vadd.f32 %v3679, %v3691
  %3695 = vrot.lane.b32.xlu0 %v3693, 64
  %v3696 = vpop.permute.xlu0 %3695
  %v3698 = vmul.f32 %v3688, %v3696
  %3700 = vrot.lane.b32.xlu0 %v3698, 64
  %v3701 = vpop.permute.xlu0 %3700
  %v3703 = vadd.f32 %v3611, %v3701
  %v3704 = vtanh.pop %v3703
  %v3705 = vsub.f32 1.0, %v3688
  %3707 = vrot.lane.b32.xlu0 %v3704, 96
  %v3708 = vpop.permute.xlu0 %3707
  %v3710 = vmul.f32 %v3705, %v3708
  %3711 = vrot.lane.b32.xlu0 %v1107, 96
  %v3712 = vpop.permute.xlu0 %3711
  %v3714 = vmul.f32 %v3688, %v3712
  %v3715 = vadd.f32 %v3710, %v3714
  %3717 = vrot.lane.b32.xlu0 %v3715, 96
  %v3718 = vpop.permute.xlu0 %3717
  %3720 = vst.msk [vmem:[#allocation5] sm:$0x3] %vm1182, %v3718
  %s3721 = scalar_lea.vmem [#allocation3], 2
  %v3722 = vld [vmem:[%s3721] sm:$0x3]
  %v3723 = vsel %vm1272, %v3718, 0
  %3725 = vmatprep.subr.mxu0 0.0
  %3726 = vmatpush1.msra.mxu0 %v79
  %3727 = vmatprep.subr.mxu0 0.0
  %3728 = vmatpush1.msra.mxu0 %v80
  %3729 = vmatprep.subr.mxu0 0.0
  %3730 = vmatpush1.msra.mxu0 %v81
  %3731 = vmatprep.subr.mxu0 0.0
  %3732 = vmatpush1.msra.mxu0 %v82
  %3733 = vmatprep.subr.mxu0 0.0
  %3734 = vmatpush1.msra.mxu0 0.0
  %3735 = vmatprep.subr.mxu0 0.0
  %3736 = vmatpush1.msra.mxu0 0.0
  %3737 = vmatprep.subr.mxu0 0.0
  %3738 = vmatpush1.msra.mxu0 0.0
  %3739 = vmatprep.subr.mxu0 0.0
  %3740 = vmatpush1.msra.mxu0 0.0
  %3741 = vmatprep.subr.mxu0 0.0
  %3742 = vmatpush1.msra.mxu0 0.0
  %3743 = vmatprep.subr.mxu0 0.0
  %3744 = vmatpush1.msra.mxu0 0.0
  %3745 = vmatprep.subr.mxu0 0.0
  %3746 = vmatpush1.msra.mxu0 0.0
  %3747 = vmatprep.subr.mxu0 0.0
  %3748 = vmatpush1.msra.mxu0 0.0
  %3749 = vmatprep.subr.mxu0 0.0
  %3750 = vmatpush1.msra.mxu0 0.0
  %3751 = vmatprep.subr.mxu0 0.0
  %3752 = vmatpush1.msra.mxu0 0.0
  %3753 = vmatprep.subr.mxu0 0.0
  %3754 = vmatpush1.msra.mxu0 0.0
  %3755 = vmatprep.subr.mxu0 0.0
  %3756 = vmatpush1.msra.mxu0 0.0
  %3757 = vmatprep.subr.mxu0 0.0
  %3758 = vmatpush1.msra.mxu0 0.0
  %3759 = vmatprep.subr.mxu0 0.0
  %3760 = vmatpush1.msra.mxu0 0.0
  %3761 = vmatprep.subr.mxu0 0.0
  %3762 = vmatpush1.msra.mxu0 0.0
  %3763 = vmatprep.subr.mxu0 0.0
  %3764 = vmatpush1.msra.mxu0 0.0
  %3765 = vmatprep.subr.mxu0 0.0
  %3766 = vmatpush1.msra.mxu0 0.0
  %3767 = vmatprep.subr.mxu0 0.0
  %3768 = vmatpush1.msra.mxu0 0.0
  %3769 = vmatprep.subr.mxu0 0.0
  %3770 = vmatpush1.msra.mxu0 0.0
  %3771 = vmatprep.subr.mxu0 0.0
  %3772 = vmatpush1.msra.mxu0 0.0
  %3773 = vmatprep.subr.mxu0 0.0
  %3774 = vmatpush1.msra.mxu0 0.0
  %3775 = vmatprep.subr.mxu0 0.0
  %3776 = vmatpush1.msra.mxu0 0.0
  %3777 = vmatprep.subr.mxu0 0.0
  %3778 = vmatpush1.msra.mxu0 0.0
  %3779 = vmatprep.subr.mxu0 0.0
  %3780 = vmatpush1.msra.mxu0 0.0
  %3781 = vmatprep.subr.mxu0 0.0
  %3782 = vmatpush1.msra.mxu0 0.0
  %3783 = vmatprep.subr.mxu0 0.0
  %3784 = vmatpush1.msra.mxu0 0.0
  %3785 = vmatprep.subr.mxu0 0.0
  %3786 = vmatpush1.msra.mxu0 0.0
  %3787 = vmatprep.subr.mxu0 0.0
  %3788 = vmatpush1.msra.mxu0 0.0
  %3789 = vmatprep.mubr.f32.mxu0 0.0
  %3790 = vmatmul.mubr.f32.gmra.mrb[0].mxu0 %v3723
  %v3791 = vpop.f32.mrb[0].mxu0
  %v3792 = vadd.f32 0.0, %v3791
  %v3793 = vpop.f32.mrb[0].mxu0
  %3794 = vdwg.mxu0
  %v3795 = vadd.f32 %v3722, %v3792
  %v3796 = vxor.u32 %v3795, 2147483648
  %v3797 = vmul.f32 %v3796, 1.442695
  %v3798 = vpow.pop %v3797
  %v3799 = vadd.f32 %v3798, 1.0
  %v3800 = vrcp.pop %v3799
  %v3801 = vmul.f32 1.0, %v3800
  %v3802 = vadd.f32 %v3792, %v3691
  %3804 = vrot.lane.b32.xlu0 %v3802, 64
  %v3805 = vpop.permute.xlu0 %3804
  %v3807 = vmul.f32 %v3801, %v3805
  %3809 = vrot.lane.b32.xlu0 %v3807, 64
  %v3810 = vpop.permute.xlu0 %3809
  %v3812 = vadd.f32 %v3722, %v3810
  %v3813 = vtanh.pop %v3812
  %v3814 = vsub.f32 1.0, %v3801
  %3816 = vrot.lane.b32.xlu0 %v3813, 96
  %v3817 = vpop.permute.xlu0 %3816
  %v3819 = vmul.f32 %v3814, %v3817
  %v3820 = vmul.f32 %v3801, %v3715
  %v3821 = vadd.f32 %v3819, %v3820
  %3823 = vrot.lane.b32.xlu0 %v3821, 96
  %v3824 = vpop.permute.xlu0 %3823
  %s3826 = scalar_lea.vmem [#allocation5], 2
  %3827 = vst.msk [vmem:[%s3826] sm:$0x3] %vm1182, %v3824
  %s3828 = scalar_lea.vmem [#allocation3], 4
  %v3829 = vld [vmem:[%s3828] sm:$0x3]
  %v3830 = vsel %vm1272, %v3824, 0
  %3832 = vmatprep.subr.mxu0 0.0
  %3833 = vmatpush1.msra.mxu0 %v79
  %3834 = vmatprep.subr.mxu0 0.0
  %3835 = vmatpush1.msra.mxu0 %v80
  %3836 = vmatprep.subr.mxu0 0.0
  %3837 = vmatpush1.msra.mxu0 %v81
  %3838 = vmatprep.subr.mxu0 0.0
  %3839 = vmatpush1.msra.mxu0 %v82
  %3840 = vmatprep.subr.mxu0 0.0
  %3841 = vmatpush1.msra.mxu0 0.0
  %3842 = vmatprep.subr.mxu0 0.0
  %3843 = vmatpush1.msra.mxu0 0.0
  %3844 = vmatprep.subr.mxu0 0.0
  %3845 = vmatpush1.msra.mxu0 0.0
  %3846 = vmatprep.subr.mxu0 0.0
  %3847 = vmatpush1.msra.mxu0 0.0
  %3848 = vmatprep.subr.mxu0 0.0
  %3849 = vmatpush1.msra.mxu0 0.0
  %3850 = vmatprep.subr.mxu0 0.0
  %3851 = vmatpush1.msra.mxu0 0.0
  %3852 = vmatprep.subr.mxu0 0.0
  %3853 = vmatpush1.msra.mxu0 0.0
  %3854 = vmatprep.subr.mxu0 0.0
  %3855 = vmatpush1.msra.mxu0 0.0
  %3856 = vmatprep.subr.mxu0 0.0
  %3857 = vmatpush1.msra.mxu0 0.0
  %3858 = vmatprep.subr.mxu0 0.0
  %3859 = vmatpush1.msra.mxu0 0.0
  %3860 = vmatprep.subr.mxu0 0.0
  %3861 = vmatpush1.msra.mxu0 0.0
  %3862 = vmatprep.subr.mxu0 0.0
  %3863 = vmatpush1.msra.mxu0 0.0
  %3864 = vmatprep.subr.mxu0 0.0
  %3865 = vmatpush1.msra.mxu0 0.0
  %3866 = vmatprep.subr.mxu0 0.0
  %3867 = vmatpush1.msra.mxu0 0.0
  %3868 = vmatprep.subr.mxu0 0.0
  %3869 = vmatpush1.msra.mxu0 0.0
  %3870 = vmatprep.subr.mxu0 0.0
  %3871 = vmatpush1.msra.mxu0 0.0
  %3872 = vmatprep.subr.mxu0 0.0
  %3873 = vmatpush1.msra.mxu0 0.0
  %3874 = vmatprep.subr.mxu0 0.0
  %3875 = vmatpush1.msra.mxu0 0.0
  %3876 = vmatprep.subr.mxu0 0.0
  %3877 = vmatpush1.msra.mxu0 0.0
  %3878 = vmatprep.subr.mxu0 0.0
  %3879 = vmatpush1.msra.mxu0 0.0
  %3880 = vmatprep.subr.mxu0 0.0
  %3881 = vmatpush1.msra.mxu0 0.0
  %3882 = vmatprep.subr.mxu0 0.0
  %3883 = vmatpush1.msra.mxu0 0.0
  %3884 = vmatprep.subr.mxu0 0.0
  %3885 = vmatpush1.msra.mxu0 0.0
  %3886 = vmatprep.subr.mxu0 0.0
  %3887 = vmatpush1.msra.mxu0 0.0
  %3888 = vmatprep.subr.mxu0 0.0
  %3889 = vmatpush1.msra.mxu0 0.0
  %3890 = vmatprep.subr.mxu0 0.0
  %3891 = vmatpush1.msra.mxu0 0.0
  %3892 = vmatprep.subr.mxu0 0.0
  %3893 = vmatpush1.msra.mxu0 0.0
  %3894 = vmatprep.subr.mxu0 0.0
  %3895 = vmatpush1.msra.mxu0 0.0
  %3896 = vmatprep.mubr.f32.mxu0 0.0
  %3897 = vmatmul.mubr.f32.gmra.mrb[0].mxu0 %v3830
  %v3898 = vpop.f32.mrb[0].mxu0
  %v3899 = vadd.f32 0.0, %v3898
  %v3900 = vpop.f32.mrb[0].mxu0
  %3901 = vdwg.mxu0
  %v3902 = vadd.f32 %v3829, %v3899
  %v3903 = vxor.u32 %v3902, 2147483648
  %v3904 = vmul.f32 %v3903, 1.442695
  %v3905 = vpow.pop %v3904
  %v3906 = vadd.f32 %v3905, 1.0
  %v3907 = vrcp.pop %v3906
  %v3908 = vmul.f32 1.0, %v3907
  %v3909 = vadd.f32 %v3899, %v3691
  %3911 = vrot.lane.b32.xlu0 %v3909, 64
  %v3912 = vpop.permute.xlu0 %3911
  %v3914 = vmul.f32 %v3908, %v3912
  %3916 = vrot.lane.b32.xlu0 %v3914, 64
  %v3917 = vpop.permute.xlu0 %3916
  %v3919 = vadd.f32 %v3829, %v3917
  %v3920 = vtanh.pop %v3919
  %v3921 = vsub.f32 1.0, %v3908
  %3923 = vrot.lane.b32.xlu0 %v3920, 96
  %v3924 = vpop.permute.xlu0 %3923
  %v3926 = vmul.f32 %v3921, %v3924
  %v3927 = vmul.f32 %v3908, %v3821
  %v3928 = vadd.f32 %v3926, %v3927
  %3930 = vrot.lane.b32.xlu0 %v3928, 96
  %v3931 = vpop.permute.xlu0 %3930
  %s3933 = scalar_lea.vmem [#allocation5], 4
  %3934 = vst.msk [vmem:[%s3933] sm:$0x3] %vm1182, %v3931
  %s3935 = scalar_lea.vmem [#allocation3], 6
  %v3936 = vld [vmem:[%s3935] sm:$0x3]
  %v3937 = vsel %vm1272, %v3931, 0
  %3939 = vmatprep.subr.mxu0 0.0
  %3940 = vmatpush1.msra.mxu0 %v79
  %3941 = vmatprep.subr.mxu0 0.0
  %3942 = vmatpush1.msra.mxu0 %v80
  %3943 = vmatprep.subr.mxu0 0.0
  %3944 = vmatpush1.msra.mxu0 %v81
  %3945 = vmatprep.subr.mxu0 0.0
  %3946 = vmatpush1.msra.mxu0 %v82
  %3947 = vmatprep.subr.mxu0 0.0
  %3948 = vmatpush1.msra.mxu0 0.0
  %3949 = vmatprep.subr.mxu0 0.0
  %3950 = vmatpush1.msra.mxu0 0.0
  %3951 = vmatprep.subr.mxu0 0.0
  %3952 = vmatpush1.msra.mxu0 0.0
  %3953 = vmatprep.subr.mxu0 0.0
  %3954 = vmatpush1.msra.mxu0 0.0
  %3955 = vmatprep.subr.mxu0 0.0
  %3956 = vmatpush1.msra.mxu0 0.0
  %3957 = vmatprep.subr.mxu0 0.0
  %3958 = vmatpush1.msra.mxu0 0.0
  %3959 = vmatprep.subr.mxu0 0.0
  %3960 = vmatpush1.msra.mxu0 0.0
  %3961 = vmatprep.subr.mxu0 0.0
  %3962 = vmatpush1.msra.mxu0 0.0
  %3963 = vmatprep.subr.mxu0 0.0
  %3964 = vmatpush1.msra.mxu0 0.0
  %3965 = vmatprep.subr.mxu0 0.0
  %3966 = vmatpush1.msra.mxu0 0.0
  %3967 = vmatprep.subr.mxu0 0.0
  %3968 = vmatpush1.msra.mxu0 0.0
  %3969 = vmatprep.subr.mxu0 0.0
  %3970 = vmatpush1.msra.mxu0 0.0
  %3971 = vmatprep.subr.mxu0 0.0
  %3972 = vmatpush1.msra.mxu0 0.0
  %3973 = vmatprep.subr.mxu0 0.0
  %3974 = vmatpush1.msra.mxu0 0.0
  %3975 = vmatprep.subr.mxu0 0.0
  %3976 = vmatpush1.msra.mxu0 0.0
  %3977 = vmatprep.subr.mxu0 0.0
  %3978 = vmatpush1.msra.mxu0 0.0
  %3979 = vmatprep.subr.mxu0 0.0
  %3980 = vmatpush1.msra.mxu0 0.0
  %3981 = vmatprep.subr.mxu0 0.0
  %3982 = vmatpush1.msra.mxu0 0.0
  %3983 = vmatprep.subr.mxu0 0.0
  %3984 = vmatpush1.msra.mxu0 0.0
  %3985 = vmatprep.subr.mxu0 0.0
  %3986 = vmatpush1.msra.mxu0 0.0
  %3987 = vmatprep.subr.mxu0 0.0
  %3988 = vmatpush1.msra.mxu0 0.0
  %3989 = vmatprep.subr.mxu0 0.0
  %3990 = vmatpush1.msra.mxu0 0.0
  %3991 = vmatprep.subr.mxu0 0.0
  %3992 = vmatpush1.msra.mxu0 0.0
  %3993 = vmatprep.subr.mxu0 0.0
  %3994 = vmatpush1.msra.mxu0 0.0
  %3995 = vmatprep.subr.mxu0 0.0
  %3996 = vmatpush1.msra.mxu0 0.0
  %3997 = vmatprep.subr.mxu0 0.0
  %3998 = vmatpush1.msra.mxu0 0.0
  %3999 = vmatprep.subr.mxu0 0.0
  %4000 = vmatpush1.msra.mxu0 0.0
  %4001 = vmatprep.subr.mxu0 0.0
  %4002 = vmatpush1.msra.mxu0 0.0
  %4003 = vmatprep.mubr.f32.mxu0 0.0
  %4004 = vmatmul.mubr.f32.gmra.mrb[0].mxu0 %v3937
  %v4005 = vpop.f32.mrb[0].mxu0
  %v4006 = vadd.f32 0.0, %v4005
  %v4007 = vpop.f32.mrb[0].mxu0
  %4008 = vdwg.mxu0
  %v4009 = vadd.f32 %v3936, %v4006
  %v4010 = vxor.u32 %v4009, 2147483648
  %v4011 = vmul.f32 %v4010, 1.442695
  %v4012 = vpow.pop %v4011
  %v4013 = vadd.f32 %v4012, 1.0
  %v4014 = vrcp.pop %v4013
  %v4015 = vmul.f32 1.0, %v4014
  %v4016 = vadd.f32 %v4006, %v3691
  %4018 = vrot.lane.b32.xlu0 %v4016, 64
  %v4019 = vpop.permute.xlu0 %4018
  %v4021 = vmul.f32 %v4015, %v4019
  %4023 = vrot.lane.b32.xlu0 %v4021, 64
  %v4024 = vpop.permute.xlu0 %4023
  %v4026 = vadd.f32 %v3936, %v4024
  %v4027 = vtanh.pop %v4026
  %v4028 = vsub.f32 1.0, %v4015
  %4030 = vrot.lane.b32.xlu0 %v4027, 96
  %v4031 = vpop.permute.xlu0 %4030
  %v4033 = vmul.f32 %v4028, %v4031
  %v4034 = vmul.f32 %v4015, %v3928
  %v4035 = vadd.f32 %v4033, %v4034
  %4037 = vrot.lane.b32.xlu0 %v4035, 96
  %v4038 = vpop.permute.xlu0 %4037
  %s4040 = scalar_lea.vmem [#allocation5], 6
  %4041 = vst.msk [vmem:[%s4040] sm:$0x3] %vm1182, %v4038
  %s4042 = scalar_lea.vmem [#allocation3], 8
  %v4043 = vld [vmem:[%s4042] sm:$0x3]
  %v4044 = vsel %vm1272, %v4038, 0
  %4046 = vmatprep.subr.mxu0 0.0
  %4047 = vmatpush1.msra.mxu0 %v79
  %4048 = vmatprep.subr.mxu0 0.0
  %4049 = vmatpush1.msra.mxu0 %v80
  %4050 = vmatprep.subr.mxu0 0.0
  %4051 = vmatpush1.msra.mxu0 %v81
  %4052 = vmatprep.subr.mxu0 0.0
  %4053 = vmatpush1.msra.mxu0 %v82
  %4054 = vmatprep.subr.mxu0 0.0
  %4055 = vmatpush1.msra.mxu0 0.0
  %4056 = vmatprep.subr.mxu0 0.0
  %4057 = vmatpush1.msra.mxu0 0.0
  %4058 = vmatprep.subr.mxu0 0.0
  %4059 = vmatpush1.msra.mxu0 0.0
  %4060 = vmatprep.subr.mxu0 0.0
  %4061 = vmatpush1.msra.mxu0 0.0
  %4062 = vmatprep.subr.mxu0 0.0
  %4063 = vmatpush1.msra.mxu0 0.0
  %4064 = vmatprep.subr.mxu0 0.0
  %4065 = vmatpush1.msra.mxu0 0.0
  %4066 = vmatprep.subr.mxu0 0.0
  %4067 = vmatpush1.msra.mxu0 0.0
  %4068 = vmatprep.subr.mxu0 0.0
  %4069 = vmatpush1.msra.mxu0 0.0
  %4070 = vmatprep.subr.mxu0 0.0
  %4071 = vmatpush1.msra.mxu0 0.0
  %4072 = vmatprep.subr.mxu0 0.0
  %4073 = vmatpush1.msra.mxu0 0.0
  %4074 = vmatprep.subr.mxu0 0.0
  %4075 = vmatpush1.msra.mxu0 0.0
  %4076 = vmatprep.subr.mxu0 0.0
  %4077 = vmatpush1.msra.mxu0 0.0
  %4078 = vmatprep.subr.mxu0 0.0
  %4079 = vmatpush1.msra.mxu0 0.0
  %4080 = vmatprep.subr.mxu0 0.0
  %4081 = vmatpush1.msra.mxu0 0.0
  %4082 = vmatprep.subr.mxu0 0.0
  %4083 = vmatpush1.msra.mxu0 0.0
  %4084 = vmatprep.subr.mxu0 0.0
  %4085 = vmatpush1.msra.mxu0 0.0
  %4086 = vmatprep.subr.mxu0 0.0
  %4087 = vmatpush1.msra.mxu0 0.0
  %4088 = vmatprep.subr.mxu0 0.0
  %4089 = vmatpush1.msra.mxu0 0.0
  %4090 = vmatprep.subr.mxu0 0.0
  %4091 = vmatpush1.msra.mxu0 0.0
  %4092 = vmatprep.subr.mxu0 0.0
  %4093 = vmatpush1.msra.mxu0 0.0
  %4094 = vmatprep.subr.mxu0 0.0
  %4095 = vmatpush1.msra.mxu0 0.0
  %4096 = vmatprep.subr.mxu0 0.0
  %4097 = vmatpush1.msra.mxu0 0.0
  %4098 = vmatprep.subr.mxu0 0.0
  %4099 = vmatpush1.msra.mxu0 0.0
  %4100 = vmatprep.subr.mxu0 0.0
  %4101 = vmatpush1.msra.mxu0 0.0
  %4102 = vmatprep.subr.mxu0 0.0
  %4103 = vmatpush1.msra.mxu0 0.0
  %4104 = vmatprep.subr.mxu0 0.0
  %4105 = vmatpush1.msra.mxu0 0.0
  %4106 = vmatprep.subr.mxu0 0.0
  %4107 = vmatpush1.msra.mxu0 0.0
  %4108 = vmatprep.subr.mxu0 0.0
  %4109 = vmatpush1.msra.mxu0 0.0
  %4110 = vmatprep.mubr.f32.mxu0 0.0
  %4111 = vmatmul.mubr.f32.gmra.mrb[0].mxu0 %v4044
  %v4112 = vpop.f32.mrb[0].mxu0
  %v4113 = vadd.f32 0.0, %v4112
  %v4114 = vpop.f32.mrb[0].mxu0
  %4115 = vdwg.mxu0
  %v4116 = vadd.f32 %v4043, %v4113
  %v4117 = vxor.u32 %v4116, 2147483648
  %v4118 = vmul.f32 %v4117, 1.442695
  %v4119 = vpow.pop %v4118
  %v4120 = vadd.f32 %v4119, 1.0
  %v4121 = vrcp.pop %v4120
  %v4122 = vmul.f32 1.0, %v4121
  %v4123 = vadd.f32 %v4113, %v3691
  %4125 = vrot.lane.b32.xlu0 %v4123, 64
  %v4126 = vpop.permute.xlu0 %4125
  %v4128 = vmul.f32 %v4122, %v4126
  %4130 = vrot.lane.b32.xlu0 %v4128, 64
  %v4131 = vpop.permute.xlu0 %4130
  %v4133 = vadd.f32 %v4043, %v4131
  %v4134 = vtanh.pop %v4133
  %v4135 = vsub.f32 1.0, %v4122
  %4137 = vrot.lane.b32.xlu0 %v4134, 96
  %v4138 = vpop.permute.xlu0 %4137
  %v4140 = vmul.f32 %v4135, %v4138
  %v4141 = vmul.f32 %v4122, %v4035
  %v4142 = vadd.f32 %v4140, %v4141
  %4144 = vrot.lane.b32.xlu0 %v4142, 96
  %v4145 = vpop.permute.xlu0 %4144
  %s4147 = scalar_lea.vmem [#allocation5], 8
  %4148 = vst.msk [vmem:[%s4147] sm:$0x3] %vm1182, %v4145
  %s4149 = scalar_lea.vmem [#allocation3], 10
  %v4150 = vld [vmem:[%s4149] sm:$0x3]
  %v4151 = vsel %vm1272, %v4145, 0
  %4153 = vmatprep.subr.mxu0 0.0
  %4154 = vmatpush1.msra.mxu0 %v79
  %4155 = vmatprep.subr.mxu0 0.0
  %4156 = vmatpush1.msra.mxu0 %v80
  %4157 = vmatprep.subr.mxu0 0.0
  %4158 = vmatpush1.msra.mxu0 %v81
  %4159 = vmatprep.subr.mxu0 0.0
  %4160 = vmatpush1.msra.mxu0 %v82
  %4161 = vmatprep.subr.mxu0 0.0
  %4162 = vmatpush1.msra.mxu0 0.0
  %4163 = vmatprep.subr.mxu0 0.0
  %4164 = vmatpush1.msra.mxu0 0.0
  %4165 = vmatprep.subr.mxu0 0.0
  %4166 = vmatpush1.msra.mxu0 0.0
  %4167 = vmatprep.subr.mxu0 0.0
  %4168 = vmatpush1.msra.mxu0 0.0
  %4169 = vmatprep.subr.mxu0 0.0
  %4170 = vmatpush1.msra.mxu0 0.0
  %4171 = vmatprep.subr.mxu0 0.0
  %4172 = vmatpush1.msra.mxu0 0.0
  %4173 = vmatprep.subr.mxu0 0.0
  %4174 = vmatpush1.msra.mxu0 0.0
  %4175 = vmatprep.subr.mxu0 0.0
  %4176 = vmatpush1.msra.mxu0 0.0
  %4177 = vmatprep.subr.mxu0 0.0
  %4178 = vmatpush1.msra.mxu0 0.0
  %4179 = vmatprep.subr.mxu0 0.0
  %4180 = vmatpush1.msra.mxu0 0.0
  %4181 = vmatprep.subr.mxu0 0.0
  %4182 = vmatpush1.msra.mxu0 0.0
  %4183 = vmatprep.subr.mxu0 0.0
  %4184 = vmatpush1.msra.mxu0 0.0
  %4185 = vmatprep.subr.mxu0 0.0
  %4186 = vmatpush1.msra.mxu0 0.0
  %4187 = vmatprep.subr.mxu0 0.0
  %4188 = vmatpush1.msra.mxu0 0.0
  %4189 = vmatprep.subr.mxu0 0.0
  %4190 = vmatpush1.msra.mxu0 0.0
  %4191 = vmatprep.subr.mxu0 0.0
  %4192 = vmatpush1.msra.mxu0 0.0
  %4193 = vmatprep.subr.mxu0 0.0
  %4194 = vmatpush1.msra.mxu0 0.0
  %4195 = vmatprep.subr.mxu0 0.0
  %4196 = vmatpush1.msra.mxu0 0.0
  %4197 = vmatprep.subr.mxu0 0.0
  %4198 = vmatpush1.msra.mxu0 0.0
  %4199 = vmatprep.subr.mxu0 0.0
  %4200 = vmatpush1.msra.mxu0 0.0
  %4201 = vmatprep.subr.mxu0 0.0
  %4202 = vmatpush1.msra.mxu0 0.0
  %4203 = vmatprep.subr.mxu0 0.0
  %4204 = vmatpush1.msra.mxu0 0.0
  %4205 = vmatprep.subr.mxu0 0.0
  %4206 = vmatpush1.msra.mxu0 0.0
  %4207 = vmatprep.subr.mxu0 0.0
  %4208 = vmatpush1.msra.mxu0 0.0
  %4209 = vmatprep.subr.mxu0 0.0
  %4210 = vmatpush1.msra.mxu0 0.0
  %4211 = vmatprep.subr.mxu0 0.0
  %4212 = vmatpush1.msra.mxu0 0.0
  %4213 = vmatprep.subr.mxu0 0.0
  %4214 = vmatpush1.msra.mxu0 0.0
  %4215 = vmatprep.subr.mxu0 0.0
  %4216 = vmatpush1.msra.mxu0 0.0
  %4217 = vmatprep.mubr.f32.mxu0 0.0
  %4218 = vmatmul.mubr.f32.gmra.mrb[0].mxu0 %v4151
  %v4219 = vpop.f32.mrb[0].mxu0
  %v4220 = vadd.f32 0.0, %v4219
  %v4221 = vpop.f32.mrb[0].mxu0
  %4222 = vdwg.mxu0
  %v4223 = vadd.f32 %v4150, %v4220
  %v4224 = vxor.u32 %v4223, 2147483648
  %v4225 = vmul.f32 %v4224, 1.442695
  %v4226 = vpow.pop %v4225
  %v4227 = vadd.f32 %v4226, 1.0
  %v4228 = vrcp.pop %v4227
  %v4229 = vmul.f32 1.0, %v4228
  %v4230 = vadd.f32 %v4220, %v3691
  %4232 = vrot.lane.b32.xlu0 %v4230, 64
  %v4233 = vpop.permute.xlu0 %4232
  %v4235 = vmul.f32 %v4229, %v4233
  %4237 = vrot.lane.b32.xlu0 %v4235, 64
  %v4238 = vpop.permute.xlu0 %4237
  %v4240 = vadd.f32 %v4150, %v4238
  %v4241 = vtanh.pop %v4240
  %v4242 = vsub.f32 1.0, %v4229
  %4244 = vrot.lane.b32.xlu0 %v4241, 96
  %v4245 = vpop.permute.xlu0 %4244
  %v4247 = vmul.f32 %v4242, %v4245
  %v4248 = vmul.f32 %v4229, %v4142
  %v4249 = vadd.f32 %v4247, %v4248
  %4251 = vrot.lane.b32.xlu0 %v4249, 96
  %v4252 = vpop.permute.xlu0 %4251
  %s4254 = scalar_lea.vmem [#allocation5], 10
  %4255 = vst.msk [vmem:[%s4254] sm:$0x3] %vm1182, %v4252
  %s4256 = scalar_lea.vmem [#allocation3], 12
  %v4257 = vld [vmem:[%s4256] sm:$0x3]
  %v4258 = vsel %vm1272, %v4252, 0
  %4260 = vmatprep.subr.mxu0 0.0
  %4261 = vmatpush1.msra.mxu0 %v79
  %4262 = vmatprep.subr.mxu0 0.0
  %4263 = vmatpush1.msra.mxu0 %v80
  %4264 = vmatprep.subr.mxu0 0.0
  %4265 = vmatpush1.msra.mxu0 %v81
  %4266 = vmatprep.subr.mxu0 0.0
  %4267 = vmatpush1.msra.mxu0 %v82
  %4268 = vmatprep.subr.mxu0 0.0
  %4269 = vmatpush1.msra.mxu0 0.0
  %4270 = vmatprep.subr.mxu0 0.0
  %4271 = vmatpush1.msra.mxu0 0.0
  %4272 = vmatprep.subr.mxu0 0.0
  %4273 = vmatpush1.msra.mxu0 0.0
  %4274 = vmatprep.subr.mxu0 0.0
  %4275 = vmatpush1.msra.mxu0 0.0
  %4276 = vmatprep.subr.mxu0 0.0
  %4277 = vmatpush1.msra.mxu0 0.0
  %4278 = vmatprep.subr.mxu0 0.0
  %4279 = vmatpush1.msra.mxu0 0.0
  %4280 = vmatprep.subr.mxu0 0.0
  %4281 = vmatpush1.msra.mxu0 0.0
  %4282 = vmatprep.subr.mxu0 0.0
  %4283 = vmatpush1.msra.mxu0 0.0
  %4284 = vmatprep.subr.mxu0 0.0
  %4285 = vmatpush1.msra.mxu0 0.0
  %4286 = vmatprep.subr.mxu0 0.0
  %4287 = vmatpush1.msra.mxu0 0.0
  %4288 = vmatprep.subr.mxu0 0.0
  %4289 = vmatpush1.msra.mxu0 0.0
  %4290 = vmatprep.subr.mxu0 0.0
  %4291 = vmatpush1.msra.mxu0 0.0
  %4292 = vmatprep.subr.mxu0 0.0
  %4293 = vmatpush1.msra.mxu0 0.0
  %4294 = vmatprep.subr.mxu0 0.0
  %4295 = vmatpush1.msra.mxu0 0.0
  %4296 = vmatprep.subr.mxu0 0.0
  %4297 = vmatpush1.msra.mxu0 0.0
  %4298 = vmatprep.subr.mxu0 0.0
  %4299 = vmatpush1.msra.mxu0 0.0
  %4300 = vmatprep.subr.mxu0 0.0
  %4301 = vmatpush1.msra.mxu0 0.0
  %4302 = vmatprep.subr.mxu0 0.0
  %4303 = vmatpush1.msra.mxu0 0.0
  %4304 = vmatprep.subr.mxu0 0.0
  %4305 = vmatpush1.msra.mxu0 0.0
  %4306 = vmatprep.subr.mxu0 0.0
  %4307 = vmatpush1.msra.mxu0 0.0
  %4308 = vmatprep.subr.mxu0 0.0
  %4309 = vmatpush1.msra.mxu0 0.0
  %4310 = vmatprep.subr.mxu0 0.0
  %4311 = vmatpush1.msra.mxu0 0.0
  %4312 = vmatprep.subr.mxu0 0.0
  %4313 = vmatpush1.msra.mxu0 0.0
  %4314 = vmatprep.subr.mxu0 0.0
  %4315 = vmatpush1.msra.mxu0 0.0
  %4316 = vmatprep.subr.mxu0 0.0
  %4317 = vmatpush1.msra.mxu0 0.0
  %4318 = vmatprep.subr.mxu0 0.0
  %4319 = vmatpush1.msra.mxu0 0.0
  %4320 = vmatprep.subr.mxu0 0.0
  %4321 = vmatpush1.msra.mxu0 0.0
  %4322 = vmatprep.subr.mxu0 0.0
  %4323 = vmatpush1.msra.mxu0 0.0
  %4324 = vmatprep.mubr.f32.mxu0 0.0
  %4325 = vmatmul.mubr.f32.gmra.mrb[0].mxu0 %v4258
  %v4326 = vpop.f32.mrb[0].mxu0
  %v4327 = vadd.f32 0.0, %v4326
  %v4328 = vpop.f32.mrb[0].mxu0
  %4329 = vdwg.mxu0
  %v4330 = vadd.f32 %v4257, %v4327
  %v4331 = vxor.u32 %v4330, 2147483648
  %v4332 = vmul.f32 %v4331, 1.442695
  %v4333 = vpow.pop %v4332
  %v4334 = vadd.f32 %v4333, 1.0
  %v4335 = vrcp.pop %v4334
  %v4336 = vmul.f32 1.0, %v4335
  %v4337 = vadd.f32 %v4327, %v3691
  %4339 = vrot.lane.b32.xlu0 %v4337, 64
  %v4340 = vpop.permute.xlu0 %4339
  %v4342 = vmul.f32 %v4336, %v4340
  %4344 = vrot.lane.b32.xlu0 %v4342, 64
  %v4345 = vpop.permute.xlu0 %4344
  %v4347 = vadd.f32 %v4257, %v4345
  %v4348 = vtanh.pop %v4347
  %v4349 = vsub.f32 1.0, %v4336
  %4351 = vrot.lane.b32.xlu0 %v4348, 96
  %v4352 = vpop.permute.xlu0 %4351
  %v4354 = vmul.f32 %v4349, %v4352
  %v4355 = vmul.f32 %v4336, %v4249
  %v4356 = vadd.f32 %v4354, %v4355
  %4358 = vrot.lane.b32.xlu0 %v4356, 96
  %v4359 = vpop.permute.xlu0 %4358
  %s4361 = scalar_lea.vmem [#allocation5], 12
  %4362 = vst.msk [vmem:[%s4361] sm:$0x3] %vm1182, %v4359
  %s4363 = scalar_lea.vmem [#allocation3], 14
  %v4364 = vld [vmem:[%s4363] sm:$0x3]
  %v4365 = vsel %vm1272, %v4359, 0
  %4367 = vmatprep.subr.mxu0 0.0
  %4368 = vmatpush1.msra.mxu0 %v79
  %4369 = vmatprep.subr.mxu0 0.0
  %4370 = vmatpush1.msra.mxu0 %v80
  %4371 = vmatprep.subr.mxu0 0.0
  %4372 = vmatpush1.msra.mxu0 %v81
  %4373 = vmatprep.subr.mxu0 0.0
  %4374 = vmatpush1.msra.mxu0 %v82
  %4375 = vmatprep.subr.mxu0 0.0
  %4376 = vmatpush1.msra.mxu0 0.0
  %4377 = vmatprep.subr.mxu0 0.0
  %4378 = vmatpush1.msra.mxu0 0.0
  %4379 = vmatprep.subr.mxu0 0.0
  %4380 = vmatpush1.msra.mxu0 0.0
  %4381 = vmatprep.subr.mxu0 0.0
  %4382 = vmatpush1.msra.mxu0 0.0
  %4383 = vmatprep.subr.mxu0 0.0
  %4384 = vmatpush1.msra.mxu0 0.0
  %4385 = vmatprep.subr.mxu0 0.0
  %4386 = vmatpush1.msra.mxu0 0.0
  %4387 = vmatprep.subr.mxu0 0.0
  %4388 = vmatpush1.msra.mxu0 0.0
  %4389 = vmatprep.subr.mxu0 0.0
  %4390 = vmatpush1.msra.mxu0 0.0
  %4391 = vmatprep.subr.mxu0 0.0
  %4392 = vmatpush1.msra.mxu0 0.0
  %4393 = vmatprep.subr.mxu0 0.0
  %4394 = vmatpush1.msra.mxu0 0.0
  %4395 = vmatprep.subr.mxu0 0.0
  %4396 = vmatpush1.msra.mxu0 0.0
  %4397 = vmatprep.subr.mxu0 0.0
  %4398 = vmatpush1.msra.mxu0 0.0
  %4399 = vmatprep.subr.mxu0 0.0
  %4400 = vmatpush1.msra.mxu0 0.0
  %4401 = vmatprep.subr.mxu0 0.0
  %4402 = vmatpush1.msra.mxu0 0.0
  %4403 = vmatprep.subr.mxu0 0.0
  %4404 = vmatpush1.msra.mxu0 0.0
  %4405 = vmatprep.subr.mxu0 0.0
  %4406 = vmatpush1.msra.mxu0 0.0
  %4407 = vmatprep.subr.mxu0 0.0
  %4408 = vmatpush1.msra.mxu0 0.0
  %4409 = vmatprep.subr.mxu0 0.0
  %4410 = vmatpush1.msra.mxu0 0.0
  %4411 = vmatprep.subr.mxu0 0.0
  %4412 = vmatpush1.msra.mxu0 0.0
  %4413 = vmatprep.subr.mxu0 0.0
  %4414 = vmatpush1.msra.mxu0 0.0
  %4415 = vmatprep.subr.mxu0 0.0
  %4416 = vmatpush1.msra.mxu0 0.0
  %4417 = vmatprep.subr.mxu0 0.0
  %4418 = vmatpush1.msra.mxu0 0.0
  %4419 = vmatprep.subr.mxu0 0.0
  %4420 = vmatpush1.msra.mxu0 0.0
  %4421 = vmatprep.subr.mxu0 0.0
  %4422 = vmatpush1.msra.mxu0 0.0
  %4423 = vmatprep.subr.mxu0 0.0
  %4424 = vmatpush1.msra.mxu0 0.0
  %4425 = vmatprep.subr.mxu0 0.0
  %4426 = vmatpush1.msra.mxu0 0.0
  %4427 = vmatprep.subr.mxu0 0.0
  %4428 = vmatpush1.msra.mxu0 0.0
  %4429 = vmatprep.subr.mxu0 0.0
  %4430 = vmatpush1.msra.mxu0 0.0
  %4431 = vmatprep.mubr.f32.mxu0 0.0
  %4432 = vmatmul.mubr.f32.gmra.mrb[0].mxu0 %v4365
  %v4433 = vpop.f32.mrb[0].mxu0
  %v4434 = vadd.f32 0.0, %v4433
  %v4435 = vpop.f32.mrb[0].mxu0
  %4436 = vdwg.mxu0
  %v4437 = vadd.f32 %v4364, %v4434
  %v4438 = vxor.u32 %v4437, 2147483648
  %v4439 = vmul.f32 %v4438, 1.442695
  %v4440 = vpow.pop %v4439
  %v4441 = vadd.f32 %v4440, 1.0
  %v4442 = vrcp.pop %v4441
  %v4443 = vmul.f32 1.0, %v4442
  %v4444 = vadd.f32 %v4434, %v3691
  %4446 = vrot.lane.b32.xlu0 %v4444, 64
  %v4447 = vpop.permute.xlu0 %4446
  %v4449 = vmul.f32 %v4443, %v4447
  %4451 = vrot.lane.b32.xlu0 %v4449, 64
  %v4452 = vpop.permute.xlu0 %4451
  %v4454 = vadd.f32 %v4364, %v4452
  %v4455 = vtanh.pop %v4454
  %v4456 = vsub.f32 1.0, %v4443
  %4458 = vrot.lane.b32.xlu0 %v4455, 96
  %v4459 = vpop.permute.xlu0 %4458
  %v4461 = vmul.f32 %v4456, %v4459
  %v4462 = vmul.f32 %v4443, %v4356
  %v4463 = vadd.f32 %v4461, %v4462
  %4465 = vrot.lane.b32.xlu0 %v4463, 96
  %v4466 = vpop.permute.xlu0 %4465
  %s4468 = scalar_lea.vmem [#allocation5], 14
  %4469 = vst.msk [vmem:[%s4468] sm:$0x3] %vm1182, %v4466
  %v4470 = vld [vmem:[#allocation5] sm:$0x3]
  %v4471 = vld [vmem:[#allocation5 + $0x2] sm:$0x3]
  %v4472 = vld [vmem:[#allocation5 + $0x4] sm:$0x3]
  %v4473 = vld [vmem:[#allocation5 + $0x6] sm:$0x3]
  %v4474 = vld [vmem:[#allocation5 + $0x8] sm:$0x3]
  %v4475 = vld [vmem:[#allocation5 + $0xa] sm:$0x3]
  %v4476 = vld [vmem:[#allocation5 + $0xc] sm:$0x3]
  %v4477 = vld [vmem:[#allocation5 + $0xe] sm:$0x3]
  %v4486 = vcombine.low %v4470, %v4471
  %v4487 = vcombine.low %v4472, %v4473
  %v4489 = vunpack.c.l.s4 1983009808
  %v4490 = vunpack.c.0.s8 %v4489
  %v4491 = vlaneseq
  %v4492 = vshrl.u32 %v4491, 7
  %v4493 = vsub.s32 %v4490, %v4492
  %v4494 = vrot.slane %v4486, %v4493
  %v4496 = vunpack.c.l.s4 1983009808
  %v4497 = vunpack.c.0.s8 %v4496
  %v4498 = vlaneseq
  %v4499 = vshrl.u32 %v4498, 7
  %v4500 = vsub.s32 %v4497, %v4499
  %v4501 = vrot.slane %v4487, %v4500
  %v4502 = vcombine.low %v4494, %v4501
  %v4503 = vcombine.low %v4474, %v4475
  %v4504 = vcombine.low %v4476, %v4477
  %v4506 = vunpack.c.l.s4 1983009808
  %v4507 = vunpack.c.0.s8 %v4506
  %v4508 = vlaneseq
  %v4509 = vshrl.u32 %v4508, 7
  %v4510 = vsub.s32 %v4507, %v4509
  %v4511 = vrot.slane %v4503, %v4510
  %v4513 = vunpack.c.l.s4 1983009808
  %v4514 = vunpack.c.0.s8 %v4513
  %v4515 = vlaneseq
  %v4516 = vshrl.u32 %v4515, 7
  %v4517 = vsub.s32 %v4514, %v4516
  %v4518 = vrot.slane %v4504, %v4517
  %v4519 = vcombine.low %v4511, %v4518
  %v4520 = vsel %vm1272, %v4502, 0
  %v4522 = vsel %vm1272, %v4519, 0
  %4524 = vmatprep.subr.mxu0 0.0
  %4525 = vmatpush1.msra.mxu0 %v85
  %4526 = vmatprep.subr.mxu0 0.0
  %4527 = vmatpush1.msra.mxu0 %v86
  %4528 = vmatprep.subr.mxu0 0.0
  %4529 = vmatpush1.msra.mxu0 %v87
  %4530 = vmatprep.subr.mxu0 0.0
  %4531 = vmatpush1.msra.mxu0 %v88
  %4532 = vmatprep.subr.mxu0 0.0
  %4533 = vmatpush1.msra.mxu0 0.0
  %4534 = vmatprep.subr.mxu0 0.0
  %4535 = vmatpush1.msra.mxu0 0.0
  %4536 = vmatprep.subr.mxu0 0.0
  %4537 = vmatpush1.msra.mxu0 0.0
  %4538 = vmatprep.subr.mxu0 0.0
  %4539 = vmatpush1.msra.mxu0 0.0
  %4540 = vmatprep.subr.mxu0 0.0
  %4541 = vmatpush1.msra.mxu0 0.0
  %4542 = vmatprep.subr.mxu0 0.0
  %4543 = vmatpush1.msra.mxu0 0.0
  %4544 = vmatprep.subr.mxu0 0.0
  %4545 = vmatpush1.msra.mxu0 0.0
  %4546 = vmatprep.subr.mxu0 0.0
  %4547 = vmatpush1.msra.mxu0 0.0
  %4548 = vmatprep.subr.mxu0 0.0
  %4549 = vmatpush1.msra.mxu0 0.0
  %4550 = vmatprep.subr.mxu0 0.0
  %4551 = vmatpush1.msra.mxu0 0.0
  %4552 = vmatprep.subr.mxu0 0.0
  %4553 = vmatpush1.msra.mxu0 0.0
  %4554 = vmatprep.subr.mxu0 0.0
  %4555 = vmatpush1.msra.mxu0 0.0
  %4556 = vmatprep.subr.mxu0 0.0
  %4557 = vmatpush1.msra.mxu0 0.0
  %4558 = vmatprep.subr.mxu0 0.0
  %4559 = vmatpush1.msra.mxu0 0.0
  %4560 = vmatprep.subr.mxu0 0.0
  %4561 = vmatpush1.msra.mxu0 0.0
  %4562 = vmatprep.subr.mxu0 0.0
  %4563 = vmatpush1.msra.mxu0 0.0
  %4564 = vmatprep.subr.mxu0 0.0
  %4565 = vmatpush1.msra.mxu0 0.0
  %4566 = vmatprep.subr.mxu0 0.0
  %4567 = vmatpush1.msra.mxu0 0.0
  %4568 = vmatprep.subr.mxu0 0.0
  %4569 = vmatpush1.msra.mxu0 0.0
  %4570 = vmatprep.subr.mxu0 0.0
  %4571 = vmatpush1.msra.mxu0 0.0
  %4572 = vmatprep.subr.mxu0 0.0
  %4573 = vmatpush1.msra.mxu0 0.0
  %4574 = vmatprep.subr.mxu0 0.0
  %4575 = vmatpush1.msra.mxu0 0.0
  %4576 = vmatprep.subr.mxu0 0.0
  %4577 = vmatpush1.msra.mxu0 0.0
  %4578 = vmatprep.subr.mxu0 0.0
  %4579 = vmatpush1.msra.mxu0 0.0
  %4580 = vmatprep.subr.mxu0 0.0
  %4581 = vmatpush1.msra.mxu0 0.0
  %4582 = vmatprep.subr.mxu0 0.0
  %4583 = vmatpush1.msra.mxu0 0.0
  %4584 = vmatprep.subr.mxu0 0.0
  %4585 = vmatpush1.msra.mxu0 0.0
  %4586 = vmatprep.subr.mxu0 0.0
  %4587 = vmatpush1.msra.mxu0 0.0
  %4588 = vmatprep.mubr.f32.mxu0 0.0
  %4589 = vmatmul.mubr.f32.gmra.mrb[0].mxu0 %v4520
  %v4590 = vpop.f32.mrb[0].mxu0
  %v4591 = vadd.f32 %v89, %v4590
  %v4592 = vpop.f32.mrb[0].mxu0
  %4593 = vmatprep.mubr.f32.mxu0 0.0
  %4594 = vmatmul.mubr.f32.gmra.mrb[0].mxu0 %v4522
  %v4595 = vpop.f32.mrb[0].mxu0
  %v4596 = vadd.f32 %v89, %v4595
  %v4597 = vpop.f32.mrb[0].mxu0
  %4598 = vdwg.mxu0
  %4601 = vrot.lane.b32.xlu0 %v4591, 2
  %v4602 = vpop.permute.xlu0 %4601
  %4603 = vrot.lane.b32.xlu0 %v4596, 2
  %v4604 = vpop.permute.xlu0 %4603
  %v4607 = vsel %vm3473, %v2389, %v4602
  %v4608 = vsel %vm3473, %v2394, %v4604
  %4609 = vst.msk [vmem:[%s5] sm:$0xff] %vm103, %v4607
  %4610 = vst.msk [vmem:[%s5 + $0x8] sm:$0xff] %vm103, %v4608
  // Predicated region
  $region22: #{desire_forward.1} parent=0 // pred_check
    _
  $region23: #{desire_forward.1} parent=0 // pred_check_branch
    %4612 = sbr.rel (0) target = $region25
  $region24: #{desire_forward.1} parent=0 // pred_region
    _
  $region25: #{desire_forward.1} parent=0 // pred_fallthru
    _
  // Predicated region
  $region26: #{desire_forward.1} parent=0 // pred_check
    _
  $region27: #{desire_forward.1} parent=0 // pred_check_branch
    %4614 = sbr.rel (0) target = $region29
  $region28: #{desire_forward.1} parent=0 // pred_region
    _
  $region29: #{desire_forward.1} parent=0 // pred_fallthru
    _
  // Predicated region
  $region30: #{desire_forward.1} parent=0 // pred_check
    _
  $region31: #{desire_forward.1} parent=0 // pred_check_branch
    %4616 = sbr.rel (0) target = $region33
  $region32: #{desire_forward.1} parent=0 // pred_region
    _
  $region33: #{desire_forward.1} parent=0 // pred_fallthru
    _
  // Predicated region
  $region34: #{desire_forward.1} parent=0 // pred_check
    _
  $region35: #{desire_forward.1} parent=0 // pred_check_branch
    %4618 = sbr.rel (0) target = $region37
  $region36: #{desire_forward.1} parent=0 // pred_region
    _
  $region37: #{desire_forward.1} parent=0 // pred_fallthru
    _

</llo_original>
